<compile_context>
chip_gen: v6e
topology: v6e:2x2x1
jax: 0.10.0
libtpu: 0.0.40
codegen_flags: <defaults>
</compile_context>

<pallas_src>
import functools
import numpy as np

import jax
import jax.numpy as jnp
from jax.experimental import pallas as pl
from jax.experimental.pallas import tpu as pltpu


def _vmem_limit_bytes():
    """Generation-aware VMEM scope: ~3/4 of physical capacity.

    v5e/v6e (128 MiB) -> 96 MiB, v7x (64 MiB) -> 48 MiB; leaves headroom for
    compiler scratch and pipeline buffers.
    """
    cap = 128 * 1024 * 1024
    try:
        cap = int(getattr(pltpu.get_tpu_info(), "vmem_capacity_bytes", cap))
    except Exception:
        pass
    return max(32 * 1024 * 1024, (cap * 3) // 4)


def _const_spec(shape, index_map):
    """BlockSpec for a grid-invariant (resident) weight block.

    Single-buffer it (pipeline_mode=pl.Buffered(1)) when the API supports it
    to halve resident-weight VMEM (important on v7x's 64 MiB).
    """
    buffered = getattr(pl, "Buffered", None)
    if buffered is not None:
        try:
            return pl.BlockSpec(shape, index_map, pipeline_mode=buffered(1))
        except Exception:
            pass
    return pl.BlockSpec(shape, index_map)


# ---------------------------------------------------------------------------
# Kernel A: fused projections + rotary theta_shift.
# ---------------------------------------------------------------------------
def _proj_kernel(x_ref, wq_ref, wk_ref, wv_ref, wg_ref,
                 cos_ref, sine_ref, sino_ref,
                 qr_ref, kr_ref, v_ref, g_ref, *, embed_dim):
    x = x_ref[0]                                                   # (ts, E) bf16

    q = jnp.dot(x, wq_ref[...], preferred_element_type=jnp.float32)
    k = jnp.dot(x, wk_ref[...], preferred_element_type=jnp.float32)  # key scaling folded into wk
    v = jnp.dot(x, wv_ref[...], preferred_element_type=jnp.float32)
    g = jnp.dot(x, wg_ref[...], preferred_element_type=jnp.float32)

    cos = cos_ref[...]                      # (ts, E) f32, pre-tiled across heads
    se = sine_ref[...]                      # -sin on even lanes, 0 on odd lanes
    so = sino_ref[...]                      # +sin on odd lanes,  0 on even lanes

    def theta_shift(z):
        # rotate_every_two folded into the signed sin tables:
        #   out[j] = z[j]*cos[j] + z[j+1]*se[j] + z[j-1]*so[j]
        return (z * cos
                + pltpu.roll(z, embed_dim - 1, 1) * se
                + pltpu.roll(z, 1, 1) * so)

    qr_ref[0] = theta_shift(q).astype(qr_ref.dtype)
    kr_ref[0] = theta_shift(k).astype(kr_ref.dtype)
    v_ref[0] = v.astype(v_ref.dtype)
    g_ref[0] = g.astype(g_ref.dtype)


# ---------------------------------------------------------------------------
# Kernel B: retention (flash-style over k-tiles), per (batch, head, q-tile).
# ---------------------------------------------------------------------------
def _retention_body(ld_ref, qr_ref, kr_ref, v_ref, o_ref, rttn_ref, den_ref,
                    acc_ref, row_ref, *, tq, tk, eps):
    h = pl.program_id(1)
    qi = pl.program_id(2)
    ki = pl.program_id(3)
    nk = pl.num_programs(3)

    @pl.when(ki == 0)
    def _():
        acc_ref[...] = jnp.zeros_like(acc_ref)
        row_ref[...] = jnp.zeros_like(row_ref)

    # Skip k-tiles that lie entirely above the causal diagonal.
    live = ki * tk <= qi * tq + (tq - 1)

    if rttn_ref is not None:
        @pl.when(jnp.logical_not(live))
        def _():
            rttn_ref[0, 0] = jnp.zeros((tq, tk), jnp.float32)

    @pl.when(live)
    def _():
        qh = qr_ref[0]                                             # (tq, kd) bf16
        kh = kr_ref[0]                                             # (tk, kd) bf16
        vh = v_ref[0]                                              # (tk, hd) bf16

        qk = jax.lax.dot_general(qh, kh, (((1,), (1,)), ((), ())),
                                 preferred_element_type=jnp.float32)  # (tq, tk)

        # Rank-1 causal decay mask:
        #   decay^(i-j) = exp(ld*(li+base)) * exp(-ld*lj),  base = qi*tq - ki*tk.
        # For live tiles base >= -(tq-1), so both exponentials are bounded;
        # non-causal entries stay finite and are zeroed by the select.
        ld = ld_ref[h]                                             # log(decay_h), SMEM scalar
        li = jax.lax.broadcasted_iota(jnp.int32, (tq, 1), 0)
        lj = jax.lax.broadcasted_iota(jnp.int32, (1, tk), 1)
        basei = qi * tq - ki * tk
        rowf = jnp.exp(ld * (li + basei).astype(jnp.float32))      # (tq, 1)
        colf = jnp.exp((-ld) * lj.astype(jnp.float32))             # (1, tk)
        qk = jnp.where((li + basei) >= lj, (qk * rowf) * colf, 0.0)

        if rttn_ref is not None:
            # Raw (pre-normalization) scores; normalization uses den_ref.
            rttn_ref[0, 0] = qk

        row_ref[...] += jnp.sum(qk, axis=-1, keepdims=True)
        acc_ref[...] += jnp.dot(qk.astype(vh.dtype), vh,
                                preferred_element_type=jnp.float32)

    @pl.when(ki == nk - 1)
    def _():
        denom = jnp.maximum(jnp.abs(row_ref[...]), 1.0)
        # approx reciprocal is safe here: any per-row scale cancels in the RMS norm.
        oh = acc_ref[...] * pl.reciprocal(denom, approx=True)
        # RMS group-norm over head_dim (no affine).
        oh = oh * jax.lax.rsqrt(jnp.mean(oh * oh, axis=-1, keepdims=True) + eps)
        o_ref[0] = oh.astype(o_ref.dtype)
        if den_ref is not None:
            den_ref[0, 0] = denom


def _retention_with_rttn(ld, qr, kr, v, o, rttn, den, acc, row, **kw):
    _retention_body(ld, qr, kr, v, o, rttn, den, acc, row, **kw)


def _retention_no_rttn(ld, qr, kr, v, o, acc, row, **kw):
    _retention_body(ld, qr, kr, v, o, None, None, acc, row, **kw)


# ---------------------------------------------------------------------------
# Kernel C: swish gate + output projection.
# ---------------------------------------------------------------------------
def _output_kernel(o_ref, g_ref, wo_ref, out_ref):
    g = g_ref[0].astype(jnp.float32)                               # (ts, V)
    o = o_ref[0].astype(jnp.float32)
    y = (g * jax.nn.sigmoid(g)) * o                                # silu gate in f32
    out_ref[0] = jnp.dot(y.astype(wo_ref.dtype), wo_ref[...],
                         preferred_element_type=jnp.float32).astype(out_ref.dtype)


# ---------------------------------------------------------------------------
# Wrapper
# ---------------------------------------------------------------------------
def multiscale_retention(x, wq, wk, wv, wg, wo, sin, cos, decay, num_heads,
                         eps=1e-5, rttn_required=False,
                         seq_tile=256, q_tile=256, k_tile=256):
    """RetNet MultiScaleRetention parallel forward.

    Weights are PyTorch-convention (out_features, in_features).  `sin`/`cos`
    are (T, key_dim) rotary tables shared across heads; `decay` is the (H,)
    per-head retention decay in (0, 1).  Returns (output, rttn-or-None).
    """
    B, T, E = x.shape
    V = wv.shape[0]
    key_dim = E // num_heads
    head_dim = V // num_heads
    scaling = key_dim ** (-0.5)

    # Heads are selected out of flat (B,T,E)/(B,T,V) activations via BlockSpec
    # index maps on the last (lane) axis -> head widths must be lane-dense.
    # TODO(synk): pad configs with key_dim/head_dim < 128 instead of asserting.
    assert key_dim % 128 == 0 and head_dim % 128 == 0, (
        "key_dim and head_dim must be multiples of 128")

    ts = min(seq_tile, T)
    tq = min(q_tile, T)
    tk = min(k_tile, T)
    assert T % ts == 0 and T % tq == 0 and T % tk == 0

    bf16 = jnp.bfloat16
    vmem = _vmem_limit_bytes()

    x_bf = x.astype(bf16)
    wqT = wq.T.astype(bf16)
    wkT = (wk.T * scaling).astype(bf16)        # fold key scaling into the weight
    wvT = wv.T.astype(bf16)
    wgT = wg.T.astype(bf16)
    woT = wo.T.astype(bf16)

    # Pre-tile rotary tables across heads and fold the rotate_every_two parity
    # signs into the sin tables (no in-kernel iota/compare/select/concatenate).
    sin_f = jnp.tile(sin.astype(jnp.float32), (1, num_heads))       # (T, E)
    cos_f = jnp.tile(cos.astype(jnp.float32), (1, num_heads))
    even = (jnp.arange(E) % 2 == 0)[None, :]
    sin_even = jnp.where(even, -sin_f, 0.0)
    sin_odd = jnp.where(even, 0.0, sin_f)

    log_decay = jnp.log(decay).astype(jnp.float32)

    # ---- kernel A: projections + theta_shift --------------------------------
    nt = T // ts
    # TODO(synk): for very large E/V add an output-feature grid axis so only an
    # (E, tn) weight slab is resident (v7x has 64 MiB VMEM per TensorCore).
    qr, kr, v, g = pl.pallas_call(
        functools.partial(_proj_kernel, embed_dim=E),
        grid=(B, nt),
        in_specs=[
            pl.BlockSpec((1, ts, E), lambda b, s: (b, s, 0)),
            _const_spec((E, E), lambda b, s: (0, 0)),
            _const_spec((E, E), lambda b, s: (0, 0)),
            _const_spec((E, V), lambda b, s: (0, 0)),
            _const_spec((E, V), lambda b, s: (0, 0)),
            pl.BlockSpec((ts, E), lambda b, s: (s, 0)),
            pl.BlockSpec((ts, E), lambda b, s: (s, 0)),
            pl.BlockSpec((ts, E), lambda b, s: (s, 0)),
        ],
        out_specs=[
            pl.BlockSpec((1, ts, E), lambda b, s: (b, s, 0)),
            pl.BlockSpec((1, ts, E), lambda b, s: (b, s, 0)),
            pl.BlockSpec((1, ts, V), lambda b, s: (b, s, 0)),
            pl.BlockSpec((1, ts, V), lambda b, s: (b, s, 0)),
        ],
        out_shape=[
            jax.ShapeDtypeStruct((B, T, E), bf16),    # qr (flat; head picked via BlockSpec later)
            jax.ShapeDtypeStruct((B, T, E), bf16),    # kr
            jax.ShapeDtypeStruct((B, T, V), bf16),    # v
            jax.ShapeDtypeStruct((B, T, V), bf16),    # g (bf16 halves HBM traffic)
        ],
        compiler_params=pltpu.CompilerParams(
            dimension_semantics=("parallel", "parallel"),
            vmem_limit_bytes=vmem),
    )(x_bf, wqT, wkT, wvT, wgT, cos_f, sin_even, sin_odd)

    # ---- kernel B: retention over (batch, head, q-tile, k-tile) --------------
    nq, nk = T // tq, T // tk
    ret_in_specs = [
        pl.BlockSpec(memory_space=pltpu.MemorySpace.SMEM),           # log_decay (H,)
        pl.BlockSpec((1, tq, key_dim), lambda b, h, i, j: (b, i, h)),
        pl.BlockSpec((1, tk, key_dim), lambda b, h, i, j: (b, j, h)),
        pl.BlockSpec((1, tk, head_dim), lambda b, h, i, j: (b, j, h)),
    ]
    o_spec = pl.BlockSpec((1, tq, head_dim), lambda b, h, i, j: (b, i, h))
    ret_scratch = [pltpu.VMEM((tq, head_dim), jnp.float32),          # unnormalized o
                   pltpu.VMEM((tq, 1), jnp.float32)]                 # signed row-sum
    ret_params = pltpu.CompilerParams(
        dimension_semantics=("parallel", "parallel", "parallel", "arbitrary"),
        vmem_limit_bytes=vmem)

    # TODO(synk): for large T, flatten (qi, ki) onto the lower triangle with
    # PrefetchScalarGridSpec index arrays so skipped tiles also avoid DMA and
    # per-step overhead (pl.when above only skips their compute).

    if rttn_required:
        o_flat, rttn_raw, den = pl.pallas_call(
            functools.partial(_retention_with_rttn, tq=tq, tk=tk, eps=eps),
            grid=(B, num_heads, nq, nk),
            in_specs=ret_in_specs,
            out_specs=[o_spec,
                       pl.BlockSpec((1, 1, tq, tk), lambda b, h, i, j: (b, h, i, j)),
                       pl.BlockSpec((1, 1, tq, 1), lambda b, h, i, j: (b, h, i, 0))],
            out_shape=[
                jax.ShapeDtypeStruct((B, T, V), bf16),
                jax.ShapeDtypeStruct((B, num_heads, T, T), jnp.float32),
                jax.ShapeDtypeStruct((B, num_heads, T, 1), jnp.float32),
            ],
            scratch_shapes=ret_scratch,
            compiler_params=ret_params,
        )(log_decay, qr, kr, v)
        # Denominator comes from the kernel: no extra (B,H,T,T) read pass.
        rttn = rttn_raw / den
    else:
        o_flat = pl.pallas_call(
            functools.partial(_retention_no_rttn, tq=tq, tk=tk, eps=eps),
            grid=(B, num_heads, nq, nk),
            in_specs=ret_in_specs,
            out_specs=o_spec,
            out_shape=jax.ShapeDtypeStruct((B, T, V), bf16),
            scratch_shapes=ret_scratch,
            compiler_params=ret_params,
        )(log_decay, qr, kr, v)
        rttn = None

    # ---- kernel C: swish gate + output projection ----------------------------
    out = pl.pallas_call(
        _output_kernel,
        grid=(B, nt),
        in_specs=[
            pl.BlockSpec((1, ts, V), lambda b, s: (b, s, 0)),
            pl.BlockSpec((1, ts, V), lambda b, s: (b, s, 0)),
            _const_spec((V, E), lambda b, s: (0, 0)),
        ],
        out_specs=pl.BlockSpec((1, ts, E), lambda b, s: (b, s, 0)),
        out_shape=jax.ShapeDtypeStruct((B, T, E), jnp.float32),
        compiler_params=pltpu.CompilerParams(
            dimension_semantics=("parallel", "parallel"),
            vmem_limit_bytes=vmem),
    )(o_flat, g, woT)

    return out, rttn


# ----------------------------- pure-JAX reference -----------------------------
def _reference(x, wq, wk, wv, wg, wo, sin, cos, decay, num_heads, eps=1e-5):
    B, T, E = x.shape
    V = wv.shape[0]
    key_dim = E // num_heads
    head_dim = V // num_heads
    scaling = key_dim ** (-0.5)

    q = x @ wq.T
    k = (x @ wk.T) * scaling
    v = x @ wv.T
    g = x @ wg.T

    q = q.reshape(B, T, num_heads, key_dim).transpose(0, 2, 1, 3)
    k = k.reshape(B, T, num_heads, key_dim).transpose(0, 2, 1, 3)

    def rot(z):
        z1 = z[..., ::2]
        z2 = z[..., 1::2]
        return jnp.stack([-z2, z1], axis=-1).reshape(z.shape)

    qr = q * cos + rot(q) * sin
    kr = k * cos + rot(k) * sin

    pos = jnp.arange(T, dtype=jnp.float32)
    diff = pos[:, None] - pos[None, :]
    mask = jnp.where(diff >= 0,
                     decay[:, None, None] ** jnp.maximum(diff, 0.0)[None],
                     0.0).astype(jnp.float32)

    vr = v.reshape(B, T, num_heads, head_dim).transpose(0, 2, 1, 3)
    qk = jnp.einsum('bhtk,bhsk->bhts', qr, kr)
    qk = qk * mask
    qk = qk / jnp.maximum(jnp.abs(qk.sum(-1, keepdims=True)), 1.0)
    o = jnp.einsum('bhts,bhsd->bhtd', qk, vr)
    o = o.transpose(0, 2, 1, 3)                                   # (B, T, H, Dh)
    o = o * jax.lax.rsqrt(jnp.mean(o * o, -1, keepdims=True) + eps)
    o = o.reshape(B, T, V)
    o = (g * jax.nn.sigmoid(g)) * o
    return o @ wo.T, qk


# ---------------------------------- driver ------------------------------------
if __name__ == "__main__":
    # 128-aligned (lane-dense) but small; T=512 with 256 tiles exercises the
    # multi-k-tile accumulation and the causal-tile skip path.
    B, T = 2, 512
    embed_dim, value_dim, num_heads = 256, 256, 2
    key_dim = embed_dim // num_heads
    eps = 1e-5

    key = jax.random.PRNGKey(0)
    kx, kq, kk, kv, kg, ko = jax.random.split(key, 6)

    def xavier_uniform(k, out_dim, in_dim, gain):
        a = gain * np.sqrt(6.0 / (in_dim + out_dim))
        return jax.random.uniform(k, (out_dim, in_dim), jnp.float32, -a, a)

    gain = 2.0 ** (-2.5)
    wq = xavier_uniform(kq, embed_dim, embed_dim, gain)
    wk = xavier_uniform(kk, embed_dim, embed_dim, gain)
    wv = xavier_uniform(kv, value_dim, embed_dim, gain)
    wg = xavier_uniform(kg, value_dim, embed_dim, gain)
    wo = xavier_uniform(ko, embed_dim, value_dim, 1.0)

    x = jax.random.normal(kx, (B, T, embed_dim), jnp.float32)

    # rel_pos: rotary sin/cos (T, key_dim) and per-head decay (H,).
    pos = jnp.arange(T, dtype=jnp.float32)
    theta = 10000.0 ** (-2.0 * (jnp.arange(key_dim // 2, dtype=jnp.float32) / key_dim))
    theta = jnp.repeat(theta, 2)
    angle = pos[:, None] * theta[None, :]
    sin, cos = jnp.sin(angle), jnp.cos(angle)
    decay = 1.0 - 2.0 ** (-5.0 - jnp.arange(num_heads, dtype=jnp.float32))

    ref_out, ref_rttn = _reference(x, wq, wk, wv, wg, wo, sin, cos, decay,
                                   num_heads, eps=eps)

    # Path 1: rttn materialized.
    out, rttn = multiscale_retention(x, wq, wk, wv, wg, wo, sin, cos, decay,
                                     num_heads, eps=eps, rttn_required=True)
    out = jax.block_until_ready(out)
    rttn = jax.block_until_ready(rttn)
    np.testing.assert_allclose(np.asarray(out), np.asarray(ref_out),
                               rtol=2e-2, atol=2e-2)
    np.testing.assert_allclose(np.asarray(rttn), np.asarray(ref_rttn),
                               rtol=2e-2, atol=2e-2)

    # Path 2: rttn skipped (no (B,H,T,T) HBM writeback).
    out2, rttn2 = multiscale_retention(x, wq, wk, wv, wg, wo, sin, cos, decay,
                                       num_heads, eps=eps, rttn_required=False)
    out2 = jax.block_until_ready(out2)
    assert rttn2 is None
    np.testing.assert_allclose(np.asarray(out2), np.asarray(ref_out),
                               rtol=2e-2, atol=2e-2)

    print("KERNEL_OK")
</pallas_src>

<mosaic_0001>
module attributes {stable_mosaic.version = 11 : i64} {
  func.func @_proj_kernel(%arg0: i32, %arg1: i32, %arg2: memref<1x256x256xbf16, #tpu.memory_space<vmem>>, %arg3: memref<256x256xbf16, #tpu.memory_space<vmem>>, %arg4: memref<256x256xbf16, #tpu.memory_space<vmem>>, %arg5: memref<256x256xbf16, #tpu.memory_space<vmem>>, %arg6: memref<256x256xbf16, #tpu.memory_space<vmem>>, %arg7: memref<256x256xf32, #tpu.memory_space<vmem>>, %arg8: memref<256x256xf32, #tpu.memory_space<vmem>>, %arg9: memref<256x256xf32, #tpu.memory_space<vmem>>, %arg10: memref<1x256x256xbf16, #tpu.memory_space<vmem>>, %arg11: memref<1x256x256xbf16, #tpu.memory_space<vmem>>, %arg12: memref<1x256x256xbf16, #tpu.memory_space<vmem>>, %arg13: memref<1x256x256xbf16, #tpu.memory_space<vmem>>) attributes {dimension_semantics = [#tpu.dimension_semantics<parallel>, #tpu.dimension_semantics<parallel>], iteration_bounds = array<i64: 2, 2>, scalar_prefetch = 0 : i64, scratch_operands = 0 : i64, tpu.core_type = #tpu.core_type<tc>, window_params = [{transform_indices = @transform_0, window_bounds = array<i64: 1, 256, 256>}, {pipeline_mode = #tpu.pipeline_mode<synchronous>, transform_indices = @transform_1, window_bounds = array<i64: 256, 256>}, {pipeline_mode = #tpu.pipeline_mode<synchronous>, transform_indices = @transform_2, window_bounds = array<i64: 256, 256>}, {pipeline_mode = #tpu.pipeline_mode<synchronous>, transform_indices = @transform_3, window_bounds = array<i64: 256, 256>}, {pipeline_mode = #tpu.pipeline_mode<synchronous>, transform_indices = @transform_4, window_bounds = array<i64: 256, 256>}, {transform_indices = @transform_5, window_bounds = array<i64: 256, 256>}, {transform_indices = @transform_6, window_bounds = array<i64: 256, 256>}, {transform_indices = @transform_7, window_bounds = array<i64: 256, 256>}, {transform_indices = @transform_8, window_bounds = array<i64: 1, 256, 256>}, {transform_indices = @transform_9, window_bounds = array<i64: 1, 256, 256>}, {transform_indices = @transform_10, window_bounds = array<i64: 1, 256, 256>}, {transform_indices = @transform_11, window_bounds = array<i64: 1, 256, 256>}]} {
    %c0 = arith.constant 0 : index
    %c0_0 = arith.constant 0 : index
    %c0_1 = arith.constant 0 : index
    %0 = vector.load %arg2[%c0, %c0_0, %c0_1] : memref<1x256x256xbf16, #tpu.memory_space<vmem>>, vector<1x256x256xbf16>
    %1 = vector.shape_cast %0 : vector<1x256x256xbf16> to vector<256x256xbf16>
    %c0_2 = arith.constant 0 : index
    %c0_3 = arith.constant 0 : index
    %2 = vector.load %arg3[%c0_2, %c0_3] : memref<256x256xbf16, #tpu.memory_space<vmem>>, vector<256x256xbf16>
    %cst = arith.constant dense<0.000000e+00> : vector<256x256xf32>
    %3 = tpu.matmul %1, %2, %cst {dimension_numbers = #tpu.dot_dimension_numbers<[1], [0], [0], [1], [0, 0, 1, 1], [], []>} : vector<256x256xbf16>, vector<256x256xbf16>, vector<256x256xf32> -> vector<256x256xf32>
    %c0_4 = arith.constant 0 : index
    %c0_5 = arith.constant 0 : index
    %4 = vector.load %arg4[%c0_4, %c0_5] : memref<256x256xbf16, #tpu.memory_space<vmem>>, vector<256x256xbf16>
    %cst_6 = arith.constant dense<0.000000e+00> : vector<256x256xf32>
    %5 = tpu.matmul %1, %4, %cst_6 {dimension_numbers = #tpu.dot_dimension_numbers<[1], [0], [0], [1], [0, 0, 1, 1], [], []>} : vector<256x256xbf16>, vector<256x256xbf16>, vector<256x256xf32> -> vector<256x256xf32>
    %c0_7 = arith.constant 0 : index
    %c0_8 = arith.constant 0 : index
    %6 = vector.load %arg5[%c0_7, %c0_8] : memref<256x256xbf16, #tpu.memory_space<vmem>>, vector<256x256xbf16>
    %cst_9 = arith.constant dense<0.000000e+00> : vector<256x256xf32>
    %7 = tpu.matmul %1, %6, %cst_9 {dimension_numbers = #tpu.dot_dimension_numbers<[1], [0], [0], [1], [0, 0, 1, 1], [], []>} : vector<256x256xbf16>, vector<256x256xbf16>, vector<256x256xf32> -> vector<256x256xf32>
    %c0_10 = arith.constant 0 : index
    %c0_11 = arith.constant 0 : index
    %8 = vector.load %arg6[%c0_10, %c0_11] : memref<256x256xbf16, #tpu.memory_space<vmem>>, vector<256x256xbf16>
    %cst_12 = arith.constant dense<0.000000e+00> : vector<256x256xf32>
    %9 = tpu.matmul %1, %8, %cst_12 {dimension_numbers = #tpu.dot_dimension_numbers<[1], [0], [0], [1], [0, 0, 1, 1], [], []>} : vector<256x256xbf16>, vector<256x256xbf16>, vector<256x256xf32> -> vector<256x256xf32>
    %c0_13 = arith.constant 0 : index
    %c0_14 = arith.constant 0 : index
    %10 = vector.load %arg7[%c0_13, %c0_14] : memref<256x256xf32, #tpu.memory_space<vmem>>, vector<256x256xf32>
    %c0_15 = arith.constant 0 : index
    %c0_16 = arith.constant 0 : index
    %11 = vector.load %arg8[%c0_15, %c0_16] : memref<256x256xf32, #tpu.memory_space<vmem>>, vector<256x256xf32>
    %c0_17 = arith.constant 0 : index
    %c0_18 = arith.constant 0 : index
    %12 = vector.load %arg9[%c0_17, %c0_18] : memref<256x256xf32, #tpu.memory_space<vmem>>, vector<256x256xf32>
    %13 = arith.mulf %3, %10 : vector<256x256xf32>
    %c255_i32 = arith.constant 255 : i32
    %14 = tpu.dynamic_rotate %3 by %c255_i32 dim 1 : vector<256x256xf32>, i32 -> vector<256x256xf32>
    %15 = arith.mulf %14, %11 : vector<256x256xf32>
    %16 = arith.addf %13, %15 : vector<256x256xf32>
    %c1_i32 = arith.constant 1 : i32
    %17 = tpu.dynamic_rotate %3 by %c1_i32 dim 1 : vector<256x256xf32>, i32 -> vector<256x256xf32>
    %18 = arith.mulf %17, %12 : vector<256x256xf32>
    %19 = arith.addf %16, %18 : vector<256x256xf32>
    %20 = arith.truncf %19 : vector<256x256xf32> to vector<256x256xbf16>
    %c0_19 = arith.constant 0 : index
    %c0_20 = arith.constant 0 : index
    %c0_21 = arith.constant 0 : index
    %21 = vector.load %arg10[%c0_19, %c0_20, %c0_21] : memref<1x256x256xbf16, #tpu.memory_space<vmem>>, vector<1x256x256xbf16>
    %22 = vector.shape_cast %21 : vector<1x256x256xbf16> to vector<256x256xbf16>
    %23 = vector.shape_cast %20 : vector<256x256xbf16> to vector<1x256x256xbf16>
    tpu.vector_store %arg10[%c0_19, %c0_20, %c0_21], %23 {strides = array<i32>} : memref<1x256x256xbf16, #tpu.memory_space<vmem>>, vector<1x256x256xbf16>,
    %24 = arith.mulf %5, %10 : vector<256x256xf32>
    %c255_i32_22 = arith.constant 255 : i32
    %25 = tpu.dynamic_rotate %5 by %c255_i32_22 dim 1 : vector<256x256xf32>, i32 -> vector<256x256xf32>
    %26 = arith.mulf %25, %11 : vector<256x256xf32>
    %27 = arith.addf %24, %26 : vector<256x256xf32>
    %c1_i32_23 = arith.constant 1 : i32
    %28 = tpu.dynamic_rotate %5 by %c1_i32_23 dim 1 : vector<256x256xf32>, i32 -> vector<256x256xf32>
    %29 = arith.mulf %28, %12 : vector<256x256xf32>
    %30 = arith.addf %27, %29 : vector<256x256xf32>
    %31 = arith.truncf %30 : vector<256x256xf32> to vector<256x256xbf16>
    %c0_24 = arith.constant 0 : index
    %c0_25 = arith.constant 0 : index
    %c0_26 = arith.constant 0 : index
    %32 = vector.load %arg11[%c0_24, %c0_25, %c0_26] : memref<1x256x256xbf16, #tpu.memory_space<vmem>>, vector<1x256x256xbf16>
    %33 = vector.shape_cast %32 : vector<1x256x256xbf16> to vector<256x256xbf16>
    %34 = vector.shape_cast %31 : vector<256x256xbf16> to vector<1x256x256xbf16>
    tpu.vector_store %arg11[%c0_24, %c0_25, %c0_26], %34 {strides = array<i32>} : memref<1x256x256xbf16, #tpu.memory_space<vmem>>, vector<1x256x256xbf16>,
    %35 = arith.truncf %7 : vector<256x256xf32> to vector<256x256xbf16>
    %c0_27 = arith.constant 0 : index
    %c0_28 = arith.constant 0 : index
    %c0_29 = arith.constant 0 : index
    %36 = vector.load %arg12[%c0_27, %c0_28, %c0_29] : memref<1x256x256xbf16, #tpu.memory_space<vmem>>, vector<1x256x256xbf16>
    %37 = vector.shape_cast %36 : vector<1x256x256xbf16> to vector<256x256xbf16>
    %38 = vector.shape_cast %35 : vector<256x256xbf16> to vector<1x256x256xbf16>
    tpu.vector_store %arg12[%c0_27, %c0_28, %c0_29], %38 {strides = array<i32>} : memref<1x256x256xbf16, #tpu.memory_space<vmem>>, vector<1x256x256xbf16>,
    %39 = arith.truncf %9 : vector<256x256xf32> to vector<256x256xbf16>
    %c0_30 = arith.constant 0 : index
    %c0_31 = arith.constant 0 : index
    %c0_32 = arith.constant 0 : index
    %40 = vector.load %arg13[%c0_30, %c0_31, %c0_32] : memref<1x256x256xbf16, #tpu.memory_space<vmem>>, vector<1x256x256xbf16>
    %41 = vector.shape_cast %40 : vector<1x256x256xbf16> to vector<256x256xbf16>
    %42 = vector.shape_cast %39 : vector<256x256xbf16> to vector<1x256x256xbf16>
    tpu.vector_store %arg13[%c0_30, %c0_31, %c0_32], %42 {strides = array<i32>} : memref<1x256x256xbf16, #tpu.memory_space<vmem>>, vector<1x256x256xbf16>,
    return
  }
  func.func @transform_0(%arg0: i32, %arg1: i32) -> (i32, i32, i32) {
    %c0_i32 = arith.constant 0 : i32
    %c0_i32_0 = arith.constant 0 : i32
    return %arg0, %arg1, %c0_i32 : i32, i32, i32
  }
  func.func @transform_1(%arg0: i32, %arg1: i32) -> (i32, i32) {
    %c0_i32 = arith.constant 0 : i32
    %c0_i32_0 = arith.constant 0 : i32
    %c0_i32_1 = arith.constant 0 : i32
    return %c0_i32, %c0_i32_0 : i32, i32
  }
  func.func @transform_2(%arg0: i32, %arg1: i32) -> (i32, i32) {
    %c0_i32 = arith.constant 0 : i32
    %c0_i32_0 = arith.constant 0 : i32
    %c0_i32_1 = arith.constant 0 : i32
    return %c0_i32, %c0_i32_0 : i32, i32
  }
  func.func @transform_3(%arg0: i32, %arg1: i32) -> (i32, i32) {
    %c0_i32 = arith.constant 0 : i32
    %c0_i32_0 = arith.constant 0 : i32
    %c0_i32_1 = arith.constant 0 : i32
    return %c0_i32, %c0_i32_0 : i32, i32
  }
  func.func @transform_4(%arg0: i32, %arg1: i32) -> (i32, i32) {
    %c0_i32 = arith.constant 0 : i32
    %c0_i32_0 = arith.constant 0 : i32
    %c0_i32_1 = arith.constant 0 : i32
    return %c0_i32, %c0_i32_0 : i32, i32
  }
  func.func @transform_5(%arg0: i32, %arg1: i32) -> (i32, i32) {
    %c0_i32 = arith.constant 0 : i32
    %c0_i32_0 = arith.constant 0 : i32
    return %arg1, %c0_i32 : i32, i32
  }
  func.func @transform_6(%arg0: i32, %arg1: i32) -> (i32, i32) {
    %c0_i32 = arith.constant 0 : i32
    %c0_i32_0 = arith.constant 0 : i32
    return %arg1, %c0_i32 : i32, i32
  }
  func.func @transform_7(%arg0: i32, %arg1: i32) -> (i32, i32) {
    %c0_i32 = arith.constant 0 : i32
    %c0_i32_0 = arith.constant 0 : i32
    return %arg1, %c0_i32 : i32, i32
  }
  func.func @transform_8(%arg0: i32, %arg1: i32) -> (i32, i32, i32) {
    %c0_i32 = arith.constant 0 : i32
    %c0_i32_0 = arith.constant 0 : i32
    return %arg0, %arg1, %c0_i32 : i32, i32, i32
  }
  func.func @transform_9(%arg0: i32, %arg1: i32) -> (i32, i32, i32) {
    %c0_i32 = arith.constant 0 : i32
    %c0_i32_0 = arith.constant 0 : i32
    return %arg0, %arg1, %c0_i32 : i32, i32, i32
  }
  func.func @transform_10(%arg0: i32, %arg1: i32) -> (i32, i32, i32) {
    %c0_i32 = arith.constant 0 : i32
    %c0_i32_0 = arith.constant 0 : i32
    return %arg0, %arg1, %c0_i32 : i32, i32, i32
  }
  func.func @transform_11(%arg0: i32, %arg1: i32) -> (i32, i32, i32) {
    %c0_i32 = arith.constant 0 : i32
    %c0_i32_0 = arith.constant 0 : i32
    return %arg0, %arg1, %c0_i32 : i32, i32, i32
  }
}

</mosaic_0001>

<llo_original>
// kernel: tpu_custom_call.1
$region0: #{tpu_custom_call.1}
  #allocation0 [shape = 'u32[]', space=smem, size = 0x4, offset = 0x4, fixed_abs, tag = 'smem constant byte address 0x4 - core index']
  #allocation1 [shape = 'u32[144,128]{1,0:T(1,128)}', space=vmem, size = 0x12000, scoped, tag = 'internal scratch']
  %s0 = inlined_call_operand.hbm [shape: bf16[2,512,256], index: 0, kind: input, shape index: {}]
  %s1 = inlined_call_operand.hbm [shape: bf16[256,256], index: 1, kind: input, shape index: {}]
  %s2 = inlined_call_operand.hbm [shape: bf16[256,256], index: 2, kind: input, shape index: {}]
  %s3 = inlined_call_operand.hbm [shape: bf16[256,256], index: 3, kind: input, shape index: {}]
  %s4 = inlined_call_operand.hbm [shape: bf16[256,256], index: 4, kind: input, shape index: {}]
  %s5 = inlined_call_operand.hbm [shape: f32[512,256], index: 5, kind: input, shape index: {}]
  %s6 = inlined_call_operand.hbm [shape: f32[512,256], index: 6, kind: input, shape index: {}]
  %s7 = inlined_call_operand.hbm [shape: f32[512,256], index: 7, kind: input, shape index: {}]
  %s8 = inlined_call_operand.hbm [shape: bf16[2,512,256], index: 8, kind: output, shape index: {0}]
  %s9 = inlined_call_operand.hbm [shape: bf16[2,512,256], index: 9, kind: output, shape index: {1}]
  %s10 = inlined_call_operand.hbm [shape: bf16[2,512,256], index: 10, kind: output, shape index: {2}]
  %s11 = inlined_call_operand.hbm [shape: bf16[2,512,256], index: 11, kind: output, shape index: {3}]
  %12 = xla_tuple %s8, %s9, %s10, %s11
  %s13 = sld [smem:[#allocation0]]
  $region121: #{tpu_custom_call.1} parent=0
    _
  %s15 = ssub.s32 1, %s13
  %s16 = scalar_select 0, %s15, %s13
  $region1: #{tpu_custom_call.1} parent=0
    #allocation2 [shape = 'u8[262144]{0}', space=vmem, size = 0x40000, scoped, tag = 'input window, operand 0']
    #allocation3 [shape = 's32[2]{0}', space=sflag, size = 0x8, scoped, tag = 'scoped memory for tpu_custom_call.1']
    #allocation4 [shape = 's32[2]{0}', space=sflag, size = 0x8, scoped, tag = 'scoped memory for tpu_custom_call.1']
    #allocation5 [shape = 'u8[131072]{0}', space=vmem, size = 0x20000, scoped, tag = 'input window, operand 1, single buffered']
    #allocation6 [shape = 's32[1]{0}', space=sflag, size = 0x4, scoped, tag = 'scoped memory for tpu_custom_call.1']
    #allocation7 [shape = 'u8[131072]{0}', space=vmem, size = 0x20000, scoped, tag = 'input window, operand 2, single buffered']
    #allocation8 [shape = 'u8[131072]{0}', space=vmem, size = 0x20000, scoped, tag = 'input window, operand 3, single buffered']
    #allocation9 [shape = 's32[1]{0}', space=sflag, size = 0x4, scoped, tag = 'scoped memory for tpu_custom_call.1']
    #allocation10 [shape = 'u8[131072]{0}', space=vmem, size = 0x20000, scoped, tag = 'input window, operand 4, single buffered']
    #allocation11 [shape = 'u8[524288]{0}', space=vmem, size = 0x80000, scoped, tag = 'input window, operand 5']
    #allocation12 [shape = 's32[2]{0}', space=sflag, size = 0x8, scoped, tag = 'scoped memory for tpu_custom_call.1']
    #allocation13 [shape = 'u8[524288]{0}', space=vmem, size = 0x80000, scoped, tag = 'input window, operand 6']
    #allocation14 [shape = 'u8[524288]{0}', space=vmem, size = 0x80000, scoped, tag = 'input window, operand 7']
    #allocation15 [shape = 's32[2]{0}', space=sflag, size = 0x8, scoped, tag = 'scoped memory for tpu_custom_call.1']
    #allocation16 [shape = 'u8[262144]{0}', space=vmem, size = 0x40000, scoped, tag = 'output window, operand 0']
    #allocation17 [shape = 'u8[262144]{0}', space=vmem, size = 0x40000, scoped, tag = 'output window, operand 1']
    #allocation18 [shape = 's32[2]{0}', space=sflag, size = 0x8, scoped, tag = 'scoped memory for tpu_custom_call.1']
    #allocation19 [shape = 'u8[262144]{0}', space=vmem, size = 0x40000, scoped, tag = 'output window, operand 2']
    #allocation20 [shape = 'u8[262144]{0}', space=vmem, size = 0x40000, scoped, tag = 'output window, operand 3']
    #allocation21 [shape = 's32[2]{0}', space=sflag, size = 0x8, scoped, tag = 'scoped memory for tpu_custom_call.1']
    %17 = vsyncpa [#allocation3], 0
    %s18 = scalar_lea.sflag [#allocation3], 1
    %19 = vsyncpa %s18, 0
    %20 = vsyncpa [#allocation6], 0
    %21 = vsyncpa [#allocation9], 0
    %22 = vsyncpa [#allocation12], 0
    %s23 = scalar_lea.sflag [#allocation12], 1
    %24 = vsyncpa %s23, 0
    %25 = vsyncpa [#allocation15], 0
    %s26 = scalar_lea.sflag [#allocation15], 1
    %27 = vsyncpa %s26, 0
    %28 = vsyncpa [#allocation4], 0
    %s29 = scalar_lea.sflag [#allocation4], 1
    %30 = vsyncpa %s29, 0
    %31 = vsyncpa [#allocation18], 0
    %s32 = scalar_lea.sflag [#allocation18], 1
    %33 = vsyncpa %s32, 0
    %34 = vsyncpa [#allocation21], 0
    %s35 = scalar_lea.sflag [#allocation21], 1
    %36 = vsyncpa %s35, 0
    loop: start=0, step=1, limit=6
    $region2: #{tpu_custom_call.1} parent=1 // loop_pre_header
      _
    $region3: #{tpu_custom_call.1} parent=1 // loop_header
      %s38 = sphi 0, %s42
      %p39 = scmp.ge.s32.totalorder %s38, 6
      %s45 = sphi 0, %s57
      %s46 = sphi 0, %s53
      %s47 = sphi 0, %s45
      %s48 = sphi 0, %s46
      %s49 = sphi 0, %s47
      %s50 = sphi 0, %s48
      %s62 = sphi 0, %s64
      %s65 = sphi 0, %s62
      %s66 = sphi 0, %s65
      %s82 = sphi 0, %s66
      %s86 = sphi 0, %s86
      %s88 = sphi 0, %s86
      %s89 = sphi 0, %s88
      %s103 = sphi 0, %s89
      %s107 = sphi 0, %s107
      %s109 = sphi 0, %s107
      %s110 = sphi 0, %s109
      %s124 = sphi 0, %s110
      %s128 = sphi 0, %s128
      %s130 = sphi 0, %s128
      %s131 = sphi 0, %s130
      %s145 = sphi 0, %s131
      %s149 = sphi 0, %s149
      %s151 = sphi 0, %s149
      %s152 = sphi 0, %s151
      %s166 = sphi 0, %s152
      %s172 = sphi 0, %s174
      %s175 = sphi 0, %s172
      %s176 = sphi 0, %s175
      %s192 = sphi 0, %s176
      %s198 = sphi 0, %s200
      %s201 = sphi 0, %s198
      %s202 = sphi 0, %s201
      %s218 = sphi 0, %s202
      %s224 = sphi 0, %s226
      %s227 = sphi 0, %s224
      %s228 = sphi 0, %s227
      %s244 = sphi 0, %s228
      %s252 = sphi 0, %s254
      %s255 = sphi 0, %s252
      %s256 = sphi 0, %s255
      %s272 = sphi 0, %s256
      %s280 = sphi 0, %s282
      %s283 = sphi 0, %s280
      %s284 = sphi 0, %s283
      %s300 = sphi 0, %s284
      %s308 = sphi 0, %s310
      %s311 = sphi 0, %s308
      %s312 = sphi 0, %s311
      %s328 = sphi 0, %s312
      %s336 = sphi 0, %s338
      %s339 = sphi 0, %s336
      %s340 = sphi 0, %s339
      %s356 = sphi 0, %s340
    $region4: #{tpu_custom_call.1} parent=1 // loop_header_branch
      %41 = sbr.rel (%p39) target = $region8
    $region5: #{tpu_custom_call.1} parent=1 // loop_body
      %s43 = ssub.s32 %s38, 1
      %s44 = ssub.s32 %s38, 2
      %s51 = sadd.s32 1, %s46
      %p52 = scmp.ge.s32.totalorder %s51, 2
      %s53 = scalar_select %p52, 0, %s51
      %s54 = sadd.s32 1, %s45
      %s55 = scalar_select %p52, %s54, %s45
      %p56 = scmp.ge.s32.totalorder %s55, 2
      %s57 = scalar_select %p56, 0, %s55
      %s58 = ssub.s32 %s45, %s57
      %s59 = ssub.s32 %s46, %s53
      %s60 = sor.u32 %s58, %s59
      %p61 = scmp.eq.s32.totalorder %s60, 0
      %s63 = sadd.s32 %s62, 1
      %s64 = scalar_select %p61, %s62, %s63
      %p67 = pneg %p61
      %p68 = scmp.eq.s32.totalorder %s38, 3
      %p69 = por %p67, %p68
      %p70 = scmp.ne.s32.totalorder %s62, %s65
      %p71 = scmp.eq.s32.totalorder %s38, 0
      %p72 = por %p70, %p71
      %p73 = scmp.ne.s32.totalorder %s62, %s65
      %p74 = scmp.eq.s32.totalorder %s43, 3
      %p75 = por %p73, %p74
      %p76 = scmp.ne.s32.totalorder %s65, %s66
      %p77 = scmp.eq.s32.totalorder %s43, 0
      %p78 = por %p76, %p77
      %p79 = scmp.ne.s32.totalorder %s65, %s66
      %p80 = scmp.eq.s32.totalorder %s44, 3
      %p81 = por %p79, %p80
      %p83 = scmp.ne.s32.totalorder %s66, %s82
      %p84 = scmp.eq.s32.totalorder %s44, 0
      %p85 = por %p83, %p84
      %s87 = sadd.s32 %s86, 1
      %p90 = scmp.eq.s32.totalorder %s38, 3
      %p91 = scmp.ne.s32.totalorder %s86, %s88
      %p92 = scmp.eq.s32.totalorder %s38, 0
      %p93 = por %p91, %p92
      %p94 = scmp.ne.s32.totalorder %s86, %s88
      %p95 = scmp.eq.s32.totalorder %s43, 3
      %p96 = por %p94, %p95
      %p97 = scmp.ne.s32.totalorder %s88, %s89
      %p98 = scmp.eq.s32.totalorder %s43, 0
      %p99 = por %p97, %p98
      %p100 = scmp.ne.s32.totalorder %s88, %s89
      %p101 = scmp.eq.s32.totalorder %s44, 3
      %p102 = por %p100, %p101
      %p104 = scmp.ne.s32.totalorder %s89, %s103
      %p105 = scmp.eq.s32.totalorder %s44, 0
      %p106 = por %p104, %p105
      %s108 = sadd.s32 %s107, 1
      %p111 = scmp.eq.s32.totalorder %s38, 3
      %p112 = scmp.ne.s32.totalorder %s107, %s109
      %p113 = scmp.eq.s32.totalorder %s38, 0
      %p114 = por %p112, %p113
      %p115 = scmp.ne.s32.totalorder %s107, %s109
      %p116 = scmp.eq.s32.totalorder %s43, 3
      %p117 = por %p115, %p116
      %p118 = scmp.ne.s32.totalorder %s109, %s110
      %p119 = scmp.eq.s32.totalorder %s43, 0
      %p120 = por %p118, %p119
      %p121 = scmp.ne.s32.totalorder %s109, %s110
      %p122 = scmp.eq.s32.totalorder %s44, 3
      %p123 = por %p121, %p122
      %p125 = scmp.ne.s32.totalorder %s110, %s124
      %p126 = scmp.eq.s32.totalorder %s44, 0
      %p127 = por %p125, %p126
      %s129 = sadd.s32 %s128, 1
      %p132 = scmp.eq.s32.totalorder %s38, 3
      %p133 = scmp.ne.s32.totalorder %s128, %s130
      %p134 = scmp.eq.s32.totalorder %s38, 0
      %p135 = por %p133, %p134
      %p136 = scmp.ne.s32.totalorder %s128, %s130
      %p137 = scmp.eq.s32.totalorder %s43, 3
      %p138 = por %p136, %p137
      %p139 = scmp.ne.s32.totalorder %s130, %s131
      %p140 = scmp.eq.s32.totalorder %s43, 0
      %p141 = por %p139, %p140
      %p142 = scmp.ne.s32.totalorder %s130, %s131
      %p143 = scmp.eq.s32.totalorder %s44, 3
      %p144 = por %p142, %p143
      %p146 = scmp.ne.s32.totalorder %s131, %s145
      %p147 = scmp.eq.s32.totalorder %s44, 0
      %p148 = por %p146, %p147
      %s150 = sadd.s32 %s149, 1
      %p153 = scmp.eq.s32.totalorder %s38, 3
      %p154 = scmp.ne.s32.totalorder %s149, %s151
      %p155 = scmp.eq.s32.totalorder %s38, 0
      %p156 = por %p154, %p155
      %p157 = scmp.ne.s32.totalorder %s149, %s151
      %p158 = scmp.eq.s32.totalorder %s43, 3
      %p159 = por %p157, %p158
      %p160 = scmp.ne.s32.totalorder %s151, %s152
      %p161 = scmp.eq.s32.totalorder %s43, 0
      %p162 = por %p160, %p161
      %p163 = scmp.ne.s32.totalorder %s151, %s152
      %p164 = scmp.eq.s32.totalorder %s44, 3
      %p165 = por %p163, %p164
      %p167 = scmp.ne.s32.totalorder %s152, %s166
      %p168 = scmp.eq.s32.totalorder %s44, 0
      %p169 = por %p167, %p168
      %s170 = ssub.s32 %s46, %s53
      %p171 = scmp.eq.s32.totalorder %s170, 0
      %s173 = sadd.s32 %s172, 1
      %s174 = scalar_select %p171, %s172, %s173
      %p177 = pneg %p171
      %p178 = scmp.eq.s32.totalorder %s38, 3
      %p179 = por %p177, %p178
      %p180 = scmp.ne.s32.totalorder %s172, %s175
      %p181 = scmp.eq.s32.totalorder %s38, 0
      %p182 = por %p180, %p181
      %p183 = scmp.ne.s32.totalorder %s172, %s175
      %p184 = scmp.eq.s32.totalorder %s43, 3
      %p185 = por %p183, %p184
      %p186 = scmp.ne.s32.totalorder %s175, %s176
      %p187 = scmp.eq.s32.totalorder %s43, 0
      %p188 = por %p186, %p187
      %p189 = scmp.ne.s32.totalorder %s175, %s176
      %p190 = scmp.eq.s32.totalorder %s44, 3
      %p191 = por %p189, %p190
      %p193 = scmp.ne.s32.totalorder %s176, %s192
      %p194 = scmp.eq.s32.totalorder %s44, 0
      %p195 = por %p193, %p194
      %s196 = ssub.s32 %s46, %s53
      %p197 = scmp.eq.s32.totalorder %s196, 0
      %s199 = sadd.s32 %s198, 1
      %s200 = scalar_select %p197, %s198, %s199
      %p203 = pneg %p197
      %p204 = scmp.eq.s32.totalorder %s38, 3
      %p205 = por %p203, %p204
      %p206 = scmp.ne.s32.totalorder %s198, %s201
      %p207 = scmp.eq.s32.totalorder %s38, 0
      %p208 = por %p206, %p207
      %p209 = scmp.ne.s32.totalorder %s198, %s201
      %p210 = scmp.eq.s32.totalorder %s43, 3
      %p211 = por %p209, %p210
      %p212 = scmp.ne.s32.totalorder %s201, %s202
      %p213 = scmp.eq.s32.totalorder %s43, 0
      %p214 = por %p212, %p213
      %p215 = scmp.ne.s32.totalorder %s201, %s202
      %p216 = scmp.eq.s32.totalorder %s44, 3
      %p217 = por %p215, %p216
      %p219 = scmp.ne.s32.totalorder %s202, %s218
      %p220 = scmp.eq.s32.totalorder %s44, 0
      %p221 = por %p219, %p220
      %s222 = ssub.s32 %s46, %s53
      %p223 = scmp.eq.s32.totalorder %s222, 0
      %s225 = sadd.s32 %s224, 1
      %s226 = scalar_select %p223, %s224, %s225
      %p229 = pneg %p223
      %p230 = scmp.eq.s32.totalorder %s38, 3
      %p231 = por %p229, %p230
      %p232 = scmp.ne.s32.totalorder %s224, %s227
      %p233 = scmp.eq.s32.totalorder %s38, 0
      %p234 = por %p232, %p233
      %p235 = scmp.ne.s32.totalorder %s224, %s227
      %p236 = scmp.eq.s32.totalorder %s43, 3
      %p237 = por %p235, %p236
      %p238 = scmp.ne.s32.totalorder %s227, %s228
      %p239 = scmp.eq.s32.totalorder %s43, 0
      %p240 = por %p238, %p239
      %p241 = scmp.ne.s32.totalorder %s227, %s228
      %p242 = scmp.eq.s32.totalorder %s44, 3
      %p243 = por %p241, %p242
      %p245 = scmp.ne.s32.totalorder %s228, %s244
      %p246 = scmp.eq.s32.totalorder %s44, 0
      %p247 = por %p245, %p246
      %s248 = ssub.s32 %s45, %s57
      %s249 = ssub.s32 %s46, %s53
      %s250 = sor.u32 %s248, %s249
      %p251 = scmp.eq.s32.totalorder %s250, 0
      %s253 = sadd.s32 %s252, 1
      %s254 = scalar_select %p251, %s252, %s253
      %p257 = pneg %p251
      %p258 = scmp.eq.s32.totalorder %s38, 3
      %p259 = por %p257, %p258
      %p260 = scmp.ne.s32.totalorder %s252, %s255
      %p261 = scmp.eq.s32.totalorder %s38, 0
      %p262 = por %p260, %p261
      %p263 = scmp.ne.s32.totalorder %s252, %s255
      %p264 = scmp.eq.s32.totalorder %s43, 3
      %p265 = por %p263, %p264
      %p266 = scmp.ne.s32.totalorder %s255, %s256
      %p267 = scmp.eq.s32.totalorder %s43, 0
      %p268 = por %p266, %p267
      %p269 = scmp.ne.s32.totalorder %s255, %s256
      %p270 = scmp.eq.s32.totalorder %s44, 3
      %p271 = por %p269, %p270
      %p273 = scmp.ne.s32.totalorder %s256, %s272
      %p274 = scmp.eq.s32.totalorder %s44, 0
      %p275 = por %p273, %p274
      %s276 = ssub.s32 %s45, %s57
      %s277 = ssub.s32 %s46, %s53
      %s278 = sor.u32 %s276, %s277
      %p279 = scmp.eq.s32.totalorder %s278, 0
      %s281 = sadd.s32 %s280, 1
      %s282 = scalar_select %p279, %s280, %s281
      %p285 = pneg %p279
      %p286 = scmp.eq.s32.totalorder %s38, 3
      %p287 = por %p285, %p286
      %p288 = scmp.ne.s32.totalorder %s280, %s283
      %p289 = scmp.eq.s32.totalorder %s38, 0
      %p290 = por %p288, %p289
      %p291 = scmp.ne.s32.totalorder %s280, %s283
      %p292 = scmp.eq.s32.totalorder %s43, 3
      %p293 = por %p291, %p292
      %p294 = scmp.ne.s32.totalorder %s283, %s284
      %p295 = scmp.eq.s32.totalorder %s43, 0
      %p296 = por %p294, %p295
      %p297 = scmp.ne.s32.totalorder %s283, %s284
      %p298 = scmp.eq.s32.totalorder %s44, 3
      %p299 = por %p297, %p298
      %p301 = scmp.ne.s32.totalorder %s284, %s300
      %p302 = scmp.eq.s32.totalorder %s44, 0
      %p303 = por %p301, %p302
      %s304 = ssub.s32 %s45, %s57
      %s305 = ssub.s32 %s46, %s53
      %s306 = sor.u32 %s304, %s305
      %p307 = scmp.eq.s32.totalorder %s306, 0
      %s309 = sadd.s32 %s308, 1
      %s310 = scalar_select %p307, %s308, %s309
      %p313 = pneg %p307
      %p314 = scmp.eq.s32.totalorder %s38, 3
      %p315 = por %p313, %p314
      %p316 = scmp.ne.s32.totalorder %s308, %s311
      %p317 = scmp.eq.s32.totalorder %s38, 0
      %p318 = por %p316, %p317
      %p319 = scmp.ne.s32.totalorder %s308, %s311
      %p320 = scmp.eq.s32.totalorder %s43, 3
      %p321 = por %p319, %p320
      %p322 = scmp.ne.s32.totalorder %s311, %s312
      %p323 = scmp.eq.s32.totalorder %s43, 0
      %p324 = por %p322, %p323
      %p325 = scmp.ne.s32.totalorder %s311, %s312
      %p326 = scmp.eq.s32.totalorder %s44, 3
      %p327 = por %p325, %p326
      %p329 = scmp.ne.s32.totalorder %s312, %s328
      %p330 = scmp.eq.s32.totalorder %s44, 0
      %p331 = por %p329, %p330
      %s332 = ssub.s32 %s45, %s57
      %s333 = ssub.s32 %s46, %s53
      %s334 = sor.u32 %s332, %s333
      %p335 = scmp.eq.s32.totalorder %s334, 0
      %s337 = sadd.s32 %s336, 1
      %s338 = scalar_select %p335, %s336, %s337
      %p341 = pneg %p335
      %p342 = scmp.eq.s32.totalorder %s38, 3
      %p343 = por %p341, %p342
      %p344 = scmp.ne.s32.totalorder %s336, %s339
      %p345 = scmp.eq.s32.totalorder %s38, 0
      %p346 = por %p344, %p345
      %p347 = scmp.ne.s32.totalorder %s336, %s339
      %p348 = scmp.eq.s32.totalorder %s43, 3
      %p349 = por %p347, %p348
      %p350 = scmp.ne.s32.totalorder %s339, %s340
      %p351 = scmp.eq.s32.totalorder %s43, 0
      %p352 = por %p350, %p351
      %p353 = scmp.ne.s32.totalorder %s339, %s340
      %p354 = scmp.eq.s32.totalorder %s44, 3
      %p355 = por %p353, %p354
      %p357 = scmp.ne.s32.totalorder %s340, %s356
      %p358 = scmp.eq.s32.totalorder %s44, 0
      %p359 = por %p357, %p358
      %p360 = scmp.le.s32.totalorder 1, %s38
      %p361 = scmp.lt.s32.totalorder %s38, 5
      %p362 = pnand %p360, %p361
      %p363 = pneg %p362
      // Predicated region
      $region9: #{tpu_custom_call.1} parent=5 // pred_check
        _
      $region10: #{tpu_custom_call.1} parent=5 // pred_check_branch
        %365 = sbr.rel (%p362) target = $region12
      $region11: #{tpu_custom_call.1} parent=5 // pred_region
        %s366 = ssub.s32 %s38, 1
        // Predicated region
        $region13: #{tpu_custom_call.1} parent=11 // pred_check
          %p367 = pneg %p99
        $region14: #{tpu_custom_call.1} parent=11 // pred_check_branch
          %369 = sbr.rel (%p367) target = $region16
        $region15: #{tpu_custom_call.1} parent=11 // pred_region
          %s371 = ssub.s32 4096, 4096
          %372 = vsyncadd [#allocation6], %s371
          %s373 = sshll.u32 [#allocation5], 4
          %s374 = int_to_ptr.vmem [resolvable:$true] %s373
          %379 = dma.hbm_to_vmem [thread:$0]  %s1, 4096, %s374, [#allocation6], 128, 128, 8
        $region16: #{tpu_custom_call.1} parent=11 // pred_fallthru
          _
        // Predicated region
        $region17: #{tpu_custom_call.1} parent=11 // pred_check
          %p380 = pneg %p120
        $region18: #{tpu_custom_call.1} parent=11 // pred_check_branch
          %382 = sbr.rel (%p380) target = $region20
        $region19: #{tpu_custom_call.1} parent=11 // pred_region
          %s384 = ssub.s32 4096, 4096
          %385 = vsyncadd [#allocation6], %s384
          %s386 = sshll.u32 [#allocation7], 4
          %s387 = int_to_ptr.vmem [resolvable:$true] %s386
          %392 = dma.hbm_to_vmem [thread:$0]  %s2, 4096, %s387, [#allocation6], 128, 128, 8
        $region20: #{tpu_custom_call.1} parent=11 // pred_fallthru
          _
        // Predicated region
        $region21: #{tpu_custom_call.1} parent=11 // pred_check
          %p393 = pneg %p141
        $region22: #{tpu_custom_call.1} parent=11 // pred_check_branch
          %395 = sbr.rel (%p393) target = $region24
        $region23: #{tpu_custom_call.1} parent=11 // pred_region
          %s397 = ssub.s32 4096, 4096
          %398 = vsyncadd [#allocation9], %s397
          %s399 = sshll.u32 [#allocation8], 4
          %s400 = int_to_ptr.vmem [resolvable:$true] %s399
          %405 = dma.hbm_to_vmem [thread:$0]  %s3, 4096, %s400, [#allocation9], 128, 128, 8
        $region24: #{tpu_custom_call.1} parent=11 // pred_fallthru
          _
        // Predicated region
        $region25: #{tpu_custom_call.1} parent=11 // pred_check
          %p406 = pneg %p162
        $region26: #{tpu_custom_call.1} parent=11 // pred_check_branch
          %408 = sbr.rel (%p406) target = $region28
        $region27: #{tpu_custom_call.1} parent=11 // pred_region
          %s410 = ssub.s32 4096, 4096
          %411 = vsyncadd [#allocation9], %s410
          %s412 = sshll.u32 [#allocation10], 4
          %s413 = int_to_ptr.vmem [resolvable:$true] %s412
          %418 = dma.hbm_to_vmem [thread:$0]  %s4, 4096, %s413, [#allocation9], 128, 128, 8
        $region28: #{tpu_custom_call.1} parent=11 // pred_fallthru
          _
      $region12: #{tpu_custom_call.1} parent=5 // pred_fallthru
        _
      %p419 = scmp.lt.s32.totalorder %s38, 4
      // Predicated region
      $region29: #{tpu_custom_call.1} parent=5 // pred_check
        %p420 = pneg %p419
      $region30: #{tpu_custom_call.1} parent=5 // pred_check_branch
        %422 = sbr.rel (%p420) target = $region32
      $region31: #{tpu_custom_call.1} parent=5 // pred_region
        // Predicated region
        $region33: #{tpu_custom_call.1} parent=31 // pred_check
          %p423 = pneg %p72
        $region34: #{tpu_custom_call.1} parent=31 // pred_check_branch
          %425 = sbr.rel (%p423) target = $region36
        $region35: #{tpu_custom_call.1} parent=31 // pred_region
          %s426 = sand.u32 %s62, 1
          %s427 = scalar_lea.sflag [#allocation3], %s426
          %s428 = sand.u32 %s62, 1
          %s429 = smul.addr %s428, 256
          %s430 = scalar_lea.vmem [#allocation2], %s429
          %s431 = smul.u32 32, %s46
          %s433 = ssub.s32 4096, 4096
          %434 = vsyncadd %s427, %s433
          %s435 = smul.addr %s431, 2
          %s436 = smul.addr %s45, 128
          %s437 = sadd.s32 %s435, %s436
          %s438 = smul.addr %s437, 64
          %s439 = scalar_lea.hbm %s0, %s438
          %s440 = sshll.u32 %s430, 4
          %s441 = int_to_ptr.vmem [resolvable:$true] %s440
          %446 = dma.hbm_to_vmem [thread:$0]  %s439, 4096, %s441, %s427, 128, 128, 8
        $region36: #{tpu_custom_call.1} parent=31 // pred_fallthru
          _
        // Predicated region
        $region37: #{tpu_custom_call.1} parent=31 // pred_check
          %p447 = pneg %p182
        $region38: #{tpu_custom_call.1} parent=31 // pred_check_branch
          %449 = sbr.rel (%p447) target = $region40
        $region39: #{tpu_custom_call.1} parent=31 // pred_region
          %s450 = sand.u32 %s38, 1
          %s451 = scalar_lea.sflag [#allocation12], %s450
          %s452 = sand.u32 %s172, 1
          %s453 = smul.addr %s452, 512
          %s454 = scalar_lea.vmem [#allocation11], %s453
          %s455 = smul.u32 32, %s46
          %s457 = ssub.s32 8192, 8192
          %458 = vsyncadd %s451, %s457
          %s459 = smul.addr %s455, 2
          %s460 = smul.addr %s459, 128
          %s461 = scalar_lea.hbm %s5, %s460
          %s462 = sshll.u32 %s454, 4
          %s463 = int_to_ptr.vmem [resolvable:$true] %s462
          %468 = dma.hbm_to_vmem [thread:$0]  %s461, 8192, %s463, %s451, 256, 256, 16
        $region40: #{tpu_custom_call.1} parent=31 // pred_fallthru
          _
        // Predicated region
        $region41: #{tpu_custom_call.1} parent=31 // pred_check
          %p469 = pneg %p208
        $region42: #{tpu_custom_call.1} parent=31 // pred_check_branch
          %471 = sbr.rel (%p469) target = $region44
        $region43: #{tpu_custom_call.1} parent=31 // pred_region
          %s472 = sand.u32 %s38, 1
          %s473 = scalar_lea.sflag [#allocation12], %s472
          %s474 = sand.u32 %s198, 1
          %s475 = smul.addr %s474, 512
          %s476 = scalar_lea.vmem [#allocation13], %s475
          %s477 = smul.u32 32, %s46
          %s479 = ssub.s32 8192, 8192
          %480 = vsyncadd %s473, %s479
          %s481 = smul.addr %s477, 2
          %s482 = smul.addr %s481, 128
          %s483 = scalar_lea.hbm %s6, %s482
          %s484 = sshll.u32 %s476, 4
          %s485 = int_to_ptr.vmem [resolvable:$true] %s484
          %490 = dma.hbm_to_vmem [thread:$0]  %s483, 8192, %s485, %s473, 256, 256, 16
        $region44: #{tpu_custom_call.1} parent=31 // pred_fallthru
          _
        // Predicated region
        $region45: #{tpu_custom_call.1} parent=31 // pred_check
          %p491 = pneg %p234
        $region46: #{tpu_custom_call.1} parent=31 // pred_check_branch
          %493 = sbr.rel (%p491) target = $region48
        $region47: #{tpu_custom_call.1} parent=31 // pred_region
          %s494 = sand.u32 %s224, 1
          %s495 = scalar_lea.sflag [#allocation15], %s494
          %s496 = sand.u32 %s224, 1
          %s497 = smul.addr %s496, 512
          %s498 = scalar_lea.vmem [#allocation14], %s497
          %s499 = smul.u32 32, %s46
          %s501 = ssub.s32 8192, 8192
          %502 = vsyncadd %s495, %s501
          %s503 = smul.addr %s499, 2
          %s504 = smul.addr %s503, 128
          %s505 = scalar_lea.hbm %s7, %s504
          %s506 = sshll.u32 %s498, 4
          %s507 = int_to_ptr.vmem [resolvable:$true] %s506
          %512 = dma.hbm_to_vmem [thread:$0]  %s505, 8192, %s507, %s495, 256, 256, 16
        $region48: #{tpu_custom_call.1} parent=31 // pred_fallthru
          _
      $region32: #{tpu_custom_call.1} parent=5 // pred_fallthru
        _
      %p513 = scmp.le.s32.totalorder 1, %s38
      %p514 = scmp.lt.s32.totalorder %s38, 5
      %p515 = pnand %p513, %p514
      %p516 = pneg %p515
      // Predicated region
      $region49: #{tpu_custom_call.1} parent=5 // pred_check
        _
      $region50: #{tpu_custom_call.1} parent=5 // pred_check_branch
        %518 = sbr.rel (%p515) target = $region52
      $region51: #{tpu_custom_call.1} parent=5 // pred_region
        %s519 = ssub.s32 %s38, 1
        %s520 = sand.u32 %s65, 1
        %s521 = scalar_lea.sflag [#allocation3], %s520
        %s522 = sand.u32 %s65, 1
        %s523 = smul.addr %s522, 256
        %s524 = scalar_lea.vmem [#allocation2], %s523
        // Predicated region
        $region53: #{tpu_custom_call.1} parent=51 // pred_check
          %p525 = pneg %p78
        $region54: #{tpu_custom_call.1} parent=51 // pred_check_branch
          %527 = sbr.rel (%p525) target = $region56
        $region55: #{tpu_custom_call.1} parent=51 // pred_region
          %528 = dma.done %s521, 4096
        $region56: #{tpu_custom_call.1} parent=51 // pred_fallthru
          _
        // Predicated region
        $region57: #{tpu_custom_call.1} parent=51 // pred_check
          %p529 = pneg %p99
        $region58: #{tpu_custom_call.1} parent=51 // pred_check_branch
          %531 = sbr.rel (%p529) target = $region60
        $region59: #{tpu_custom_call.1} parent=51 // pred_region
          %532 = dma.done [#allocation6], 4096
        $region60: #{tpu_custom_call.1} parent=51 // pred_fallthru
          _
        // Predicated region
        $region61: #{tpu_custom_call.1} parent=51 // pred_check
          %p533 = pneg %p120
        $region62: #{tpu_custom_call.1} parent=51 // pred_check_branch
          %535 = sbr.rel (%p533) target = $region64
        $region63: #{tpu_custom_call.1} parent=51 // pred_region
          %536 = dma.done [#allocation6], 4096
        $region64: #{tpu_custom_call.1} parent=51 // pred_fallthru
          _
        // Predicated region
        $region65: #{tpu_custom_call.1} parent=51 // pred_check
          %p537 = pneg %p141
        $region66: #{tpu_custom_call.1} parent=51 // pred_check_branch
          %539 = sbr.rel (%p537) target = $region68
        $region67: #{tpu_custom_call.1} parent=51 // pred_region
          %540 = dma.done [#allocation9], 4096
        $region68: #{tpu_custom_call.1} parent=51 // pred_fallthru
          _
        // Predicated region
        $region69: #{tpu_custom_call.1} parent=51 // pred_check
          %p541 = pneg %p162
        $region70: #{tpu_custom_call.1} parent=51 // pred_check_branch
          %543 = sbr.rel (%p541) target = $region72
        $region71: #{tpu_custom_call.1} parent=51 // pred_region
          %544 = dma.done [#allocation9], 4096
        $region72: #{tpu_custom_call.1} parent=51 // pred_fallthru
          _
        %s545 = sand.u32 %s43, 1
        %s546 = scalar_lea.sflag [#allocation12], %s545
        %s547 = sand.u32 %s175, 1
        %s548 = smul.addr %s547, 512
        %s549 = scalar_lea.vmem [#allocation11], %s548
        // Predicated region
        $region73: #{tpu_custom_call.1} parent=51 // pred_check
          %p550 = pneg %p188
        $region74: #{tpu_custom_call.1} parent=51 // pred_check_branch
          %552 = sbr.rel (%p550) target = $region76
        $region75: #{tpu_custom_call.1} parent=51 // pred_region
          %553 = dma.done %s546, 8192
        $region76: #{tpu_custom_call.1} parent=51 // pred_fallthru
          _
        %s554 = sand.u32 %s43, 1
        %s555 = scalar_lea.sflag [#allocation12], %s554
        %s556 = sand.u32 %s201, 1
        %s557 = smul.addr %s556, 512
        %s558 = scalar_lea.vmem [#allocation13], %s557
        // Predicated region
        $region77: #{tpu_custom_call.1} parent=51 // pred_check
          %p559 = pneg %p214
        $region78: #{tpu_custom_call.1} parent=51 // pred_check_branch
          %561 = sbr.rel (%p559) target = $region80
        $region79: #{tpu_custom_call.1} parent=51 // pred_region
          %562 = dma.done %s555, 8192
        $region80: #{tpu_custom_call.1} parent=51 // pred_fallthru
          _
        %s563 = sand.u32 %s227, 1
        %s564 = scalar_lea.sflag [#allocation15], %s563
        %s565 = sand.u32 %s227, 1
        %s566 = smul.addr %s565, 512
        %s567 = scalar_lea.vmem [#allocation14], %s566
        // Predicated region
        $region81: #{tpu_custom_call.1} parent=51 // pred_check
          %p568 = pneg %p240
        $region82: #{tpu_custom_call.1} parent=51 // pred_check_branch
          %570 = sbr.rel (%p568) target = $region84
        $region83: #{tpu_custom_call.1} parent=51 // pred_region
          %571 = dma.done %s564, 8192
        $region84: #{tpu_custom_call.1} parent=51 // pred_fallthru
          _
        %s572 = sand.u32 %s65, 1
        %s573 = scalar_lea.sflag [#allocation3], %s572
        %s574 = sand.u32 %s65, 1
        %s575 = smul.addr %s574, 256
        %s576 = scalar_lea.vmem [#allocation2], %s575
        %p577 = pneg %p78
        %p578 = pneg %p75
        %p579 = pneg %p99
        %p580 = pneg %p96
        %p581 = pneg %p120
        %p582 = pneg %p117
        %p583 = pneg %p141
        %p584 = pneg %p138
        %p585 = pneg %p162
        %p586 = pneg %p159
        %s587 = sand.u32 %s43, 1
        %s588 = scalar_lea.sflag [#allocation12], %s587
        %s589 = sand.u32 %s175, 1
        %s590 = smul.addr %s589, 512
        %s591 = scalar_lea.vmem [#allocation11], %s590
        %p592 = pneg %p188
        %p593 = pneg %p185
        %s594 = sand.u32 %s43, 1
        %s595 = scalar_lea.sflag [#allocation12], %s594
        %s596 = sand.u32 %s201, 1
        %s597 = smul.addr %s596, 512
        %s598 = scalar_lea.vmem [#allocation13], %s597
        %p599 = pneg %p214
        %p600 = pneg %p211
        %s601 = sand.u32 %s227, 1
        %s602 = scalar_lea.sflag [#allocation15], %s601
        %s603 = sand.u32 %s227, 1
        %s604 = smul.addr %s603, 512
        %s605 = scalar_lea.vmem [#allocation14], %s604
        %p606 = pneg %p240
        %p607 = pneg %p237
        %p608 = pneg %p268
        %p609 = pneg %p265
        %s610 = sand.u32 %s255, 1
        %s611 = scalar_lea.sflag [#allocation4], %s610
        %s612 = sand.u32 %s255, 1
        %s613 = smul.addr %s612, 256
        %s614 = scalar_lea.vmem [#allocation16], %s613
        %p615 = pneg %p296
        %p616 = pneg %p293
        %s617 = sand.u32 %s43, 1
        %s618 = scalar_lea.sflag [#allocation18], %s617
        %s619 = sand.u32 %s283, 1
        %s620 = smul.addr %s619, 256
        %s621 = scalar_lea.vmem [#allocation17], %s620
        %p622 = pneg %p324
        %p623 = pneg %p321
        %s624 = sand.u32 %s43, 1
        %s625 = scalar_lea.sflag [#allocation18], %s624
        %s626 = sand.u32 %s311, 1
        %s627 = smul.addr %s626, 256
        %s628 = scalar_lea.vmem [#allocation19], %s627
        %p629 = pneg %p352
        %p630 = pneg %p349
        %s631 = sand.u32 %s339, 1
        %s632 = scalar_lea.sflag [#allocation21], %s631
        %s633 = sand.u32 %s339, 1
        %s634 = smul.addr %s633, 256
        %s635 = scalar_lea.vmem [#allocation20], %s634
        %s636 = smul.u32 32, %s48
        %s637 = smul.u32 32, %s48
        %s638 = smul.u32 32, %s48
        %s639 = smul.u32 32, %s48
        %s640 = smul.u32 32, %s48
        %s641 = smul.u32 32, %s48
        %s642 = smul.u32 32, %s48
        %s643 = smul.u32 32, %s48
        %v644 = vld [vmem:[%s524] sm:$0xff]
        %v645 = vld [vmem:[%s524 + $0x8] sm:$0xff]
        %v646 = vld [vmem:[%s524 + $0x10] sm:$0xff]
        %v647 = vld [vmem:[%s524 + $0x18] sm:$0xff]
        %v648 = vld [vmem:[%s524 + $0x20] sm:$0xff]
        %v649 = vld [vmem:[%s524 + $0x28] sm:$0xff]
        %v650 = vld [vmem:[%s524 + $0x30] sm:$0xff]
        %v651 = vld [vmem:[%s524 + $0x38] sm:$0xff]
        %v652 = vld [vmem:[%s524 + $0x40] sm:$0xff]
        %v653 = vld [vmem:[%s524 + $0x48] sm:$0xff]
        %v654 = vld [vmem:[%s524 + $0x50] sm:$0xff]
        %v655 = vld [vmem:[%s524 + $0x58] sm:$0xff]
        %v656 = vld [vmem:[%s524 + $0x60] sm:$0xff]
        %v657 = vld [vmem:[%s524 + $0x68] sm:$0xff]
        %v658 = vld [vmem:[%s524 + $0x70] sm:$0xff]
        %v659 = vld [vmem:[%s524 + $0x78] sm:$0xff]
        %v660 = vld [vmem:[%s524 + $0x80] sm:$0xff]
        %v661 = vld [vmem:[%s524 + $0x88] sm:$0xff]
        %v662 = vld [vmem:[%s524 + $0x90] sm:$0xff]
        %v663 = vld [vmem:[%s524 + $0x98] sm:$0xff]
        %v664 = vld [vmem:[%s524 + $0xa0] sm:$0xff]
        %v665 = vld [vmem:[%s524 + $0xa8] sm:$0xff]
        %v666 = vld [vmem:[%s524 + $0xb0] sm:$0xff]
        %v667 = vld [vmem:[%s524 + $0xb8] sm:$0xff]
        %v668 = vld [vmem:[%s524 + $0xc0] sm:$0xff]
        %v669 = vld [vmem:[%s524 + $0xc8] sm:$0xff]
        %v670 = vld [vmem:[%s524 + $0xd0] sm:$0xff]
        %v671 = vld [vmem:[%s524 + $0xd8] sm:$0xff]
        %v672 = vld [vmem:[%s524 + $0xe0] sm:$0xff]
        %v673 = vld [vmem:[%s524 + $0xe8] sm:$0xff]
        %v674 = vld [vmem:[%s524 + $0xf0] sm:$0xff]
        %v675 = vld [vmem:[%s524 + $0xf8] sm:$0xff]
        %v676 = vld [vmem:[#allocation5] sm:$0xff]
        %v677 = vld [vmem:[#allocation5 + $0x8] sm:$0xff]
        %v678 = vld [vmem:[#allocation5 + $0x10] sm:$0xff]
        %v679 = vld [vmem:[#allocation5 + $0x18] sm:$0xff]
        %v680 = vld [vmem:[#allocation5 + $0x20] sm:$0xff]
        %v681 = vld [vmem:[#allocation5 + $0x28] sm:$0xff]
        %v682 = vld [vmem:[#allocation5 + $0x30] sm:$0xff]
        %v683 = vld [vmem:[#allocation5 + $0x38] sm:$0xff]
        %v684 = vld [vmem:[#allocation5 + $0x40] sm:$0xff]
        %v685 = vld [vmem:[#allocation5 + $0x48] sm:$0xff]
        %v686 = vld [vmem:[#allocation5 + $0x50] sm:$0xff]
        %v687 = vld [vmem:[#allocation5 + $0x58] sm:$0xff]
        %v688 = vld [vmem:[#allocation5 + $0x60] sm:$0xff]
        %v689 = vld [vmem:[#allocation5 + $0x68] sm:$0xff]
        %v690 = vld [vmem:[#allocation5 + $0x70] sm:$0xff]
        %v691 = vld [vmem:[#allocation5 + $0x78] sm:$0xff]
        %v692 = vld [vmem:[#allocation5 + $0x80] sm:$0xff]
        %v693 = vld [vmem:[#allocation5 + $0x88] sm:$0xff]
        %v694 = vld [vmem:[#allocation5 + $0x90] sm:$0xff]
        %v695 = vld [vmem:[#allocation5 + $0x98] sm:$0xff]
        %v696 = vld [vmem:[#allocation5 + $0xa0] sm:$0xff]
        %v697 = vld [vmem:[#allocation5 + $0xa8] sm:$0xff]
        %v698 = vld [vmem:[#allocation5 + $0xb0] sm:$0xff]
        %v699 = vld [vmem:[#allocation5 + $0xb8] sm:$0xff]
        %v700 = vld [vmem:[#allocation5 + $0xc0] sm:$0xff]
        %v701 = vld [vmem:[#allocation5 + $0xc8] sm:$0xff]
        %v702 = vld [vmem:[#allocation5 + $0xd0] sm:$0xff]
        %v703 = vld [vmem:[#allocation5 + $0xd8] sm:$0xff]
        %v704 = vld [vmem:[#allocation5 + $0xe0] sm:$0xff]
        %v705 = vld [vmem:[#allocation5 + $0xe8] sm:$0xff]
        %v706 = vld [vmem:[#allocation5 + $0xf0] sm:$0xff]
        %v707 = vld [vmem:[#allocation5 + $0xf8] sm:$0xff]
        %v740 = vunpack.c.l.b16 %v644
        %v741 = vunpack.c.h.b16 %v644
        %v742 = vunpack.c.l.b16 %v645
        %v743 = vunpack.c.h.b16 %v645
        %v744 = vunpack.c.l.b16 %v646
        %v745 = vunpack.c.h.b16 %v646
        %v746 = vunpack.c.l.b16 %v647
        %v747 = vunpack.c.h.b16 %v647
        %v748 = vunpack.c.l.b16 %v648
        %v749 = vunpack.c.h.b16 %v648
        %v750 = vunpack.c.l.b16 %v649
        %v751 = vunpack.c.h.b16 %v649
        %v752 = vunpack.c.l.b16 %v650
        %v753 = vunpack.c.h.b16 %v650
        %v754 = vunpack.c.l.b16 %v651
        %v755 = vunpack.c.h.b16 %v651
        %v756 = vunpack.c.l.b16 %v652
        %v757 = vunpack.c.h.b16 %v652
        %v758 = vunpack.c.l.b16 %v653
        %v759 = vunpack.c.h.b16 %v653
        %v760 = vunpack.c.l.b16 %v654
        %v761 = vunpack.c.h.b16 %v654
        %v762 = vunpack.c.l.b16 %v655
        %v763 = vunpack.c.h.b16 %v655
        %v764 = vunpack.c.l.b16 %v656
        %v765 = vunpack.c.h.b16 %v656
        %v766 = vunpack.c.l.b16 %v657
        %v767 = vunpack.c.h.b16 %v657
        %v768 = vunpack.c.l.b16 %v658
        %v769 = vunpack.c.h.b16 %v658
        %v770 = vunpack.c.l.b16 %v659
        %v771 = vunpack.c.h.b16 %v659
        %v772 = vunpack.c.l.b16 %v660
        %v773 = vunpack.c.h.b16 %v660
        %v774 = vunpack.c.l.b16 %v661
        %v775 = vunpack.c.h.b16 %v661
        %v776 = vunpack.c.l.b16 %v662
        %v777 = vunpack.c.h.b16 %v662
        %v778 = vunpack.c.l.b16 %v663
        %v779 = vunpack.c.h.b16 %v663
        %v780 = vunpack.c.l.b16 %v664
        %v781 = vunpack.c.h.b16 %v664
        %v782 = vunpack.c.l.b16 %v665
        %v783 = vunpack.c.h.b16 %v665
        %v784 = vunpack.c.l.b16 %v666
        %v785 = vunpack.c.h.b16 %v666
        %v786 = vunpack.c.l.b16 %v667
        %v787 = vunpack.c.h.b16 %v667
        %v788 = vunpack.c.l.b16 %v668
        %v789 = vunpack.c.h.b16 %v668
        %v790 = vunpack.c.l.b16 %v669
        %v791 = vunpack.c.h.b16 %v669
        %v792 = vunpack.c.l.b16 %v670
        %v793 = vunpack.c.h.b16 %v670
        %v794 = vunpack.c.l.b16 %v671
        %v795 = vunpack.c.h.b16 %v671
        %v796 = vunpack.c.l.b16 %v672
        %v797 = vunpack.c.h.b16 %v672
        %v798 = vunpack.c.l.b16 %v673
        %v799 = vunpack.c.h.b16 %v673
        %v800 = vunpack.c.l.b16 %v674
        %v801 = vunpack.c.h.b16 %v674
        %v802 = vunpack.c.l.b16 %v675
        %v803 = vunpack.c.h.b16 %v675
        %v804 = vpack.c.b16 %v742, %v740
        %v805 = vpack.c.b16 %v743, %v741
        %v806 = vpack.c.b16 %v746, %v744
        %v807 = vpack.c.b16 %v747, %v745
        %v808 = vpack.c.b16 %v750, %v748
        %v809 = vpack.c.b16 %v751, %v749
        %v810 = vpack.c.b16 %v754, %v752
        %v811 = vpack.c.b16 %v755, %v753
        %v812 = vpack.c.b16 %v758, %v756
        %v813 = vpack.c.b16 %v759, %v757
        %v814 = vpack.c.b16 %v762, %v760
        %v815 = vpack.c.b16 %v763, %v761
        %v816 = vpack.c.b16 %v766, %v764
        %v817 = vpack.c.b16 %v767, %v765
        %v818 = vpack.c.b16 %v770, %v768
        %v819 = vpack.c.b16 %v771, %v769
        %v820 = vpack.c.b16 %v774, %v772
        %v821 = vpack.c.b16 %v775, %v773
        %v822 = vpack.c.b16 %v778, %v776
        %v823 = vpack.c.b16 %v779, %v777
        %v824 = vpack.c.b16 %v782, %v780
        %v825 = vpack.c.b16 %v783, %v781
        %v826 = vpack.c.b16 %v786, %v784
        %v827 = vpack.c.b16 %v787, %v785
        %v828 = vpack.c.b16 %v790, %v788
        %v829 = vpack.c.b16 %v791, %v789
        %v830 = vpack.c.b16 %v794, %v792
        %v831 = vpack.c.b16 %v795, %v793
        %v832 = vpack.c.b16 %v798, %v796
        %v833 = vpack.c.b16 %v799, %v797
        %v834 = vpack.c.b16 %v802, %v800
        %v835 = vpack.c.b16 %v803, %v801
        %v900 = vunpack.c.l.b16 %v676
        %v901 = vunpack.c.h.b16 %v676
        %v902 = vunpack.c.l.b16 %v677
        %v903 = vunpack.c.h.b16 %v677
        %v904 = vunpack.c.l.b16 %v678
        %v905 = vunpack.c.h.b16 %v678
        %v906 = vunpack.c.l.b16 %v679
        %v907 = vunpack.c.h.b16 %v679
        %v908 = vunpack.c.l.b16 %v680
        %v909 = vunpack.c.h.b16 %v680
        %v910 = vunpack.c.l.b16 %v681
        %v911 = vunpack.c.h.b16 %v681
        %v912 = vunpack.c.l.b16 %v682
        %v913 = vunpack.c.h.b16 %v682
        %v914 = vunpack.c.l.b16 %v683
        %v915 = vunpack.c.h.b16 %v683
        %v916 = vunpack.c.l.b16 %v684
        %v917 = vunpack.c.h.b16 %v684
        %v918 = vunpack.c.l.b16 %v685
        %v919 = vunpack.c.h.b16 %v685
        %v920 = vunpack.c.l.b16 %v686
        %v921 = vunpack.c.h.b16 %v686
        %v922 = vunpack.c.l.b16 %v687
        %v923 = vunpack.c.h.b16 %v687
        %v924 = vunpack.c.l.b16 %v688
        %v925 = vunpack.c.h.b16 %v688
        %v926 = vunpack.c.l.b16 %v689
        %v927 = vunpack.c.h.b16 %v689
        %v928 = vunpack.c.l.b16 %v690
        %v929 = vunpack.c.h.b16 %v690
        %v930 = vunpack.c.l.b16 %v691
        %v931 = vunpack.c.h.b16 %v691
        %v932 = vunpack.c.l.b16 %v692
        %v933 = vunpack.c.h.b16 %v692
        %v934 = vunpack.c.l.b16 %v693
        %v935 = vunpack.c.h.b16 %v693
        %v936 = vunpack.c.l.b16 %v694
        %v937 = vunpack.c.h.b16 %v694
        %v938 = vunpack.c.l.b16 %v695
        %v939 = vunpack.c.h.b16 %v695
        %v940 = vunpack.c.l.b16 %v696
        %v941 = vunpack.c.h.b16 %v696
        %v942 = vunpack.c.l.b16 %v697
        %v943 = vunpack.c.h.b16 %v697
        %v944 = vunpack.c.l.b16 %v698
        %v945 = vunpack.c.h.b16 %v698
        %v946 = vunpack.c.l.b16 %v699
        %v947 = vunpack.c.h.b16 %v699
        %v948 = vunpack.c.l.b16 %v700
        %v949 = vunpack.c.h.b16 %v700
        %v950 = vunpack.c.l.b16 %v701
        %v951 = vunpack.c.h.b16 %v701
        %v952 = vunpack.c.l.b16 %v702
        %v953 = vunpack.c.h.b16 %v702
        %v954 = vunpack.c.l.b16 %v703
        %v955 = vunpack.c.h.b16 %v703
        %v956 = vunpack.c.l.b16 %v704
        %v957 = vunpack.c.h.b16 %v704
        %v958 = vunpack.c.l.b16 %v705
        %v959 = vunpack.c.h.b16 %v705
        %v960 = vunpack.c.l.b16 %v706
        %v961 = vunpack.c.h.b16 %v706
        %v962 = vunpack.c.l.b16 %v707
        %v963 = vunpack.c.h.b16 %v707
        %v964 = vpack.c.b16 %v902, %v900
        %v965 = vpack.c.b16 %v903, %v901
        %v966 = vpack.c.b16 %v906, %v904
        %v967 = vpack.c.b16 %v907, %v905
        %v968 = vpack.c.b16 %v910, %v908
        %v969 = vpack.c.b16 %v911, %v909
        %v970 = vpack.c.b16 %v914, %v912
        %v971 = vpack.c.b16 %v915, %v913
        %v972 = vpack.c.b16 %v918, %v916
        %v973 = vpack.c.b16 %v919, %v917
        %v974 = vpack.c.b16 %v922, %v920
        %v975 = vpack.c.b16 %v923, %v921
        %v976 = vpack.c.b16 %v926, %v924
        %v977 = vpack.c.b16 %v927, %v925
        %v978 = vpack.c.b16 %v930, %v928
        %v979 = vpack.c.b16 %v931, %v929
        %v980 = vpack.c.b16 %v934, %v932
        %v981 = vpack.c.b16 %v935, %v933
        %v982 = vpack.c.b16 %v938, %v936
        %v983 = vpack.c.b16 %v939, %v937
        %v984 = vpack.c.b16 %v942, %v940
        %v985 = vpack.c.b16 %v943, %v941
        %v986 = vpack.c.b16 %v946, %v944
        %v987 = vpack.c.b16 %v947, %v945
        %v988 = vpack.c.b16 %v950, %v948
        %v989 = vpack.c.b16 %v951, %v949
        %v990 = vpack.c.b16 %v954, %v952
        %v991 = vpack.c.b16 %v955, %v953
        %v992 = vpack.c.b16 %v958, %v956
        %v993 = vpack.c.b16 %v959, %v957
        %v994 = vpack.c.b16 %v962, %v960
        %v995 = vpack.c.b16 %v963, %v961
        %1028 = vmatprep.subr.bf16.mxu0 %v979
        %1029 = vmatpush1.bf16.msra.mxu0 %v978
        %1030 = vmatprep.subr.bf16.mxu0 %v977
        %1031 = vmatpush1.bf16.msra.mxu0 %v976
        %1032 = vmatprep.subr.bf16.mxu0 %v975
        %1033 = vmatpush1.bf16.msra.mxu0 %v974
        %1034 = vmatprep.subr.bf16.mxu0 %v973
        %1035 = vmatpush1.bf16.msra.mxu0 %v972
        %1036 = vmatprep.subr.bf16.mxu0 %v971
        %1037 = vmatpush1.bf16.msra.mxu0 %v970
        %1038 = vmatprep.subr.bf16.mxu0 %v969
        %1039 = vmatpush1.bf16.msra.mxu0 %v968
        %1040 = vmatprep.subr.bf16.mxu0 %v967
        %1041 = vmatpush1.bf16.msra.mxu0 %v966
        %1042 = vmatprep.subr.bf16.mxu0 %v965
        %1043 = vmatpush1.bf16.msra.mxu0 %v964
        %1044 = vmatprep.subr.bf16.mxu0 %v995
        %1045 = vmatpush2.bf16.msra.mxu0 %v994
        %1046 = vmatprep.subr.bf16.mxu0 %v993
        %1047 = vmatpush2.bf16.msra.mxu0 %v992
        %1048 = vmatprep.subr.bf16.mxu0 %v991
        %1049 = vmatpush2.bf16.msra.mxu0 %v990
        %1050 = vmatprep.subr.bf16.mxu0 %v989
        %1051 = vmatpush2.bf16.msra.mxu0 %v988
        %1052 = vmatprep.subr.bf16.mxu0 %v987
        %1053 = vmatpush2.bf16.msra.mxu0 %v986
        %1054 = vmatprep.subr.bf16.mxu0 %v985
        %1055 = vmatpush2.bf16.msra.mxu0 %v984
        %1056 = vmatprep.subr.bf16.mxu0 %v983
        %1057 = vmatpush2.bf16.msra.mxu0 %v982
        %1058 = vmatprep.subr.bf16.mxu0 %v981
        %1059 = vmatpush2.bf16.msra.mxu0 %v980
        %1060 = vmatprep.mubr.bf16.mxu0 %v805
        %1061 = vmatmul.mubr.bf16.gmra.mxu0 %v804
        %v1062 = vpop.f32.mrf.mxu0
        %v1063 = vadd.f32 0.0, %v1062
        %v1064 = vpop.f32.mrf.mxu0
        %v1065 = vadd.f32 0.0, %v1064
        %v1066 = vpop.f32.mrf.mxu0
        %v1067 = vadd.f32 0.0, %v1066
        %v1068 = vpop.f32.mrf.mxu0
        %v1069 = vadd.f32 0.0, %v1068
        %1070 = vmatprep.mubr.bf16.mxu0 %v807
        %1071 = vmatmul.mubr.bf16.gmra.mxu0 %v806
        %v1072 = vpop.f32.mrf.mxu0
        %v1073 = vadd.f32 0.0, %v1072
        %v1074 = vpop.f32.mrf.mxu0
        %v1075 = vadd.f32 0.0, %v1074
        %v1076 = vpop.f32.mrf.mxu0
        %v1077 = vadd.f32 0.0, %v1076
        %v1078 = vpop.f32.mrf.mxu0
        %v1079 = vadd.f32 0.0, %v1078
        %1080 = vmatprep.mubr.bf16.mxu0 %v809
        %1081 = vmatmul.mubr.bf16.gmra.mxu0 %v808
        %v1082 = vpop.f32.mrf.mxu0
        %v1083 = vadd.f32 0.0, %v1082
        %v1084 = vpop.f32.mrf.mxu0
        %v1085 = vadd.f32 0.0, %v1084
        %v1086 = vpop.f32.mrf.mxu0
        %v1087 = vadd.f32 0.0, %v1086
        %v1088 = vpop.f32.mrf.mxu0
        %v1089 = vadd.f32 0.0, %v1088
        %1090 = vmatprep.mubr.bf16.mxu0 %v811
        %1091 = vmatmul.mubr.bf16.gmra.mxu0 %v810
        %v1092 = vpop.f32.mrf.mxu0
        %v1093 = vadd.f32 0.0, %v1092
        %v1094 = vpop.f32.mrf.mxu0
        %v1095 = vadd.f32 0.0, %v1094
        %v1096 = vpop.f32.mrf.mxu0
        %v1097 = vadd.f32 0.0, %v1096
        %v1098 = vpop.f32.mrf.mxu0
        %v1099 = vadd.f32 0.0, %v1098
        %1100 = vmatprep.mubr.bf16.mxu0 %v813
        %1101 = vmatmul.mubr.bf16.gmra.mxu0 %v812
        %v1102 = vpop.f32.mrf.mxu0
        %v1103 = vadd.f32 0.0, %v1102
        %v1104 = vpop.f32.mrf.mxu0
        %v1105 = vadd.f32 0.0, %v1104
        %v1106 = vpop.f32.mrf.mxu0
        %v1107 = vadd.f32 0.0, %v1106
        %v1108 = vpop.f32.mrf.mxu0
        %v1109 = vadd.f32 0.0, %v1108
        %1110 = vmatprep.mubr.bf16.mxu0 %v815
        %1111 = vmatmul.mubr.bf16.gmra.mxu0 %v814
        %v1112 = vpop.f32.mrf.mxu0
        %v1113 = vadd.f32 0.0, %v1112
        %v1114 = vpop.f32.mrf.mxu0
        %v1115 = vadd.f32 0.0, %v1114
        %v1116 = vpop.f32.mrf.mxu0
        %v1117 = vadd.f32 0.0, %v1116
        %v1118 = vpop.f32.mrf.mxu0
        %v1119 = vadd.f32 0.0, %v1118
        %1120 = vmatprep.mubr.bf16.mxu0 %v817
        %1121 = vmatmul.mubr.bf16.gmra.mxu0 %v816
        %v1122 = vpop.f32.mrf.mxu0
        %v1123 = vadd.f32 0.0, %v1122
        %v1124 = vpop.f32.mrf.mxu0
        %v1125 = vadd.f32 0.0, %v1124
        %v1126 = vpop.f32.mrf.mxu0
        %v1127 = vadd.f32 0.0, %v1126
        %v1128 = vpop.f32.mrf.mxu0
        %v1129 = vadd.f32 0.0, %v1128
        %1130 = vmatprep.mubr.bf16.mxu0 %v819
        %1131 = vmatmul.mubr.bf16.gmra.mxu0 %v818
        %v1132 = vpop.f32.mrf.mxu0
        %v1133 = vadd.f32 0.0, %v1132
        %v1134 = vpop.f32.mrf.mxu0
        %v1135 = vadd.f32 0.0, %v1134
        %v1136 = vpop.f32.mrf.mxu0
        %v1137 = vadd.f32 0.0, %v1136
        %v1138 = vpop.f32.mrf.mxu0
        %v1139 = vadd.f32 0.0, %v1138
        %1140 = vmatprep.mubr.bf16.mxu0 %v821
        %1141 = vmatmul.mubr.bf16.gmra.mxu0 %v820
        %v1142 = vpop.f32.mrf.mxu0
        %v1143 = vadd.f32 0.0, %v1142
        %v1144 = vpop.f32.mrf.mxu0
        %v1145 = vadd.f32 0.0, %v1144
        %v1146 = vpop.f32.mrf.mxu0
        %v1147 = vadd.f32 0.0, %v1146
        %v1148 = vpop.f32.mrf.mxu0
        %v1149 = vadd.f32 0.0, %v1148
        %1150 = vmatprep.mubr.bf16.mxu0 %v823
        %1151 = vmatmul.mubr.bf16.gmra.mxu0 %v822
        %v1152 = vpop.f32.mrf.mxu0
        %v1153 = vadd.f32 0.0, %v1152
        %v1154 = vpop.f32.mrf.mxu0
        %v1155 = vadd.f32 0.0, %v1154
        %v1156 = vpop.f32.mrf.mxu0
        %v1157 = vadd.f32 0.0, %v1156
        %v1158 = vpop.f32.mrf.mxu0
        %v1159 = vadd.f32 0.0, %v1158
        %1160 = vmatprep.mubr.bf16.mxu0 %v825
        %1161 = vmatmul.mubr.bf16.gmra.mxu0 %v824
        %v1162 = vpop.f32.mrf.mxu0
        %v1163 = vadd.f32 0.0, %v1162
        %v1164 = vpop.f32.mrf.mxu0
        %v1165 = vadd.f32 0.0, %v1164
        %v1166 = vpop.f32.mrf.mxu0
        %v1167 = vadd.f32 0.0, %v1166
        %v1168 = vpop.f32.mrf.mxu0
        %v1169 = vadd.f32 0.0, %v1168
        %1170 = vmatprep.mubr.bf16.mxu0 %v827
        %1171 = vmatmul.mubr.bf16.gmra.mxu0 %v826
        %v1172 = vpop.f32.mrf.mxu0
        %v1173 = vadd.f32 0.0, %v1172
        %v1174 = vpop.f32.mrf.mxu0
        %v1175 = vadd.f32 0.0, %v1174
        %v1176 = vpop.f32.mrf.mxu0
        %v1177 = vadd.f32 0.0, %v1176
        %v1178 = vpop.f32.mrf.mxu0
        %v1179 = vadd.f32 0.0, %v1178
        %1180 = vmatprep.mubr.bf16.mxu0 %v829
        %1181 = vmatmul.mubr.bf16.gmra.mxu0 %v828
        %v1182 = vpop.f32.mrf.mxu0
        %v1183 = vadd.f32 0.0, %v1182
        %v1184 = vpop.f32.mrf.mxu0
        %v1185 = vadd.f32 0.0, %v1184
        %v1186 = vpop.f32.mrf.mxu0
        %v1187 = vadd.f32 0.0, %v1186
        %v1188 = vpop.f32.mrf.mxu0
        %v1189 = vadd.f32 0.0, %v1188
        %1190 = vmatprep.mubr.bf16.mxu0 %v831
        %1191 = vmatmul.mubr.bf16.gmra.mxu0 %v830
        %v1192 = vpop.f32.mrf.mxu0
        %v1193 = vadd.f32 0.0, %v1192
        %v1194 = vpop.f32.mrf.mxu0
        %v1195 = vadd.f32 0.0, %v1194
        %v1196 = vpop.f32.mrf.mxu0
        %v1197 = vadd.f32 0.0, %v1196
        %v1198 = vpop.f32.mrf.mxu0
        %v1199 = vadd.f32 0.0, %v1198
        %1200 = vmatprep.mubr.bf16.mxu0 %v833
        %1201 = vmatmul.mubr.bf16.gmra.mxu0 %v832
        %v1202 = vpop.f32.mrf.mxu0
        %v1203 = vadd.f32 0.0, %v1202
        %v1204 = vpop.f32.mrf.mxu0
        %v1205 = vadd.f32 0.0, %v1204
        %v1206 = vpop.f32.mrf.mxu0
        %v1207 = vadd.f32 0.0, %v1206
        %v1208 = vpop.f32.mrf.mxu0
        %v1209 = vadd.f32 0.0, %v1208
        %1210 = vmatprep.mubr.bf16.mxu0 %v835
        %1211 = vmatmul.mubr.bf16.gmra.mxu0 %v834
        %v1212 = vpop.f32.mrf.mxu0
        %v1213 = vadd.f32 0.0, %v1212
        %v1214 = vpop.f32.mrf.mxu0
        %v1215 = vadd.f32 0.0, %v1214
        %v1216 = vpop.f32.mrf.mxu0
        %v1217 = vadd.f32 0.0, %v1216
        %v1218 = vpop.f32.mrf.mxu0
        %v1219 = vadd.f32 0.0, %v1218
        %1220 = vdwg.mxu0
        %v1221 = vld [vmem:[#allocation7] sm:$0xff]
        %v1222 = vld [vmem:[#allocation7 + $0x8] sm:$0xff]
        %v1223 = vld [vmem:[#allocation7 + $0x10] sm:$0xff]
        %v1224 = vld [vmem:[#allocation7 + $0x18] sm:$0xff]
        %v1225 = vld [vmem:[#allocation7 + $0x20] sm:$0xff]
        %v1226 = vld [vmem:[#allocation7 + $0x28] sm:$0xff]
        %v1227 = vld [vmem:[#allocation7 + $0x30] sm:$0xff]
        %v1228 = vld [vmem:[#allocation7 + $0x38] sm:$0xff]
        %v1229 = vld [vmem:[#allocation7 + $0x40] sm:$0xff]
        %v1230 = vld [vmem:[#allocation7 + $0x48] sm:$0xff]
        %v1231 = vld [vmem:[#allocation7 + $0x50] sm:$0xff]
        %v1232 = vld [vmem:[#allocation7 + $0x58] sm:$0xff]
        %v1233 = vld [vmem:[#allocation7 + $0x60] sm:$0xff]
        %v1234 = vld [vmem:[#allocation7 + $0x68] sm:$0xff]
        %v1235 = vld [vmem:[#allocation7 + $0x70] sm:$0xff]
        %v1236 = vld [vmem:[#allocation7 + $0x78] sm:$0xff]
        %v1237 = vld [vmem:[#allocation7 + $0x80] sm:$0xff]
        %v1238 = vld [vmem:[#allocation7 + $0x88] sm:$0xff]
        %v1239 = vld [vmem:[#allocation7 + $0x90] sm:$0xff]
        %v1240 = vld [vmem:[#allocation7 + $0x98] sm:$0xff]
        %v1241 = vld [vmem:[#allocation7 + $0xa0] sm:$0xff]
        %v1242 = vld [vmem:[#allocation7 + $0xa8] sm:$0xff]
        %v1243 = vld [vmem:[#allocation7 + $0xb0] sm:$0xff]
        %v1244 = vld [vmem:[#allocation7 + $0xb8] sm:$0xff]
        %v1245 = vld [vmem:[#allocation7 + $0xc0] sm:$0xff]
        %v1246 = vld [vmem:[#allocation7 + $0xc8] sm:$0xff]
        %v1247 = vld [vmem:[#allocation7 + $0xd0] sm:$0xff]
        %v1248 = vld [vmem:[#allocation7 + $0xd8] sm:$0xff]
        %v1249 = vld [vmem:[#allocation7 + $0xe0] sm:$0xff]
        %v1250 = vld [vmem:[#allocation7 + $0xe8] sm:$0xff]
        %v1251 = vld [vmem:[#allocation7 + $0xf0] sm:$0xff]
        %v1252 = vld [vmem:[#allocation7 + $0xf8] sm:$0xff]
        %v1285 = vunpack.c.l.b16 %v1221
        %v1286 = vunpack.c.h.b16 %v1221
        %v1287 = vunpack.c.l.b16 %v1222
        %v1288 = vunpack.c.h.b16 %v1222
        %v1289 = vunpack.c.l.b16 %v1223
        %v1290 = vunpack.c.h.b16 %v1223
        %v1291 = vunpack.c.l.b16 %v1224
        %v1292 = vunpack.c.h.b16 %v1224
        %v1293 = vunpack.c.l.b16 %v1225
        %v1294 = vunpack.c.h.b16 %v1225
        %v1295 = vunpack.c.l.b16 %v1226
        %v1296 = vunpack.c.h.b16 %v1226
        %v1297 = vunpack.c.l.b16 %v1227
        %v1298 = vunpack.c.h.b16 %v1227
        %v1299 = vunpack.c.l.b16 %v1228
        %v1300 = vunpack.c.h.b16 %v1228
        %v1301 = vunpack.c.l.b16 %v1229
        %v1302 = vunpack.c.h.b16 %v1229
        %v1303 = vunpack.c.l.b16 %v1230
        %v1304 = vunpack.c.h.b16 %v1230
        %v1305 = vunpack.c.l.b16 %v1231
        %v1306 = vunpack.c.h.b16 %v1231
        %v1307 = vunpack.c.l.b16 %v1232
        %v1308 = vunpack.c.h.b16 %v1232
        %v1309 = vunpack.c.l.b16 %v1233
        %v1310 = vunpack.c.h.b16 %v1233
        %v1311 = vunpack.c.l.b16 %v1234
        %v1312 = vunpack.c.h.b16 %v1234
        %v1313 = vunpack.c.l.b16 %v1235
        %v1314 = vunpack.c.h.b16 %v1235
        %v1315 = vunpack.c.l.b16 %v1236
        %v1316 = vunpack.c.h.b16 %v1236
        %v1317 = vunpack.c.l.b16 %v1237
        %v1318 = vunpack.c.h.b16 %v1237
        %v1319 = vunpack.c.l.b16 %v1238
        %v1320 = vunpack.c.h.b16 %v1238
        %v1321 = vunpack.c.l.b16 %v1239
        %v1322 = vunpack.c.h.b16 %v1239
        %v1323 = vunpack.c.l.b16 %v1240
        %v1324 = vunpack.c.h.b16 %v1240
        %v1325 = vunpack.c.l.b16 %v1241
        %v1326 = vunpack.c.h.b16 %v1241
        %v1327 = vunpack.c.l.b16 %v1242
        %v1328 = vunpack.c.h.b16 %v1242
        %v1329 = vunpack.c.l.b16 %v1243
        %v1330 = vunpack.c.h.b16 %v1243
        %v1331 = vunpack.c.l.b16 %v1244
        %v1332 = vunpack.c.h.b16 %v1244
        %v1333 = vunpack.c.l.b16 %v1245
        %v1334 = vunpack.c.h.b16 %v1245
        %v1335 = vunpack.c.l.b16 %v1246
        %v1336 = vunpack.c.h.b16 %v1246
        %v1337 = vunpack.c.l.b16 %v1247
        %v1338 = vunpack.c.h.b16 %v1247
        %v1339 = vunpack.c.l.b16 %v1248
        %v1340 = vunpack.c.h.b16 %v1248
        %v1341 = vunpack.c.l.b16 %v1249
        %v1342 = vunpack.c.h.b16 %v1249
        %v1343 = vunpack.c.l.b16 %v1250
        %v1344 = vunpack.c.h.b16 %v1250
        %v1345 = vunpack.c.l.b16 %v1251
        %v1346 = vunpack.c.h.b16 %v1251
        %v1347 = vunpack.c.l.b16 %v1252
        %v1348 = vunpack.c.h.b16 %v1252
        %v1349 = vpack.c.b16 %v1287, %v1285
        %v1350 = vpack.c.b16 %v1288, %v1286
        %v1351 = vpack.c.b16 %v1291, %v1289
        %v1352 = vpack.c.b16 %v1292, %v1290
        %v1353 = vpack.c.b16 %v1295, %v1293
        %v1354 = vpack.c.b16 %v1296, %v1294
        %v1355 = vpack.c.b16 %v1299, %v1297
        %v1356 = vpack.c.b16 %v1300, %v1298
        %v1357 = vpack.c.b16 %v1303, %v1301
        %v1358 = vpack.c.b16 %v1304, %v1302
        %v1359 = vpack.c.b16 %v1307, %v1305
        %v1360 = vpack.c.b16 %v1308, %v1306
        %v1361 = vpack.c.b16 %v1311, %v1309
        %v1362 = vpack.c.b16 %v1312, %v1310
        %v1363 = vpack.c.b16 %v1315, %v1313
        %v1364 = vpack.c.b16 %v1316, %v1314
        %v1365 = vpack.c.b16 %v1319, %v1317
        %v1366 = vpack.c.b16 %v1320, %v1318
        %v1367 = vpack.c.b16 %v1323, %v1321
        %v1368 = vpack.c.b16 %v1324, %v1322
        %v1369 = vpack.c.b16 %v1327, %v1325
        %v1370 = vpack.c.b16 %v1328, %v1326
        %v1371 = vpack.c.b16 %v1331, %v1329
        %v1372 = vpack.c.b16 %v1332, %v1330
        %v1373 = vpack.c.b16 %v1335, %v1333
        %v1374 = vpack.c.b16 %v1336, %v1334
        %v1375 = vpack.c.b16 %v1339, %v1337
        %v1376 = vpack.c.b16 %v1340, %v1338
        %v1377 = vpack.c.b16 %v1343, %v1341
        %v1378 = vpack.c.b16 %v1344, %v1342
        %v1379 = vpack.c.b16 %v1347, %v1345
        %v1380 = vpack.c.b16 %v1348, %v1346
        %1413 = vmatprep.subr.bf16.mxu0 %v1364
        %1414 = vmatpush1.bf16.msra.mxu0 %v1363
        %1415 = vmatprep.subr.bf16.mxu0 %v1362
        %1416 = vmatpush1.bf16.msra.mxu0 %v1361
        %1417 = vmatprep.subr.bf16.mxu0 %v1360
        %1418 = vmatpush1.bf16.msra.mxu0 %v1359
        %1419 = vmatprep.subr.bf16.mxu0 %v1358
        %1420 = vmatpush1.bf16.msra.mxu0 %v1357
        %1421 = vmatprep.subr.bf16.mxu0 %v1356
        %1422 = vmatpush1.bf16.msra.mxu0 %v1355
        %1423 = vmatprep.subr.bf16.mxu0 %v1354
        %1424 = vmatpush1.bf16.msra.mxu0 %v1353
        %1425 = vmatprep.subr.bf16.mxu0 %v1352
        %1426 = vmatpush1.bf16.msra.mxu0 %v1351
        %1427 = vmatprep.subr.bf16.mxu0 %v1350
        %1428 = vmatpush1.bf16.msra.mxu0 %v1349
        %1429 = vmatprep.subr.bf16.mxu0 %v1380
        %1430 = vmatpush2.bf16.msra.mxu0 %v1379
        %1431 = vmatprep.subr.bf16.mxu0 %v1378
        %1432 = vmatpush2.bf16.msra.mxu0 %v1377
        %1433 = vmatprep.subr.bf16.mxu0 %v1376
        %1434 = vmatpush2.bf16.msra.mxu0 %v1375
        %1435 = vmatprep.subr.bf16.mxu0 %v1374
        %1436 = vmatpush2.bf16.msra.mxu0 %v1373
        %1437 = vmatprep.subr.bf16.mxu0 %v1372
        %1438 = vmatpush2.bf16.msra.mxu0 %v1371
        %1439 = vmatprep.subr.bf16.mxu0 %v1370
        %1440 = vmatpush2.bf16.msra.mxu0 %v1369
        %1441 = vmatprep.subr.bf16.mxu0 %v1368
        %1442 = vmatpush2.bf16.msra.mxu0 %v1367
        %1443 = vmatprep.subr.bf16.mxu0 %v1366
        %1444 = vmatpush2.bf16.msra.mxu0 %v1365
        %1445 = vmatprep.mubr.bf16.mxu0 %v805
        %1446 = vmatmul.mubr.bf16.gmra.mxu0 %v804
        %v1447 = vpop.f32.mrf.mxu0
        %v1448 = vadd.f32 0.0, %v1447
        %v1449 = vpop.f32.mrf.mxu0
        %v1450 = vadd.f32 0.0, %v1449
        %v1451 = vpop.f32.mrf.mxu0
        %v1452 = vadd.f32 0.0, %v1451
        %v1453 = vpop.f32.mrf.mxu0
        %v1454 = vadd.f32 0.0, %v1453
        %1455 = vmatprep.mubr.bf16.mxu0 %v807
        %1456 = vmatmul.mubr.bf16.gmra.mxu0 %v806
        %v1457 = vpop.f32.mrf.mxu0
        %v1458 = vadd.f32 0.0, %v1457
        %v1459 = vpop.f32.mrf.mxu0
        %v1460 = vadd.f32 0.0, %v1459
        %v1461 = vpop.f32.mrf.mxu0
        %v1462 = vadd.f32 0.0, %v1461
        %v1463 = vpop.f32.mrf.mxu0
        %v1464 = vadd.f32 0.0, %v1463
        %1465 = vmatprep.mubr.bf16.mxu0 %v809
        %1466 = vmatmul.mubr.bf16.gmra.mxu0 %v808
        %v1467 = vpop.f32.mrf.mxu0
        %v1468 = vadd.f32 0.0, %v1467
        %v1469 = vpop.f32.mrf.mxu0
        %v1470 = vadd.f32 0.0, %v1469
        %v1471 = vpop.f32.mrf.mxu0
        %v1472 = vadd.f32 0.0, %v1471
        %v1473 = vpop.f32.mrf.mxu0
        %v1474 = vadd.f32 0.0, %v1473
        %1475 = vmatprep.mubr.bf16.mxu0 %v811
        %1476 = vmatmul.mubr.bf16.gmra.mxu0 %v810
        %v1477 = vpop.f32.mrf.mxu0
        %v1478 = vadd.f32 0.0, %v1477
        %v1479 = vpop.f32.mrf.mxu0
        %v1480 = vadd.f32 0.0, %v1479
        %v1481 = vpop.f32.mrf.mxu0
        %v1482 = vadd.f32 0.0, %v1481
        %v1483 = vpop.f32.mrf.mxu0
        %v1484 = vadd.f32 0.0, %v1483
        %1485 = vmatprep.mubr.bf16.mxu0 %v813
        %1486 = vmatmul.mubr.bf16.gmra.mxu0 %v812
        %v1487 = vpop.f32.mrf.mxu0
        %v1488 = vadd.f32 0.0, %v1487
        %v1489 = vpop.f32.mrf.mxu0
        %v1490 = vadd.f32 0.0, %v1489
        %v1491 = vpop.f32.mrf.mxu0
        %v1492 = vadd.f32 0.0, %v1491
        %v1493 = vpop.f32.mrf.mxu0
        %v1494 = vadd.f32 0.0, %v1493
        %1495 = vmatprep.mubr.bf16.mxu0 %v815
        %1496 = vmatmul.mubr.bf16.gmra.mxu0 %v814
        %v1497 = vpop.f32.mrf.mxu0
        %v1498 = vadd.f32 0.0, %v1497
        %v1499 = vpop.f32.mrf.mxu0
        %v1500 = vadd.f32 0.0, %v1499
        %v1501 = vpop.f32.mrf.mxu0
        %v1502 = vadd.f32 0.0, %v1501
        %v1503 = vpop.f32.mrf.mxu0
        %v1504 = vadd.f32 0.0, %v1503
        %1505 = vmatprep.mubr.bf16.mxu0 %v817
        %1506 = vmatmul.mubr.bf16.gmra.mxu0 %v816
        %v1507 = vpop.f32.mrf.mxu0
        %v1508 = vadd.f32 0.0, %v1507
        %v1509 = vpop.f32.mrf.mxu0
        %v1510 = vadd.f32 0.0, %v1509
        %v1511 = vpop.f32.mrf.mxu0
        %v1512 = vadd.f32 0.0, %v1511
        %v1513 = vpop.f32.mrf.mxu0
        %v1514 = vadd.f32 0.0, %v1513
        %1515 = vmatprep.mubr.bf16.mxu0 %v819
        %1516 = vmatmul.mubr.bf16.gmra.mxu0 %v818
        %v1517 = vpop.f32.mrf.mxu0
        %v1518 = vadd.f32 0.0, %v1517
        %v1519 = vpop.f32.mrf.mxu0
        %v1520 = vadd.f32 0.0, %v1519
        %v1521 = vpop.f32.mrf.mxu0
        %v1522 = vadd.f32 0.0, %v1521
        %v1523 = vpop.f32.mrf.mxu0
        %v1524 = vadd.f32 0.0, %v1523
        %1525 = vmatprep.mubr.bf16.mxu0 %v821
        %1526 = vmatmul.mubr.bf16.gmra.mxu0 %v820
        %v1527 = vpop.f32.mrf.mxu0
        %v1528 = vadd.f32 0.0, %v1527
        %v1529 = vpop.f32.mrf.mxu0
        %v1530 = vadd.f32 0.0, %v1529
        %v1531 = vpop.f32.mrf.mxu0
        %v1532 = vadd.f32 0.0, %v1531
        %v1533 = vpop.f32.mrf.mxu0
        %v1534 = vadd.f32 0.0, %v1533
        %1535 = vmatprep.mubr.bf16.mxu0 %v823
        %1536 = vmatmul.mubr.bf16.gmra.mxu0 %v822
        %v1537 = vpop.f32.mrf.mxu0
        %v1538 = vadd.f32 0.0, %v1537
        %v1539 = vpop.f32.mrf.mxu0
        %v1540 = vadd.f32 0.0, %v1539
        %v1541 = vpop.f32.mrf.mxu0
        %v1542 = vadd.f32 0.0, %v1541
        %v1543 = vpop.f32.mrf.mxu0
        %v1544 = vadd.f32 0.0, %v1543
        %1545 = vmatprep.mubr.bf16.mxu0 %v825
        %1546 = vmatmul.mubr.bf16.gmra.mxu0 %v824
        %v1547 = vpop.f32.mrf.mxu0
        %v1548 = vadd.f32 0.0, %v1547
        %v1549 = vpop.f32.mrf.mxu0
        %v1550 = vadd.f32 0.0, %v1549
        %v1551 = vpop.f32.mrf.mxu0
        %v1552 = vadd.f32 0.0, %v1551
        %v1553 = vpop.f32.mrf.mxu0
        %v1554 = vadd.f32 0.0, %v1553
        %1555 = vmatprep.mubr.bf16.mxu0 %v827
        %1556 = vmatmul.mubr.bf16.gmra.mxu0 %v826
        %v1557 = vpop.f32.mrf.mxu0
        %v1558 = vadd.f32 0.0, %v1557
        %v1559 = vpop.f32.mrf.mxu0
        %v1560 = vadd.f32 0.0, %v1559
        %v1561 = vpop.f32.mrf.mxu0
        %v1562 = vadd.f32 0.0, %v1561
        %v1563 = vpop.f32.mrf.mxu0
        %v1564 = vadd.f32 0.0, %v1563
        %1565 = vmatprep.mubr.bf16.mxu0 %v829
        %1566 = vmatmul.mubr.bf16.gmra.mxu0 %v828
        %v1567 = vpop.f32.mrf.mxu0
        %v1568 = vadd.f32 0.0, %v1567
        %v1569 = vpop.f32.mrf.mxu0
        %v1570 = vadd.f32 0.0, %v1569
        %v1571 = vpop.f32.mrf.mxu0
        %v1572 = vadd.f32 0.0, %v1571
        %v1573 = vpop.f32.mrf.mxu0
        %v1574 = vadd.f32 0.0, %v1573
        %1575 = vmatprep.mubr.bf16.mxu0 %v831
        %1576 = vmatmul.mubr.bf16.gmra.mxu0 %v830
        %v1577 = vpop.f32.mrf.mxu0
        %v1578 = vadd.f32 0.0, %v1577
        %v1579 = vpop.f32.mrf.mxu0
        %v1580 = vadd.f32 0.0, %v1579
        %v1581 = vpop.f32.mrf.mxu0
        %v1582 = vadd.f32 0.0, %v1581
        %v1583 = vpop.f32.mrf.mxu0
        %v1584 = vadd.f32 0.0, %v1583
        %1585 = vmatprep.mubr.bf16.mxu0 %v833
        %1586 = vmatmul.mubr.bf16.gmra.mxu0 %v832
        %v1587 = vpop.f32.mrf.mxu0
        %v1588 = vadd.f32 0.0, %v1587
        %v1589 = vpop.f32.mrf.mxu0
        %v1590 = vadd.f32 0.0, %v1589
        %v1591 = vpop.f32.mrf.mxu0
        %v1592 = vadd.f32 0.0, %v1591
        %v1593 = vpop.f32.mrf.mxu0
        %v1594 = vadd.f32 0.0, %v1593
        %1595 = vmatprep.mubr.bf16.mxu0 %v835
        %1596 = vmatmul.mubr.bf16.gmra.mxu0 %v834
        %v1597 = vpop.f32.mrf.mxu0
        %v1598 = vadd.f32 0.0, %v1597
        %v1599 = vpop.f32.mrf.mxu0
        %v1600 = vadd.f32 0.0, %v1599
        %v1601 = vpop.f32.mrf.mxu0
        %v1602 = vadd.f32 0.0, %v1601
        %v1603 = vpop.f32.mrf.mxu0
        %v1604 = vadd.f32 0.0, %v1603
        %1605 = vdwg.mxu0
        %v1606 = vld [vmem:[#allocation8] sm:$0xff]
        %v1607 = vld [vmem:[#allocation8 + $0x8] sm:$0xff]
        %v1608 = vld [vmem:[#allocation8 + $0x10] sm:$0xff]
        %v1609 = vld [vmem:[#allocation8 + $0x18] sm:$0xff]
        %v1610 = vld [vmem:[#allocation8 + $0x20] sm:$0xff]
        %v1611 = vld [vmem:[#allocation8 + $0x28] sm:$0xff]
        %v1612 = vld [vmem:[#allocation8 + $0x30] sm:$0xff]
        %v1613 = vld [vmem:[#allocation8 + $0x38] sm:$0xff]
        %v1614 = vld [vmem:[#allocation8 + $0x40] sm:$0xff]
        %v1615 = vld [vmem:[#allocation8 + $0x48] sm:$0xff]
        %v1616 = vld [vmem:[#allocation8 + $0x50] sm:$0xff]
        %v1617 = vld [vmem:[#allocation8 + $0x58] sm:$0xff]
        %v1618 = vld [vmem:[#allocation8 + $0x60] sm:$0xff]
        %v1619 = vld [vmem:[#allocation8 + $0x68] sm:$0xff]
        %v1620 = vld [vmem:[#allocation8 + $0x70] sm:$0xff]
        %v1621 = vld [vmem:[#allocation8 + $0x78] sm:$0xff]
        %v1622 = vld [vmem:[#allocation8 + $0x80] sm:$0xff]
        %v1623 = vld [vmem:[#allocation8 + $0x88] sm:$0xff]
        %v1624 = vld [vmem:[#allocation8 + $0x90] sm:$0xff]
        %v1625 = vld [vmem:[#allocation8 + $0x98] sm:$0xff]
        %v1626 = vld [vmem:[#allocation8 + $0xa0] sm:$0xff]
        %v1627 = vld [vmem:[#allocation8 + $0xa8] sm:$0xff]
        %v1628 = vld [vmem:[#allocation8 + $0xb0] sm:$0xff]
        %v1629 = vld [vmem:[#allocation8 + $0xb8] sm:$0xff]
        %v1630 = vld [vmem:[#allocation8 + $0xc0] sm:$0xff]
        %v1631 = vld [vmem:[#allocation8 + $0xc8] sm:$0xff]
        %v1632 = vld [vmem:[#allocation8 + $0xd0] sm:$0xff]
        %v1633 = vld [vmem:[#allocation8 + $0xd8] sm:$0xff]
        %v1634 = vld [vmem:[#allocation8 + $0xe0] sm:$0xff]
        %v1635 = vld [vmem:[#allocation8 + $0xe8] sm:$0xff]
        %v1636 = vld [vmem:[#allocation8 + $0xf0] sm:$0xff]
        %v1637 = vld [vmem:[#allocation8 + $0xf8] sm:$0xff]
        %v1670 = vunpack.c.l.b16 %v1606
        %v1671 = vunpack.c.h.b16 %v1606
        %v1672 = vunpack.c.l.b16 %v1607
        %v1673 = vunpack.c.h.b16 %v1607
        %v1674 = vunpack.c.l.b16 %v1608
        %v1675 = vunpack.c.h.b16 %v1608
        %v1676 = vunpack.c.l.b16 %v1609
        %v1677 = vunpack.c.h.b16 %v1609
        %v1678 = vunpack.c.l.b16 %v1610
        %v1679 = vunpack.c.h.b16 %v1610
        %v1680 = vunpack.c.l.b16 %v1611
        %v1681 = vunpack.c.h.b16 %v1611
        %v1682 = vunpack.c.l.b16 %v1612
        %v1683 = vunpack.c.h.b16 %v1612
        %v1684 = vunpack.c.l.b16 %v1613
        %v1685 = vunpack.c.h.b16 %v1613
        %v1686 = vunpack.c.l.b16 %v1614
        %v1687 = vunpack.c.h.b16 %v1614
        %v1688 = vunpack.c.l.b16 %v1615
        %v1689 = vunpack.c.h.b16 %v1615
        %v1690 = vunpack.c.l.b16 %v1616
        %v1691 = vunpack.c.h.b16 %v1616
        %v1692 = vunpack.c.l.b16 %v1617
        %v1693 = vunpack.c.h.b16 %v1617
        %v1694 = vunpack.c.l.b16 %v1618
        %v1695 = vunpack.c.h.b16 %v1618
        %v1696 = vunpack.c.l.b16 %v1619
        %v1697 = vunpack.c.h.b16 %v1619
        %v1698 = vunpack.c.l.b16 %v1620
        %v1699 = vunpack.c.h.b16 %v1620
        %v1700 = vunpack.c.l.b16 %v1621
        %v1701 = vunpack.c.h.b16 %v1621
        %v1702 = vunpack.c.l.b16 %v1622
        %v1703 = vunpack.c.h.b16 %v1622
        %v1704 = vunpack.c.l.b16 %v1623
        %v1705 = vunpack.c.h.b16 %v1623
        %v1706 = vunpack.c.l.b16 %v1624
        %v1707 = vunpack.c.h.b16 %v1624
        %v1708 = vunpack.c.l.b16 %v1625
        %v1709 = vunpack.c.h.b16 %v1625
        %v1710 = vunpack.c.l.b16 %v1626
        %v1711 = vunpack.c.h.b16 %v1626
        %v1712 = vunpack.c.l.b16 %v1627
        %v1713 = vunpack.c.h.b16 %v1627
        %v1714 = vunpack.c.l.b16 %v1628
        %v1715 = vunpack.c.h.b16 %v1628
        %v1716 = vunpack.c.l.b16 %v1629
        %v1717 = vunpack.c.h.b16 %v1629
        %v1718 = vunpack.c.l.b16 %v1630
        %v1719 = vunpack.c.h.b16 %v1630
        %v1720 = vunpack.c.l.b16 %v1631
        %v1721 = vunpack.c.h.b16 %v1631
        %v1722 = vunpack.c.l.b16 %v1632
        %v1723 = vunpack.c.h.b16 %v1632
        %v1724 = vunpack.c.l.b16 %v1633
        %v1725 = vunpack.c.h.b16 %v1633
        %v1726 = vunpack.c.l.b16 %v1634
        %v1727 = vunpack.c.h.b16 %v1634
        %v1728 = vunpack.c.l.b16 %v1635
        %v1729 = vunpack.c.h.b16 %v1635
        %v1730 = vunpack.c.l.b16 %v1636
        %v1731 = vunpack.c.h.b16 %v1636
        %v1732 = vunpack.c.l.b16 %v1637
        %v1733 = vunpack.c.h.b16 %v1637
        %v1734 = vpack.c.b16 %v1672, %v1670
        %v1735 = vpack.c.b16 %v1673, %v1671
        %v1736 = vpack.c.b16 %v1676, %v1674
        %v1737 = vpack.c.b16 %v1677, %v1675
        %v1738 = vpack.c.b16 %v1680, %v1678
        %v1739 = vpack.c.b16 %v1681, %v1679
        %v1740 = vpack.c.b16 %v1684, %v1682
        %v1741 = vpack.c.b16 %v1685, %v1683
        %v1742 = vpack.c.b16 %v1688, %v1686
        %v1743 = vpack.c.b16 %v1689, %v1687
        %v1744 = vpack.c.b16 %v1692, %v1690
        %v1745 = vpack.c.b16 %v1693, %v1691
        %v1746 = vpack.c.b16 %v1696, %v1694
        %v1747 = vpack.c.b16 %v1697, %v1695
        %v1748 = vpack.c.b16 %v1700, %v1698
        %v1749 = vpack.c.b16 %v1701, %v1699
        %v1750 = vpack.c.b16 %v1704, %v1702
        %v1751 = vpack.c.b16 %v1705, %v1703
        %v1752 = vpack.c.b16 %v1708, %v1706
        %v1753 = vpack.c.b16 %v1709, %v1707
        %v1754 = vpack.c.b16 %v1712, %v1710
        %v1755 = vpack.c.b16 %v1713, %v1711
        %v1756 = vpack.c.b16 %v1716, %v1714
        %v1757 = vpack.c.b16 %v1717, %v1715
        %v1758 = vpack.c.b16 %v1720, %v1718
        %v1759 = vpack.c.b16 %v1721, %v1719
        %v1760 = vpack.c.b16 %v1724, %v1722
        %v1761 = vpack.c.b16 %v1725, %v1723
        %v1762 = vpack.c.b16 %v1728, %v1726
        %v1763 = vpack.c.b16 %v1729, %v1727
        %v1764 = vpack.c.b16 %v1732, %v1730
        %v1765 = vpack.c.b16 %v1733, %v1731
        %1798 = vmatprep.subr.bf16.mxu0 %v1749
        %1799 = vmatpush1.bf16.msra.mxu0 %v1748
        %1800 = vmatprep.subr.bf16.mxu0 %v1747
        %1801 = vmatpush1.bf16.msra.mxu0 %v1746
        %1802 = vmatprep.subr.bf16.mxu0 %v1745
        %1803 = vmatpush1.bf16.msra.mxu0 %v1744
        %1804 = vmatprep.subr.bf16.mxu0 %v1743
        %1805 = vmatpush1.bf16.msra.mxu0 %v1742
        %1806 = vmatprep.subr.bf16.mxu0 %v1741
        %1807 = vmatpush1.bf16.msra.mxu0 %v1740
        %1808 = vmatprep.subr.bf16.mxu0 %v1739
        %1809 = vmatpush1.bf16.msra.mxu0 %v1738
        %1810 = vmatprep.subr.bf16.mxu0 %v1737
        %1811 = vmatpush1.bf16.msra.mxu0 %v1736
        %1812 = vmatprep.subr.bf16.mxu0 %v1735
        %1813 = vmatpush1.bf16.msra.mxu0 %v1734
        %1814 = vmatprep.subr.bf16.mxu0 %v1765
        %1815 = vmatpush2.bf16.msra.mxu0 %v1764
        %1816 = vmatprep.subr.bf16.mxu0 %v1763
        %1817 = vmatpush2.bf16.msra.mxu0 %v1762
        %1818 = vmatprep.subr.bf16.mxu0 %v1761
        %1819 = vmatpush2.bf16.msra.mxu0 %v1760
        %1820 = vmatprep.subr.bf16.mxu0 %v1759
        %1821 = vmatpush2.bf16.msra.mxu0 %v1758
        %1822 = vmatprep.subr.bf16.mxu0 %v1757
        %1823 = vmatpush2.bf16.msra.mxu0 %v1756
        %1824 = vmatprep.subr.bf16.mxu0 %v1755
        %1825 = vmatpush2.bf16.msra.mxu0 %v1754
        %1826 = vmatprep.subr.bf16.mxu0 %v1753
        %1827 = vmatpush2.bf16.msra.mxu0 %v1752
        %1828 = vmatprep.subr.bf16.mxu0 %v1751
        %1829 = vmatpush2.bf16.msra.mxu0 %v1750
        %1830 = vmatprep.mubr.bf16.mxu0 %v805
        %1831 = vmatmul.mubr.bf16.gmra.mxu0 %v804
        %v1832 = vpop.f32.mrf.mxu0
        %v1833 = vadd.f32 0.0, %v1832
        %v1834 = vpop.f32.mrf.mxu0
        %v1835 = vadd.f32 0.0, %v1834
        %v1836 = vpop.f32.mrf.mxu0
        %v1837 = vadd.f32 0.0, %v1836
        %v1838 = vpop.f32.mrf.mxu0
        %v1839 = vadd.f32 0.0, %v1838
        %1840 = vmatprep.mubr.bf16.mxu0 %v807
        %1841 = vmatmul.mubr.bf16.gmra.mxu0 %v806
        %v1842 = vpop.f32.mrf.mxu0
        %v1843 = vadd.f32 0.0, %v1842
        %v1844 = vpop.f32.mrf.mxu0
        %v1845 = vadd.f32 0.0, %v1844
        %v1846 = vpop.f32.mrf.mxu0
        %v1847 = vadd.f32 0.0, %v1846
        %v1848 = vpop.f32.mrf.mxu0
        %v1849 = vadd.f32 0.0, %v1848
        %1850 = vmatprep.mubr.bf16.mxu0 %v809
        %1851 = vmatmul.mubr.bf16.gmra.mxu0 %v808
        %v1852 = vpop.f32.mrf.mxu0
        %v1853 = vadd.f32 0.0, %v1852
        %v1854 = vpop.f32.mrf.mxu0
        %v1855 = vadd.f32 0.0, %v1854
        %v1856 = vpop.f32.mrf.mxu0
        %v1857 = vadd.f32 0.0, %v1856
        %v1858 = vpop.f32.mrf.mxu0
        %v1859 = vadd.f32 0.0, %v1858
        %1860 = vmatprep.mubr.bf16.mxu0 %v811
        %1861 = vmatmul.mubr.bf16.gmra.mxu0 %v810
        %v1862 = vpop.f32.mrf.mxu0
        %v1863 = vadd.f32 0.0, %v1862
        %v1864 = vpop.f32.mrf.mxu0
        %v1865 = vadd.f32 0.0, %v1864
        %v1866 = vpop.f32.mrf.mxu0
        %v1867 = vadd.f32 0.0, %v1866
        %v1868 = vpop.f32.mrf.mxu0
        %v1869 = vadd.f32 0.0, %v1868
        %1870 = vmatprep.mubr.bf16.mxu0 %v813
        %1871 = vmatmul.mubr.bf16.gmra.mxu0 %v812
        %v1872 = vpop.f32.mrf.mxu0
        %v1873 = vadd.f32 0.0, %v1872
        %v1874 = vpop.f32.mrf.mxu0
        %v1875 = vadd.f32 0.0, %v1874
        %v1876 = vpop.f32.mrf.mxu0
        %v1877 = vadd.f32 0.0, %v1876
        %v1878 = vpop.f32.mrf.mxu0
        %v1879 = vadd.f32 0.0, %v1878
        %1880 = vmatprep.mubr.bf16.mxu0 %v815
        %1881 = vmatmul.mubr.bf16.gmra.mxu0 %v814
        %v1882 = vpop.f32.mrf.mxu0
        %v1883 = vadd.f32 0.0, %v1882
        %v1884 = vpop.f32.mrf.mxu0
        %v1885 = vadd.f32 0.0, %v1884
        %v1886 = vpop.f32.mrf.mxu0
        %v1887 = vadd.f32 0.0, %v1886
        %v1888 = vpop.f32.mrf.mxu0
        %v1889 = vadd.f32 0.0, %v1888
        %1890 = vmatprep.mubr.bf16.mxu0 %v817
        %1891 = vmatmul.mubr.bf16.gmra.mxu0 %v816
        %v1892 = vpop.f32.mrf.mxu0
        %v1893 = vadd.f32 0.0, %v1892
        %v1894 = vpop.f32.mrf.mxu0
        %v1895 = vadd.f32 0.0, %v1894
        %v1896 = vpop.f32.mrf.mxu0
        %v1897 = vadd.f32 0.0, %v1896
        %v1898 = vpop.f32.mrf.mxu0
        %v1899 = vadd.f32 0.0, %v1898
        %1900 = vmatprep.mubr.bf16.mxu0 %v819
        %1901 = vmatmul.mubr.bf16.gmra.mxu0 %v818
        %v1902 = vpop.f32.mrf.mxu0
        %v1903 = vadd.f32 0.0, %v1902
        %v1904 = vpop.f32.mrf.mxu0
        %v1905 = vadd.f32 0.0, %v1904
        %v1906 = vpop.f32.mrf.mxu0
        %v1907 = vadd.f32 0.0, %v1906
        %v1908 = vpop.f32.mrf.mxu0
        %v1909 = vadd.f32 0.0, %v1908
        %1910 = vmatprep.mubr.bf16.mxu0 %v821
        %1911 = vmatmul.mubr.bf16.gmra.mxu0 %v820
        %v1912 = vpop.f32.mrf.mxu0
        %v1913 = vadd.f32 0.0, %v1912
        %v1914 = vpop.f32.mrf.mxu0
        %v1915 = vadd.f32 0.0, %v1914
        %v1916 = vpop.f32.mrf.mxu0
        %v1917 = vadd.f32 0.0, %v1916
        %v1918 = vpop.f32.mrf.mxu0
        %v1919 = vadd.f32 0.0, %v1918
        %1920 = vmatprep.mubr.bf16.mxu0 %v823
        %1921 = vmatmul.mubr.bf16.gmra.mxu0 %v822
        %v1922 = vpop.f32.mrf.mxu0
        %v1923 = vadd.f32 0.0, %v1922
        %v1924 = vpop.f32.mrf.mxu0
        %v1925 = vadd.f32 0.0, %v1924
        %v1926 = vpop.f32.mrf.mxu0
        %v1927 = vadd.f32 0.0, %v1926
        %v1928 = vpop.f32.mrf.mxu0
        %v1929 = vadd.f32 0.0, %v1928
        %1930 = vmatprep.mubr.bf16.mxu0 %v825
        %1931 = vmatmul.mubr.bf16.gmra.mxu0 %v824
        %v1932 = vpop.f32.mrf.mxu0
        %v1933 = vadd.f32 0.0, %v1932
        %v1934 = vpop.f32.mrf.mxu0
        %v1935 = vadd.f32 0.0, %v1934
        %v1936 = vpop.f32.mrf.mxu0
        %v1937 = vadd.f32 0.0, %v1936
        %v1938 = vpop.f32.mrf.mxu0
        %v1939 = vadd.f32 0.0, %v1938
        %1940 = vmatprep.mubr.bf16.mxu0 %v827
        %1941 = vmatmul.mubr.bf16.gmra.mxu0 %v826
        %v1942 = vpop.f32.mrf.mxu0
        %v1943 = vadd.f32 0.0, %v1942
        %v1944 = vpop.f32.mrf.mxu0
        %v1945 = vadd.f32 0.0, %v1944
        %v1946 = vpop.f32.mrf.mxu0
        %v1947 = vadd.f32 0.0, %v1946
        %v1948 = vpop.f32.mrf.mxu0
        %v1949 = vadd.f32 0.0, %v1948
        %1950 = vmatprep.mubr.bf16.mxu0 %v829
        %1951 = vmatmul.mubr.bf16.gmra.mxu0 %v828
        %v1952 = vpop.f32.mrf.mxu0
        %v1953 = vadd.f32 0.0, %v1952
        %v1954 = vpop.f32.mrf.mxu0
        %v1955 = vadd.f32 0.0, %v1954
        %v1956 = vpop.f32.mrf.mxu0
        %v1957 = vadd.f32 0.0, %v1956
        %v1958 = vpop.f32.mrf.mxu0
        %v1959 = vadd.f32 0.0, %v1958
        %1960 = vmatprep.mubr.bf16.mxu0 %v831
        %1961 = vmatmul.mubr.bf16.gmra.mxu0 %v830
        %v1962 = vpop.f32.mrf.mxu0
        %v1963 = vadd.f32 0.0, %v1962
        %v1964 = vpop.f32.mrf.mxu0
        %v1965 = vadd.f32 0.0, %v1964
        %v1966 = vpop.f32.mrf.mxu0
        %v1967 = vadd.f32 0.0, %v1966
        %v1968 = vpop.f32.mrf.mxu0
        %v1969 = vadd.f32 0.0, %v1968
        %1970 = vmatprep.mubr.bf16.mxu0 %v833
        %1971 = vmatmul.mubr.bf16.gmra.mxu0 %v832
        %v1972 = vpop.f32.mrf.mxu0
        %v1973 = vadd.f32 0.0, %v1972
        %v1974 = vpop.f32.mrf.mxu0
        %v1975 = vadd.f32 0.0, %v1974
        %v1976 = vpop.f32.mrf.mxu0
        %v1977 = vadd.f32 0.0, %v1976
        %v1978 = vpop.f32.mrf.mxu0
        %v1979 = vadd.f32 0.0, %v1978
        %1980 = vmatprep.mubr.bf16.mxu0 %v835
        %1981 = vmatmul.mubr.bf16.gmra.mxu0 %v834
        %v1982 = vpop.f32.mrf.mxu0
        %v1983 = vadd.f32 0.0, %v1982
        %v1984 = vpop.f32.mrf.mxu0
        %v1985 = vadd.f32 0.0, %v1984
        %v1986 = vpop.f32.mrf.mxu0
        %v1987 = vadd.f32 0.0, %v1986
        %v1988 = vpop.f32.mrf.mxu0
        %v1989 = vadd.f32 0.0, %v1988
        %1990 = vdwg.mxu0
        %v1991 = vld [vmem:[#allocation10] sm:$0xff]
        %v1992 = vld [vmem:[#allocation10 + $0x8] sm:$0xff]
        %v1993 = vld [vmem:[#allocation10 + $0x10] sm:$0xff]
        %v1994 = vld [vmem:[#allocation10 + $0x18] sm:$0xff]
        %v1995 = vld [vmem:[#allocation10 + $0x20] sm:$0xff]
        %v1996 = vld [vmem:[#allocation10 + $0x28] sm:$0xff]
        %v1997 = vld [vmem:[#allocation10 + $0x30] sm:$0xff]
        %v1998 = vld [vmem:[#allocation10 + $0x38] sm:$0xff]
        %v1999 = vld [vmem:[#allocation10 + $0x40] sm:$0xff]
        %v2000 = vld [vmem:[#allocation10 + $0x48] sm:$0xff]
        %v2001 = vld [vmem:[#allocation10 + $0x50] sm:$0xff]
        %v2002 = vld [vmem:[#allocation10 + $0x58] sm:$0xff]
        %v2003 = vld [vmem:[#allocation10 + $0x60] sm:$0xff]
        %v2004 = vld [vmem:[#allocation10 + $0x68] sm:$0xff]
        %v2005 = vld [vmem:[#allocation10 + $0x70] sm:$0xff]
        %v2006 = vld [vmem:[#allocation10 + $0x78] sm:$0xff]
        %v2007 = vld [vmem:[#allocation10 + $0x80] sm:$0xff]
        %v2008 = vld [vmem:[#allocation10 + $0x88] sm:$0xff]
        %v2009 = vld [vmem:[#allocation10 + $0x90] sm:$0xff]
        %v2010 = vld [vmem:[#allocation10 + $0x98] sm:$0xff]
        %v2011 = vld [vmem:[#allocation10 + $0xa0] sm:$0xff]
        %v2012 = vld [vmem:[#allocation10 + $0xa8] sm:$0xff]
        %v2013 = vld [vmem:[#allocation10 + $0xb0] sm:$0xff]
        %v2014 = vld [vmem:[#allocation10 + $0xb8] sm:$0xff]
        %v2015 = vld [vmem:[#allocation10 + $0xc0] sm:$0xff]
        %v2016 = vld [vmem:[#allocation10 + $0xc8] sm:$0xff]
        %v2017 = vld [vmem:[#allocation10 + $0xd0] sm:$0xff]
        %v2018 = vld [vmem:[#allocation10 + $0xd8] sm:$0xff]
        %v2019 = vld [vmem:[#allocation10 + $0xe0] sm:$0xff]
        %v2020 = vld [vmem:[#allocation10 + $0xe8] sm:$0xff]
        %v2021 = vld [vmem:[#allocation10 + $0xf0] sm:$0xff]
        %v2022 = vld [vmem:[#allocation10 + $0xf8] sm:$0xff]
        %v2055 = vunpack.c.l.b16 %v1991
        %v2056 = vunpack.c.h.b16 %v1991
        %v2057 = vunpack.c.l.b16 %v1992
        %v2058 = vunpack.c.h.b16 %v1992
        %v2059 = vunpack.c.l.b16 %v1993
        %v2060 = vunpack.c.h.b16 %v1993
        %v2061 = vunpack.c.l.b16 %v1994
        %v2062 = vunpack.c.h.b16 %v1994
        %v2063 = vunpack.c.l.b16 %v1995
        %v2064 = vunpack.c.h.b16 %v1995
        %v2065 = vunpack.c.l.b16 %v1996
        %v2066 = vunpack.c.h.b16 %v1996
        %v2067 = vunpack.c.l.b16 %v1997
        %v2068 = vunpack.c.h.b16 %v1997
        %v2069 = vunpack.c.l.b16 %v1998
        %v2070 = vunpack.c.h.b16 %v1998
        %v2071 = vunpack.c.l.b16 %v1999
        %v2072 = vunpack.c.h.b16 %v1999
        %v2073 = vunpack.c.l.b16 %v2000
        %v2074 = vunpack.c.h.b16 %v2000
        %v2075 = vunpack.c.l.b16 %v2001
        %v2076 = vunpack.c.h.b16 %v2001
        %v2077 = vunpack.c.l.b16 %v2002
        %v2078 = vunpack.c.h.b16 %v2002
        %v2079 = vunpack.c.l.b16 %v2003
        %v2080 = vunpack.c.h.b16 %v2003
        %v2081 = vunpack.c.l.b16 %v2004
        %v2082 = vunpack.c.h.b16 %v2004
        %v2083 = vunpack.c.l.b16 %v2005
        %v2084 = vunpack.c.h.b16 %v2005
        %v2085 = vunpack.c.l.b16 %v2006
        %v2086 = vunpack.c.h.b16 %v2006
        %v2087 = vunpack.c.l.b16 %v2007
        %v2088 = vunpack.c.h.b16 %v2007
        %v2089 = vunpack.c.l.b16 %v2008
        %v2090 = vunpack.c.h.b16 %v2008
        %v2091 = vunpack.c.l.b16 %v2009
        %v2092 = vunpack.c.h.b16 %v2009
        %v2093 = vunpack.c.l.b16 %v2010
        %v2094 = vunpack.c.h.b16 %v2010
        %v2095 = vunpack.c.l.b16 %v2011
        %v2096 = vunpack.c.h.b16 %v2011
        %v2097 = vunpack.c.l.b16 %v2012
        %v2098 = vunpack.c.h.b16 %v2012
        %v2099 = vunpack.c.l.b16 %v2013
        %v2100 = vunpack.c.h.b16 %v2013
        %v2101 = vunpack.c.l.b16 %v2014
        %v2102 = vunpack.c.h.b16 %v2014
        %v2103 = vunpack.c.l.b16 %v2015
        %v2104 = vunpack.c.h.b16 %v2015
        %v2105 = vunpack.c.l.b16 %v2016
        %v2106 = vunpack.c.h.b16 %v2016
        %v2107 = vunpack.c.l.b16 %v2017
        %v2108 = vunpack.c.h.b16 %v2017
        %v2109 = vunpack.c.l.b16 %v2018
        %v2110 = vunpack.c.h.b16 %v2018
        %v2111 = vunpack.c.l.b16 %v2019
        %v2112 = vunpack.c.h.b16 %v2019
        %v2113 = vunpack.c.l.b16 %v2020
        %v2114 = vunpack.c.h.b16 %v2020
        %v2115 = vunpack.c.l.b16 %v2021
        %v2116 = vunpack.c.h.b16 %v2021
        %v2117 = vunpack.c.l.b16 %v2022
        %v2118 = vunpack.c.h.b16 %v2022
        %v2119 = vpack.c.b16 %v2057, %v2055
        %v2120 = vpack.c.b16 %v2058, %v2056
        %v2121 = vpack.c.b16 %v2061, %v2059
        %v2122 = vpack.c.b16 %v2062, %v2060
        %v2123 = vpack.c.b16 %v2065, %v2063
        %v2124 = vpack.c.b16 %v2066, %v2064
        %v2125 = vpack.c.b16 %v2069, %v2067
        %v2126 = vpack.c.b16 %v2070, %v2068
        %v2127 = vpack.c.b16 %v2073, %v2071
        %v2128 = vpack.c.b16 %v2074, %v2072
        %v2129 = vpack.c.b16 %v2077, %v2075
        %v2130 = vpack.c.b16 %v2078, %v2076
        %v2131 = vpack.c.b16 %v2081, %v2079
        %v2132 = vpack.c.b16 %v2082, %v2080
        %v2133 = vpack.c.b16 %v2085, %v2083
        %v2134 = vpack.c.b16 %v2086, %v2084
        %v2135 = vpack.c.b16 %v2089, %v2087
        %v2136 = vpack.c.b16 %v2090, %v2088
        %v2137 = vpack.c.b16 %v2093, %v2091
        %v2138 = vpack.c.b16 %v2094, %v2092
        %v2139 = vpack.c.b16 %v2097, %v2095
        %v2140 = vpack.c.b16 %v2098, %v2096
        %v2141 = vpack.c.b16 %v2101, %v2099
        %v2142 = vpack.c.b16 %v2102, %v2100
        %v2143 = vpack.c.b16 %v2105, %v2103
        %v2144 = vpack.c.b16 %v2106, %v2104
        %v2145 = vpack.c.b16 %v2109, %v2107
        %v2146 = vpack.c.b16 %v2110, %v2108
        %v2147 = vpack.c.b16 %v2113, %v2111
        %v2148 = vpack.c.b16 %v2114, %v2112
        %v2149 = vpack.c.b16 %v2117, %v2115
        %v2150 = vpack.c.b16 %v2118, %v2116
        %2183 = vmatprep.subr.bf16.mxu0 %v2134
        %2184 = vmatpush1.bf16.msra.mxu0 %v2133
        %2185 = vmatprep.subr.bf16.mxu0 %v2132
        %2186 = vmatpush1.bf16.msra.mxu0 %v2131
        %2187 = vmatprep.subr.bf16.mxu0 %v2130
        %2188 = vmatpush1.bf16.msra.mxu0 %v2129
        %2189 = vmatprep.subr.bf16.mxu0 %v2128
        %2190 = vmatpush1.bf16.msra.mxu0 %v2127
        %2191 = vmatprep.subr.bf16.mxu0 %v2126
        %2192 = vmatpush1.bf16.msra.mxu0 %v2125
        %2193 = vmatprep.subr.bf16.mxu0 %v2124
        %2194 = vmatpush1.bf16.msra.mxu0 %v2123
        %2195 = vmatprep.subr.bf16.mxu0 %v2122
        %2196 = vmatpush1.bf16.msra.mxu0 %v2121
        %2197 = vmatprep.subr.bf16.mxu0 %v2120
        %2198 = vmatpush1.bf16.msra.mxu0 %v2119
        %2199 = vmatprep.subr.bf16.mxu0 %v2150
        %2200 = vmatpush2.bf16.msra.mxu0 %v2149
        %2201 = vmatprep.subr.bf16.mxu0 %v2148
        %2202 = vmatpush2.bf16.msra.mxu0 %v2147
        %2203 = vmatprep.subr.bf16.mxu0 %v2146
        %2204 = vmatpush2.bf16.msra.mxu0 %v2145
        %2205 = vmatprep.subr.bf16.mxu0 %v2144
        %2206 = vmatpush2.bf16.msra.mxu0 %v2143
        %2207 = vmatprep.subr.bf16.mxu0 %v2142
        %2208 = vmatpush2.bf16.msra.mxu0 %v2141
        %2209 = vmatprep.subr.bf16.mxu0 %v2140
        %2210 = vmatpush2.bf16.msra.mxu0 %v2139
        %2211 = vmatprep.subr.bf16.mxu0 %v2138
        %2212 = vmatpush2.bf16.msra.mxu0 %v2137
        %2213 = vmatprep.subr.bf16.mxu0 %v2136
        %2214 = vmatpush2.bf16.msra.mxu0 %v2135
        %2215 = vmatprep.mubr.bf16.mxu0 %v805
        %2216 = vmatmul.mubr.bf16.gmra.mxu0 %v804
        %v2217 = vpop.f32.mrf.mxu0
        %v2218 = vadd.f32 0.0, %v2217
        %v2219 = vpop.f32.mrf.mxu0
        %v2220 = vadd.f32 0.0, %v2219
        %v2221 = vpop.f32.mrf.mxu0
        %v2222 = vadd.f32 0.0, %v2221
        %v2223 = vpop.f32.mrf.mxu0
        %v2224 = vadd.f32 0.0, %v2223
        %2225 = vmatprep.mubr.bf16.mxu0 %v807
        %2226 = vmatmul.mubr.bf16.gmra.mxu0 %v806
        %v2227 = vpop.f32.mrf.mxu0
        %v2228 = vadd.f32 0.0, %v2227
        %v2229 = vpop.f32.mrf.mxu0
        %v2230 = vadd.f32 0.0, %v2229
        %v2231 = vpop.f32.mrf.mxu0
        %v2232 = vadd.f32 0.0, %v2231
        %v2233 = vpop.f32.mrf.mxu0
        %v2234 = vadd.f32 0.0, %v2233
        %2235 = vmatprep.mubr.bf16.mxu0 %v809
        %2236 = vmatmul.mubr.bf16.gmra.mxu0 %v808
        %v2237 = vpop.f32.mrf.mxu0
        %v2238 = vadd.f32 0.0, %v2237
        %v2239 = vpop.f32.mrf.mxu0
        %v2240 = vadd.f32 0.0, %v2239
        %v2241 = vpop.f32.mrf.mxu0
        %v2242 = vadd.f32 0.0, %v2241
        %v2243 = vpop.f32.mrf.mxu0
        %v2244 = vadd.f32 0.0, %v2243
        %2245 = vmatprep.mubr.bf16.mxu0 %v811
        %2246 = vmatmul.mubr.bf16.gmra.mxu0 %v810
        %v2247 = vpop.f32.mrf.mxu0
        %v2248 = vadd.f32 0.0, %v2247
        %v2249 = vpop.f32.mrf.mxu0
        %v2250 = vadd.f32 0.0, %v2249
        %v2251 = vpop.f32.mrf.mxu0
        %v2252 = vadd.f32 0.0, %v2251
        %v2253 = vpop.f32.mrf.mxu0
        %v2254 = vadd.f32 0.0, %v2253
        %2255 = vmatprep.mubr.bf16.mxu0 %v813
        %2256 = vmatmul.mubr.bf16.gmra.mxu0 %v812
        %v2257 = vpop.f32.mrf.mxu0
        %v2258 = vadd.f32 0.0, %v2257
        %v2259 = vpop.f32.mrf.mxu0
        %v2260 = vadd.f32 0.0, %v2259
        %v2261 = vpop.f32.mrf.mxu0
        %v2262 = vadd.f32 0.0, %v2261
        %v2263 = vpop.f32.mrf.mxu0
        %v2264 = vadd.f32 0.0, %v2263
        %2265 = vmatprep.mubr.bf16.mxu0 %v815
        %2266 = vmatmul.mubr.bf16.gmra.mxu0 %v814
        %v2267 = vpop.f32.mrf.mxu0
        %v2268 = vadd.f32 0.0, %v2267
        %v2269 = vpop.f32.mrf.mxu0
        %v2270 = vadd.f32 0.0, %v2269
        %v2271 = vpop.f32.mrf.mxu0
        %v2272 = vadd.f32 0.0, %v2271
        %v2273 = vpop.f32.mrf.mxu0
        %v2274 = vadd.f32 0.0, %v2273
        %2275 = vmatprep.mubr.bf16.mxu0 %v817
        %2276 = vmatmul.mubr.bf16.gmra.mxu0 %v816
        %v2277 = vpop.f32.mrf.mxu0
        %v2278 = vadd.f32 0.0, %v2277
        %v2279 = vpop.f32.mrf.mxu0
        %v2280 = vadd.f32 0.0, %v2279
        %v2281 = vpop.f32.mrf.mxu0
        %v2282 = vadd.f32 0.0, %v2281
        %v2283 = vpop.f32.mrf.mxu0
        %v2284 = vadd.f32 0.0, %v2283
        %2285 = vmatprep.mubr.bf16.mxu0 %v819
        %2286 = vmatmul.mubr.bf16.gmra.mxu0 %v818
        %v2287 = vpop.f32.mrf.mxu0
        %v2288 = vadd.f32 0.0, %v2287
        %v2289 = vpop.f32.mrf.mxu0
        %v2290 = vadd.f32 0.0, %v2289
        %v2291 = vpop.f32.mrf.mxu0
        %v2292 = vadd.f32 0.0, %v2291
        %v2293 = vpop.f32.mrf.mxu0
        %v2294 = vadd.f32 0.0, %v2293
        %2295 = vmatprep.mubr.bf16.mxu0 %v821
        %2296 = vmatmul.mubr.bf16.gmra.mxu0 %v820
        %v2297 = vpop.f32.mrf.mxu0
        %v2298 = vadd.f32 0.0, %v2297
        %v2299 = vpop.f32.mrf.mxu0
        %v2300 = vadd.f32 0.0, %v2299
        %v2301 = vpop.f32.mrf.mxu0
        %v2302 = vadd.f32 0.0, %v2301
        %v2303 = vpop.f32.mrf.mxu0
        %v2304 = vadd.f32 0.0, %v2303
        %2305 = vmatprep.mubr.bf16.mxu0 %v823
        %2306 = vmatmul.mubr.bf16.gmra.mxu0 %v822
        %v2307 = vpop.f32.mrf.mxu0
        %v2308 = vadd.f32 0.0, %v2307
        %v2309 = vpop.f32.mrf.mxu0
        %v2310 = vadd.f32 0.0, %v2309
        %v2311 = vpop.f32.mrf.mxu0
        %v2312 = vadd.f32 0.0, %v2311
        %v2313 = vpop.f32.mrf.mxu0
        %v2314 = vadd.f32 0.0, %v2313
        %2315 = vmatprep.mubr.bf16.mxu0 %v825
        %2316 = vmatmul.mubr.bf16.gmra.mxu0 %v824
        %v2317 = vpop.f32.mrf.mxu0
        %v2318 = vadd.f32 0.0, %v2317
        %v2319 = vpop.f32.mrf.mxu0
        %v2320 = vadd.f32 0.0, %v2319
        %v2321 = vpop.f32.mrf.mxu0
        %v2322 = vadd.f32 0.0, %v2321
        %v2323 = vpop.f32.mrf.mxu0
        %v2324 = vadd.f32 0.0, %v2323
        %2325 = vmatprep.mubr.bf16.mxu0 %v827
        %2326 = vmatmul.mubr.bf16.gmra.mxu0 %v826
        %v2327 = vpop.f32.mrf.mxu0
        %v2328 = vadd.f32 0.0, %v2327
        %v2329 = vpop.f32.mrf.mxu0
        %v2330 = vadd.f32 0.0, %v2329
        %v2331 = vpop.f32.mrf.mxu0
        %v2332 = vadd.f32 0.0, %v2331
        %v2333 = vpop.f32.mrf.mxu0
        %v2334 = vadd.f32 0.0, %v2333
        %2335 = vmatprep.mubr.bf16.mxu0 %v829
        %2336 = vmatmul.mubr.bf16.gmra.mxu0 %v828
        %v2337 = vpop.f32.mrf.mxu0
        %v2338 = vadd.f32 0.0, %v2337
        %v2339 = vpop.f32.mrf.mxu0
        %v2340 = vadd.f32 0.0, %v2339
        %v2341 = vpop.f32.mrf.mxu0
        %v2342 = vadd.f32 0.0, %v2341
        %v2343 = vpop.f32.mrf.mxu0
        %v2344 = vadd.f32 0.0, %v2343
        %2345 = vmatprep.mubr.bf16.mxu0 %v831
        %2346 = vmatmul.mubr.bf16.gmra.mxu0 %v830
        %v2347 = vpop.f32.mrf.mxu0
        %v2348 = vadd.f32 0.0, %v2347
        %v2349 = vpop.f32.mrf.mxu0
        %v2350 = vadd.f32 0.0, %v2349
        %v2351 = vpop.f32.mrf.mxu0
        %v2352 = vadd.f32 0.0, %v2351
        %v2353 = vpop.f32.mrf.mxu0
        %v2354 = vadd.f32 0.0, %v2353
        %2355 = vmatprep.mubr.bf16.mxu0 %v833
        %2356 = vmatmul.mubr.bf16.gmra.mxu0 %v832
        %v2357 = vpop.f32.mrf.mxu0
        %v2358 = vadd.f32 0.0, %v2357
        %v2359 = vpop.f32.mrf.mxu0
        %v2360 = vadd.f32 0.0, %v2359
        %v2361 = vpop.f32.mrf.mxu0
        %v2362 = vadd.f32 0.0, %v2361
        %v2363 = vpop.f32.mrf.mxu0
        %v2364 = vadd.f32 0.0, %v2363
        %2365 = vmatprep.mubr.bf16.mxu0 %v835
        %2366 = vmatmul.mubr.bf16.gmra.mxu0 %v834
        %v2367 = vpop.f32.mrf.mxu0
        %v2368 = vadd.f32 0.0, %v2367
        %v2369 = vpop.f32.mrf.mxu0
        %v2370 = vadd.f32 0.0, %v2369
        %v2371 = vpop.f32.mrf.mxu0
        %v2372 = vadd.f32 0.0, %v2371
        %v2373 = vpop.f32.mrf.mxu0
        %v2374 = vadd.f32 0.0, %v2373
        %2375 = vdwg.mxu0
        %v2376 = vld [vmem:[%s549] sm:$0xff]
        %v2377 = vld [vmem:[%s549 + $0x8] sm:$0xff]
        %v2378 = vld [vmem:[%s549 + $0x10] sm:$0xff]
        %v2379 = vld [vmem:[%s549 + $0x18] sm:$0xff]
        %v2380 = vld [vmem:[%s549 + $0x20] sm:$0xff]
        %v2381 = vld [vmem:[%s549 + $0x28] sm:$0xff]
        %v2382 = vld [vmem:[%s549 + $0x30] sm:$0xff]
        %v2383 = vld [vmem:[%s549 + $0x38] sm:$0xff]
        %v2384 = vld [vmem:[%s549 + $0x40] sm:$0xff]
        %v2385 = vld [vmem:[%s549 + $0x48] sm:$0xff]
        %v2386 = vld [vmem:[%s549 + $0x50] sm:$0xff]
        %v2387 = vld [vmem:[%s549 + $0x58] sm:$0xff]
        %v2388 = vld [vmem:[%s549 + $0x60] sm:$0xff]
        %v2389 = vld [vmem:[%s549 + $0x68] sm:$0xff]
        %v2390 = vld [vmem:[%s549 + $0x70] sm:$0xff]
        %v2391 = vld [vmem:[%s549 + $0x78] sm:$0xff]
        %v2392 = vld [vmem:[%s549 + $0x80] sm:$0xff]
        %v2393 = vld [vmem:[%s549 + $0x88] sm:$0xff]
        %v2394 = vld [vmem:[%s549 + $0x90] sm:$0xff]
        %v2395 = vld [vmem:[%s549 + $0x98] sm:$0xff]
        %v2396 = vld [vmem:[%s549 + $0xa0] sm:$0xff]
        %v2397 = vld [vmem:[%s549 + $0xa8] sm:$0xff]
        %v2398 = vld [vmem:[%s549 + $0xb0] sm:$0xff]
        %v2399 = vld [vmem:[%s549 + $0xb8] sm:$0xff]
        %v2400 = vld [vmem:[%s549 + $0xc0] sm:$0xff]
        %v2401 = vld [vmem:[%s549 + $0xc8] sm:$0xff]
        %v2402 = vld [vmem:[%s549 + $0xd0] sm:$0xff]
        %v2403 = vld [vmem:[%s549 + $0xd8] sm:$0xff]
        %v2404 = vld [vmem:[%s549 + $0xe0] sm:$0xff]
        %v2405 = vld [vmem:[%s549 + $0xe8] sm:$0xff]
        %v2406 = vld [vmem:[%s549 + $0xf0] sm:$0xff]
        %v2407 = vld [vmem:[%s549 + $0xf8] sm:$0xff]
        %v2408 = vld [vmem:[%s549 + $0x100] sm:$0xff]
        %v2409 = vld [vmem:[%s549 + $0x108] sm:$0xff]
        %v2410 = vld [vmem:[%s549 + $0x110] sm:$0xff]
        %v2411 = vld [vmem:[%s549 + $0x118] sm:$0xff]
        %v2412 = vld [vmem:[%s549 + $0x120] sm:$0xff]
        %v2413 = vld [vmem:[%s549 + $0x128] sm:$0xff]
        %v2414 = vld [vmem:[%s549 + $0x130] sm:$0xff]
        %v2415 = vld [vmem:[%s549 + $0x138] sm:$0xff]
        %v2416 = vld [vmem:[%s549 + $0x140] sm:$0xff]
        %v2417 = vld [vmem:[%s549 + $0x148] sm:$0xff]
        %v2418 = vld [vmem:[%s549 + $0x150] sm:$0xff]
        %v2419 = vld [vmem:[%s549 + $0x158] sm:$0xff]
        %v2420 = vld [vmem:[%s549 + $0x160] sm:$0xff]
        %v2421 = vld [vmem:[%s549 + $0x168] sm:$0xff]
        %v2422 = vld [vmem:[%s549 + $0x170] sm:$0xff]
        %v2423 = vld [vmem:[%s549 + $0x178] sm:$0xff]
        %v2424 = vld [vmem:[%s549 + $0x180] sm:$0xff]
        %v2425 = vld [vmem:[%s549 + $0x188] sm:$0xff]
        %v2426 = vld [vmem:[%s549 + $0x190] sm:$0xff]
        %v2427 = vld [vmem:[%s549 + $0x198] sm:$0xff]
        %v2428 = vld [vmem:[%s549 + $0x1a0] sm:$0xff]
        %v2429 = vld [vmem:[%s549 + $0x1a8] sm:$0xff]
        %v2430 = vld [vmem:[%s549 + $0x1b0] sm:$0xff]
        %v2431 = vld [vmem:[%s549 + $0x1b8] sm:$0xff]
        %v2432 = vld [vmem:[%s549 + $0x1c0] sm:$0xff]
        %v2433 = vld [vmem:[%s549 + $0x1c8] sm:$0xff]
        %v2434 = vld [vmem:[%s549 + $0x1d0] sm:$0xff]
        %v2435 = vld [vmem:[%s549 + $0x1d8] sm:$0xff]
        %v2436 = vld [vmem:[%s549 + $0x1e0] sm:$0xff]
        %v2437 = vld [vmem:[%s549 + $0x1e8] sm:$0xff]
        %v2438 = vld [vmem:[%s549 + $0x1f0] sm:$0xff]
        %v2439 = vld [vmem:[%s549 + $0x1f8] sm:$0xff]
        %v2440 = vld [vmem:[%s558] sm:$0xff]
        %v2441 = vld [vmem:[%s558 + $0x8] sm:$0xff]
        %v2442 = vld [vmem:[%s558 + $0x10] sm:$0xff]
        %v2443 = vld [vmem:[%s558 + $0x18] sm:$0xff]
        %v2444 = vld [vmem:[%s558 + $0x20] sm:$0xff]
        %v2445 = vld [vmem:[%s558 + $0x28] sm:$0xff]
        %v2446 = vld [vmem:[%s558 + $0x30] sm:$0xff]
        %v2447 = vld [vmem:[%s558 + $0x38] sm:$0xff]
        %v2448 = vld [vmem:[%s558 + $0x40] sm:$0xff]
        %v2449 = vld [vmem:[%s558 + $0x48] sm:$0xff]
        %v2450 = vld [vmem:[%s558 + $0x50] sm:$0xff]
        %v2451 = vld [vmem:[%s558 + $0x58] sm:$0xff]
        %v2452 = vld [vmem:[%s558 + $0x60] sm:$0xff]
        %v2453 = vld [vmem:[%s558 + $0x68] sm:$0xff]
        %v2454 = vld [vmem:[%s558 + $0x70] sm:$0xff]
        %v2455 = vld [vmem:[%s558 + $0x78] sm:$0xff]
        %v2456 = vld [vmem:[%s558 + $0x80] sm:$0xff]
        %v2457 = vld [vmem:[%s558 + $0x88] sm:$0xff]
        %v2458 = vld [vmem:[%s558 + $0x90] sm:$0xff]
        %v2459 = vld [vmem:[%s558 + $0x98] sm:$0xff]
        %v2460 = vld [vmem:[%s558 + $0xa0] sm:$0xff]
        %v2461 = vld [vmem:[%s558 + $0xa8] sm:$0xff]
        %v2462 = vld [vmem:[%s558 + $0xb0] sm:$0xff]
        %v2463 = vld [vmem:[%s558 + $0xb8] sm:$0xff]
        %v2464 = vld [vmem:[%s558 + $0xc0] sm:$0xff]
        %v2465 = vld [vmem:[%s558 + $0xc8] sm:$0xff]
        %v2466 = vld [vmem:[%s558 + $0xd0] sm:$0xff]
        %v2467 = vld [vmem:[%s558 + $0xd8] sm:$0xff]
        %v2468 = vld [vmem:[%s558 + $0xe0] sm:$0xff]
        %v2469 = vld [vmem:[%s558 + $0xe8] sm:$0xff]
        %v2470 = vld [vmem:[%s558 + $0xf0] sm:$0xff]
        %v2471 = vld [vmem:[%s558 + $0xf8] sm:$0xff]
        %v2472 = vld [vmem:[%s558 + $0x100] sm:$0xff]
        %v2473 = vld [vmem:[%s558 + $0x108] sm:$0xff]
        %v2474 = vld [vmem:[%s558 + $0x110] sm:$0xff]
        %v2475 = vld [vmem:[%s558 + $0x118] sm:$0xff]
        %v2476 = vld [vmem:[%s558 + $0x120] sm:$0xff]
        %v2477 = vld [vmem:[%s558 + $0x128] sm:$0xff]
        %v2478 = vld [vmem:[%s558 + $0x130] sm:$0xff]
        %v2479 = vld [vmem:[%s558 + $0x138] sm:$0xff]
        %v2480 = vld [vmem:[%s558 + $0x140] sm:$0xff]
        %v2481 = vld [vmem:[%s558 + $0x148] sm:$0xff]
        %v2482 = vld [vmem:[%s558 + $0x150] sm:$0xff]
        %v2483 = vld [vmem:[%s558 + $0x158] sm:$0xff]
        %v2484 = vld [vmem:[%s558 + $0x160] sm:$0xff]
        %v2485 = vld [vmem:[%s558 + $0x168] sm:$0xff]
        %v2486 = vld [vmem:[%s558 + $0x170] sm:$0xff]
        %v2487 = vld [vmem:[%s558 + $0x178] sm:$0xff]
        %v2488 = vld [vmem:[%s558 + $0x180] sm:$0xff]
        %v2489 = vld [vmem:[%s558 + $0x188] sm:$0xff]
        %v2490 = vld [vmem:[%s558 + $0x190] sm:$0xff]
        %v2491 = vld [vmem:[%s558 + $0x198] sm:$0xff]
        %v2492 = vld [vmem:[%s558 + $0x1a0] sm:$0xff]
        %v2493 = vld [vmem:[%s558 + $0x1a8] sm:$0xff]
        %v2494 = vld [vmem:[%s558 + $0x1b0] sm:$0xff]
        %v2495 = vld [vmem:[%s558 + $0x1b8] sm:$0xff]
        %v2496 = vld [vmem:[%s558 + $0x1c0] sm:$0xff]
        %v2497 = vld [vmem:[%s558 + $0x1c8] sm:$0xff]
        %v2498 = vld [vmem:[%s558 + $0x1d0] sm:$0xff]
        %v2499 = vld [vmem:[%s558 + $0x1d8] sm:$0xff]
        %v2500 = vld [vmem:[%s558 + $0x1e0] sm:$0xff]
        %v2501 = vld [vmem:[%s558 + $0x1e8] sm:$0xff]
        %v2502 = vld [vmem:[%s558 + $0x1f0] sm:$0xff]
        %v2503 = vld [vmem:[%s558 + $0x1f8] sm:$0xff]
        %v2504 = vld [vmem:[%s567] sm:$0xff]
        %v2505 = vld [vmem:[%s567 + $0x8] sm:$0xff]
        %v2506 = vld [vmem:[%s567 + $0x10] sm:$0xff]
        %v2507 = vld [vmem:[%s567 + $0x18] sm:$0xff]
        %v2508 = vld [vmem:[%s567 + $0x20] sm:$0xff]
        %v2509 = vld [vmem:[%s567 + $0x28] sm:$0xff]
        %v2510 = vld [vmem:[%s567 + $0x30] sm:$0xff]
        %v2511 = vld [vmem:[%s567 + $0x38] sm:$0xff]
        %v2512 = vld [vmem:[%s567 + $0x40] sm:$0xff]
        %v2513 = vld [vmem:[%s567 + $0x48] sm:$0xff]
        %v2514 = vld [vmem:[%s567 + $0x50] sm:$0xff]
        %v2515 = vld [vmem:[%s567 + $0x58] sm:$0xff]
        %v2516 = vld [vmem:[%s567 + $0x60] sm:$0xff]
        %v2517 = vld [vmem:[%s567 + $0x68] sm:$0xff]
        %v2518 = vld [vmem:[%s567 + $0x70] sm:$0xff]
        %v2519 = vld [vmem:[%s567 + $0x78] sm:$0xff]
        %v2520 = vld [vmem:[%s567 + $0x80] sm:$0xff]
        %v2521 = vld [vmem:[%s567 + $0x88] sm:$0xff]
        %v2522 = vld [vmem:[%s567 + $0x90] sm:$0xff]
        %v2523 = vld [vmem:[%s567 + $0x98] sm:$0xff]
        %v2524 = vld [vmem:[%s567 + $0xa0] sm:$0xff]
        %v2525 = vld [vmem:[%s567 + $0xa8] sm:$0xff]
        %v2526 = vld [vmem:[%s567 + $0xb0] sm:$0xff]
        %v2527 = vld [vmem:[%s567 + $0xb8] sm:$0xff]
        %v2528 = vld [vmem:[%s567 + $0xc0] sm:$0xff]
        %v2529 = vld [vmem:[%s567 + $0xc8] sm:$0xff]
        %v2530 = vld [vmem:[%s567 + $0xd0] sm:$0xff]
        %v2531 = vld [vmem:[%s567 + $0xd8] sm:$0xff]
        %v2532 = vld [vmem:[%s567 + $0xe0] sm:$0xff]
        %v2533 = vld [vmem:[%s567 + $0xe8] sm:$0xff]
        %v2534 = vld [vmem:[%s567 + $0xf0] sm:$0xff]
        %v2535 = vld [vmem:[%s567 + $0xf8] sm:$0xff]
        %v2536 = vld [vmem:[%s567 + $0x100] sm:$0xff]
        %v2537 = vld [vmem:[%s567 + $0x108] sm:$0xff]
        %v2538 = vld [vmem:[%s567 + $0x110] sm:$0xff]
        %v2539 = vld [vmem:[%s567 + $0x118] sm:$0xff]
        %v2540 = vld [vmem:[%s567 + $0x120] sm:$0xff]
        %v2541 = vld [vmem:[%s567 + $0x128] sm:$0xff]
        %v2542 = vld [vmem:[%s567 + $0x130] sm:$0xff]
        %v2543 = vld [vmem:[%s567 + $0x138] sm:$0xff]
        %v2544 = vld [vmem:[%s567 + $0x140] sm:$0xff]
        %v2545 = vld [vmem:[%s567 + $0x148] sm:$0xff]
        %v2546 = vld [vmem:[%s567 + $0x150] sm:$0xff]
        %v2547 = vld [vmem:[%s567 + $0x158] sm:$0xff]
        %v2548 = vld [vmem:[%s567 + $0x160] sm:$0xff]
        %v2549 = vld [vmem:[%s567 + $0x168] sm:$0xff]
        %v2550 = vld [vmem:[%s567 + $0x170] sm:$0xff]
        %v2551 = vld [vmem:[%s567 + $0x178] sm:$0xff]
        %v2552 = vld [vmem:[%s567 + $0x180] sm:$0xff]
        %v2553 = vld [vmem:[%s567 + $0x188] sm:$0xff]
        %v2554 = vld [vmem:[%s567 + $0x190] sm:$0xff]
        %v2555 = vld [vmem:[%s567 + $0x198] sm:$0xff]
        %v2556 = vld [vmem:[%s567 + $0x1a0] sm:$0xff]
        %v2557 = vld [vmem:[%s567 + $0x1a8] sm:$0xff]
        %v2558 = vld [vmem:[%s567 + $0x1b0] sm:$0xff]
        %v2559 = vld [vmem:[%s567 + $0x1b8] sm:$0xff]
        %v2560 = vld [vmem:[%s567 + $0x1c0] sm:$0xff]
        %v2561 = vld [vmem:[%s567 + $0x1c8] sm:$0xff]
        %v2562 = vld [vmem:[%s567 + $0x1d0] sm:$0xff]
        %v2563 = vld [vmem:[%s567 + $0x1d8] sm:$0xff]
        %v2564 = vld [vmem:[%s567 + $0x1e0] sm:$0xff]
        %v2565 = vld [vmem:[%s567 + $0x1e8] sm:$0xff]
        %v2566 = vld [vmem:[%s567 + $0x1f0] sm:$0xff]
        %v2567 = vld [vmem:[%s567 + $0x1f8] sm:$0xff]
        %v2568 = vmul.f32 %v1063, %v2376
        %v2569 = vmul.f32 %v1065, %v2377
        %v2570 = vmul.f32 %v1067, %v2378
        %v2571 = vmul.f32 %v1069, %v2379
        %v2572 = vmul.f32 %v1073, %v2380
        %v2573 = vmul.f32 %v1075, %v2381
        %v2574 = vmul.f32 %v1077, %v2382
        %v2575 = vmul.f32 %v1079, %v2383
        %v2576 = vmul.f32 %v1083, %v2384
        %v2577 = vmul.f32 %v1085, %v2385
        %v2578 = vmul.f32 %v1087, %v2386
        %v2579 = vmul.f32 %v1089, %v2387
        %v2580 = vmul.f32 %v1093, %v2388
        %v2581 = vmul.f32 %v1095, %v2389
        %v2582 = vmul.f32 %v1097, %v2390
        %v2583 = vmul.f32 %v1099, %v2391
        %v2584 = vmul.f32 %v1103, %v2392
        %v2585 = vmul.f32 %v1105, %v2393
        %v2586 = vmul.f32 %v1107, %v2394
        %v2587 = vmul.f32 %v1109, %v2395
        %v2588 = vmul.f32 %v1113, %v2396
        %v2589 = vmul.f32 %v1115, %v2397
        %v2590 = vmul.f32 %v1117, %v2398
        %v2591 = vmul.f32 %v1119, %v2399
        %v2592 = vmul.f32 %v1123, %v2400
        %v2593 = vmul.f32 %v1125, %v2401
        %v2594 = vmul.f32 %v1127, %v2402
        %v2595 = vmul.f32 %v1129, %v2403
        %v2596 = vmul.f32 %v1133, %v2404
        %v2597 = vmul.f32 %v1135, %v2405
        %v2598 = vmul.f32 %v1137, %v2406
        %v2599 = vmul.f32 %v1139, %v2407
        %v2600 = vmul.f32 %v1143, %v2408
        %v2601 = vmul.f32 %v1145, %v2409
        %v2602 = vmul.f32 %v1147, %v2410
        %v2603 = vmul.f32 %v1149, %v2411
        %v2604 = vmul.f32 %v1153, %v2412
        %v2605 = vmul.f32 %v1155, %v2413
        %v2606 = vmul.f32 %v1157, %v2414
        %v2607 = vmul.f32 %v1159, %v2415
        %v2608 = vmul.f32 %v1163, %v2416
        %v2609 = vmul.f32 %v1165, %v2417
        %v2610 = vmul.f32 %v1167, %v2418
        %v2611 = vmul.f32 %v1169, %v2419
        %v2612 = vmul.f32 %v1173, %v2420
        %v2613 = vmul.f32 %v1175, %v2421
        %v2614 = vmul.f32 %v1177, %v2422
        %v2615 = vmul.f32 %v1179, %v2423
        %v2616 = vmul.f32 %v1183, %v2424
        %v2617 = vmul.f32 %v1185, %v2425
        %v2618 = vmul.f32 %v1187, %v2426
        %v2619 = vmul.f32 %v1189, %v2427
        %v2620 = vmul.f32 %v1193, %v2428
        %v2621 = vmul.f32 %v1195, %v2429
        %v2622 = vmul.f32 %v1197, %v2430
        %v2623 = vmul.f32 %v1199, %v2431
        %v2624 = vmul.f32 %v1203, %v2432
        %v2625 = vmul.f32 %v1205, %v2433
        %v2626 = vmul.f32 %v1207, %v2434
        %v2627 = vmul.f32 %v1209, %v2435
        %v2628 = vmul.f32 %v1213, %v2436
        %v2629 = vmul.f32 %v1215, %v2437
        %v2630 = vmul.f32 %v1217, %v2438
        %v2631 = vmul.f32 %v1219, %v2439
        %2632 = vrot.lane.b32.xlu0 %v1063, 127
        %v2633 = vpop.permute.xlu0 %2632
        %2634 = vrot.lane.b32.xlu0 %v1067, 127
        %v2635 = vpop.permute.xlu0 %2634
        %2636 = vrot.lane.b32.xlu0 %v1073, 127
        %v2637 = vpop.permute.xlu0 %2636
        %2638 = vrot.lane.b32.xlu0 %v1077, 127
        %v2639 = vpop.permute.xlu0 %2638
        %2640 = vrot.lane.b32.xlu0 %v1083, 127
        %v2641 = vpop.permute.xlu0 %2640
        %2642 = vrot.lane.b32.xlu0 %v1087, 127
        %v2643 = vpop.permute.xlu0 %2642
        %2644 = vrot.lane.b32.xlu0 %v1093, 127
        %v2645 = vpop.permute.xlu0 %2644
        %2646 = vrot.lane.b32.xlu0 %v1097, 127
        %v2647 = vpop.permute.xlu0 %2646
        %2648 = vrot.lane.b32.xlu0 %v1103, 127
        %v2649 = vpop.permute.xlu0 %2648
        %2650 = vrot.lane.b32.xlu0 %v1107, 127
        %v2651 = vpop.permute.xlu0 %2650
        %2652 = vrot.lane.b32.xlu0 %v1113, 127
        %v2653 = vpop.permute.xlu0 %2652
        %2654 = vrot.lane.b32.xlu0 %v1117, 127
        %v2655 = vpop.permute.xlu0 %2654
        %2656 = vrot.lane.b32.xlu0 %v1123, 127
        %v2657 = vpop.permute.xlu0 %2656
        %2658 = vrot.lane.b32.xlu0 %v1127, 127
        %v2659 = vpop.permute.xlu0 %2658
        %2660 = vrot.lane.b32.xlu0 %v1133, 127
        %v2661 = vpop.permute.xlu0 %2660
        %2662 = vrot.lane.b32.xlu0 %v1137, 127
        %v2663 = vpop.permute.xlu0 %2662
        %2664 = vrot.lane.b32.xlu0 %v1143, 127
        %v2665 = vpop.permute.xlu0 %2664
        %2666 = vrot.lane.b32.xlu0 %v1147, 127
        %v2667 = vpop.permute.xlu0 %2666
        %2668 = vrot.lane.b32.xlu0 %v1153, 127
        %v2669 = vpop.permute.xlu0 %2668
        %2670 = vrot.lane.b32.xlu0 %v1157, 127
        %v2671 = vpop.permute.xlu0 %2670
        %2672 = vrot.lane.b32.xlu0 %v1163, 127
        %v2673 = vpop.permute.xlu0 %2672
        %2674 = vrot.lane.b32.xlu0 %v1167, 127
        %v2675 = vpop.permute.xlu0 %2674
        %2676 = vrot.lane.b32.xlu0 %v1173, 127
        %v2677 = vpop.permute.xlu0 %2676
        %2678 = vrot.lane.b32.xlu0 %v1177, 127
        %v2679 = vpop.permute.xlu0 %2678
        %2680 = vrot.lane.b32.xlu0 %v1183, 127
        %v2681 = vpop.permute.xlu0 %2680
        %2682 = vrot.lane.b32.xlu0 %v1187, 127
        %v2683 = vpop.permute.xlu0 %2682
        %2684 = vrot.lane.b32.xlu0 %v1193, 127
        %v2685 = vpop.permute.xlu0 %2684
        %2686 = vrot.lane.b32.xlu0 %v1197, 127
        %v2687 = vpop.permute.xlu0 %2686
        %2688 = vrot.lane.b32.xlu0 %v1203, 127
        %v2689 = vpop.permute.xlu0 %2688
        %2690 = vrot.lane.b32.xlu0 %v1207, 127
        %v2691 = vpop.permute.xlu0 %2690
        %2692 = vrot.lane.b32.xlu0 %v1213, 127
        %v2693 = vpop.permute.xlu0 %2692
        %2694 = vrot.lane.b32.xlu0 %v1217, 127
        %v2695 = vpop.permute.xlu0 %2694
        %2696 = vrot.lane.b32.xlu0 %v1065, 127
        %v2697 = vpop.permute.xlu0 %2696
        %2698 = vrot.lane.b32.xlu0 %v1069, 127
        %v2699 = vpop.permute.xlu0 %2698
        %2700 = vrot.lane.b32.xlu0 %v1075, 127
        %v2701 = vpop.permute.xlu0 %2700
        %2702 = vrot.lane.b32.xlu0 %v1079, 127
        %v2703 = vpop.permute.xlu0 %2702
        %2704 = vrot.lane.b32.xlu0 %v1085, 127
        %v2705 = vpop.permute.xlu0 %2704
        %2706 = vrot.lane.b32.xlu0 %v1089, 127
        %v2707 = vpop.permute.xlu0 %2706
        %2708 = vrot.lane.b32.xlu0 %v1095, 127
        %v2709 = vpop.permute.xlu0 %2708
        %2710 = vrot.lane.b32.xlu0 %v1099, 127
        %v2711 = vpop.permute.xlu0 %2710
        %2712 = vrot.lane.b32.xlu0 %v1105, 127
        %v2713 = vpop.permute.xlu0 %2712
        %2714 = vrot.lane.b32.xlu0 %v1109, 127
        %v2715 = vpop.permute.xlu0 %2714
        %2716 = vrot.lane.b32.xlu0 %v1115, 127
        %v2717 = vpop.permute.xlu0 %2716
        %2718 = vrot.lane.b32.xlu0 %v1119, 127
        %v2719 = vpop.permute.xlu0 %2718
        %2720 = vrot.lane.b32.xlu0 %v1125, 127
        %v2721 = vpop.permute.xlu0 %2720
        %2722 = vrot.lane.b32.xlu0 %v1129, 127
        %v2723 = vpop.permute.xlu0 %2722
        %2724 = vrot.lane.b32.xlu0 %v1135, 127
        %v2725 = vpop.permute.xlu0 %2724
        %2726 = vrot.lane.b32.xlu0 %v1139, 127
        %v2727 = vpop.permute.xlu0 %2726
        %2728 = vrot.lane.b32.xlu0 %v1145, 127
        %v2729 = vpop.permute.xlu0 %2728
        %2730 = vrot.lane.b32.xlu0 %v1149, 127
        %v2731 = vpop.permute.xlu0 %2730
        %2732 = vrot.lane.b32.xlu0 %v1155, 127
        %v2733 = vpop.permute.xlu0 %2732
        %2734 = vrot.lane.b32.xlu0 %v1159, 127
        %v2735 = vpop.permute.xlu0 %2734
        %2736 = vrot.lane.b32.xlu0 %v1165, 127
        %v2737 = vpop.permute.xlu0 %2736
        %2738 = vrot.lane.b32.xlu0 %v1169, 127
        %v2739 = vpop.permute.xlu0 %2738
        %2740 = vrot.lane.b32.xlu0 %v1175, 127
        %v2741 = vpop.permute.xlu0 %2740
        %2742 = vrot.lane.b32.xlu0 %v1179, 127
        %v2743 = vpop.permute.xlu0 %2742
        %2744 = vrot.lane.b32.xlu0 %v1185, 127
        %v2745 = vpop.permute.xlu0 %2744
        %2746 = vrot.lane.b32.xlu0 %v1189, 127
        %v2747 = vpop.permute.xlu0 %2746
        %2748 = vrot.lane.b32.xlu0 %v1195, 127
        %v2749 = vpop.permute.xlu0 %2748
        %2750 = vrot.lane.b32.xlu0 %v1199, 127
        %v2751 = vpop.permute.xlu0 %2750
        %2752 = vrot.lane.b32.xlu0 %v1205, 127
        %v2753 = vpop.permute.xlu0 %2752
        %2754 = vrot.lane.b32.xlu0 %v1209, 127
        %v2755 = vpop.permute.xlu0 %2754
        %2756 = vrot.lane.b32.xlu0 %v1215, 127
        %v2757 = vpop.permute.xlu0 %2756
        %2758 = vrot.lane.b32.xlu0 %v1219, 127
        %v2759 = vpop.permute.xlu0 %2758
        %v2760 = vlaneseq
        %v2761 = vand.u32 %v2760, 127
        %vm2762 = vcmp.lt.s32.totalorder %v2761, 127
        %v2763 = vsel %vm2762, %v2633, %v2697
        %v2764 = vsel %vm2762, %v2635, %v2699
        %v2765 = vsel %vm2762, %v2637, %v2701
        %v2766 = vsel %vm2762, %v2639, %v2703
        %v2767 = vsel %vm2762, %v2641, %v2705
        %v2768 = vsel %vm2762, %v2643, %v2707
        %v2769 = vsel %vm2762, %v2645, %v2709
        %v2770 = vsel %vm2762, %v2647, %v2711
        %v2771 = vsel %vm2762, %v2649, %v2713
        %v2772 = vsel %vm2762, %v2651, %v2715
        %v2773 = vsel %vm2762, %v2653, %v2717
        %v2774 = vsel %vm2762, %v2655, %v2719
        %v2775 = vsel %vm2762, %v2657, %v2721
        %v2776 = vsel %vm2762, %v2659, %v2723
        %v2777 = vsel %vm2762, %v2661, %v2725
        %v2778 = vsel %vm2762, %v2663, %v2727
        %v2779 = vsel %vm2762, %v2665, %v2729
        %v2780 = vsel %vm2762, %v2667, %v2731
        %v2781 = vsel %vm2762, %v2669, %v2733
        %v2782 = vsel %vm2762, %v2671, %v2735
        %v2783 = vsel %vm2762, %v2673, %v2737
        %v2784 = vsel %vm2762, %v2675, %v2739
        %v2785 = vsel %vm2762, %v2677, %v2741
        %v2786 = vsel %vm2762, %v2679, %v2743
        %v2787 = vsel %vm2762, %v2681, %v2745
        %v2788 = vsel %vm2762, %v2683, %v2747
        %v2789 = vsel %vm2762, %v2685, %v2749
        %v2790 = vsel %vm2762, %v2687, %v2751
        %v2791 = vsel %vm2762, %v2689, %v2753
        %v2792 = vsel %vm2762, %v2691, %v2755
        %v2793 = vsel %vm2762, %v2693, %v2757
        %v2794 = vsel %vm2762, %v2695, %v2759
        %v2795 = vsel %vm2762, %v2697, %v2633
        %v2796 = vsel %vm2762, %v2699, %v2635
        %v2797 = vsel %vm2762, %v2701, %v2637
        %v2798 = vsel %vm2762, %v2703, %v2639
        %v2799 = vsel %vm2762, %v2705, %v2641
        %v2800 = vsel %vm2762, %v2707, %v2643
        %v2801 = vsel %vm2762, %v2709, %v2645
        %v2802 = vsel %vm2762, %v2711, %v2647
        %v2803 = vsel %vm2762, %v2713, %v2649
        %v2804 = vsel %vm2762, %v2715, %v2651
        %v2805 = vsel %vm2762, %v2717, %v2653
        %v2806 = vsel %vm2762, %v2719, %v2655
        %v2807 = vsel %vm2762, %v2721, %v2657
        %v2808 = vsel %vm2762, %v2723, %v2659
        %v2809 = vsel %vm2762, %v2725, %v2661
        %v2810 = vsel %vm2762, %v2727, %v2663
        %v2811 = vsel %vm2762, %v2729, %v2665
        %v2812 = vsel %vm2762, %v2731, %v2667
        %v2813 = vsel %vm2762, %v2733, %v2669
        %v2814 = vsel %vm2762, %v2735, %v2671
        %v2815 = vsel %vm2762, %v2737, %v2673
        %v2816 = vsel %vm2762, %v2739, %v2675
        %v2817 = vsel %vm2762, %v2741, %v2677
        %v2818 = vsel %vm2762, %v2743, %v2679
        %v2819 = vsel %vm2762, %v2745, %v2681
        %v2820 = vsel %vm2762, %v2747, %v2683
        %v2821 = vsel %vm2762, %v2749, %v2685
        %v2822 = vsel %vm2762, %v2751, %v2687
        %v2823 = vsel %vm2762, %v2753, %v2689
        %v2824 = vsel %vm2762, %v2755, %v2691
        %v2825 = vsel %vm2762, %v2757, %v2693
        %v2826 = vsel %vm2762, %v2759, %v2695
        %v2827 = vmul.f32 %v2763, %v2440
        %v2828 = vmul.f32 %v2795, %v2441
        %v2829 = vmul.f32 %v2764, %v2442
        %v2830 = vmul.f32 %v2796, %v2443
        %v2831 = vmul.f32 %v2765, %v2444
        %v2832 = vmul.f32 %v2797, %v2445
        %v2833 = vmul.f32 %v2766, %v2446
        %v2834 = vmul.f32 %v2798, %v2447
        %v2835 = vmul.f32 %v2767, %v2448
        %v2836 = vmul.f32 %v2799, %v2449
        %v2837 = vmul.f32 %v2768, %v2450
        %v2838 = vmul.f32 %v2800, %v2451
        %v2839 = vmul.f32 %v2769, %v2452
        %v2840 = vmul.f32 %v2801, %v2453
        %v2841 = vmul.f32 %v2770, %v2454
        %v2842 = vmul.f32 %v2802, %v2455
        %v2843 = vmul.f32 %v2771, %v2456
        %v2844 = vmul.f32 %v2803, %v2457
        %v2845 = vmul.f32 %v2772, %v2458
        %v2846 = vmul.f32 %v2804, %v2459
        %v2847 = vmul.f32 %v2773, %v2460
        %v2848 = vmul.f32 %v2805, %v2461
        %v2849 = vmul.f32 %v2774, %v2462
        %v2850 = vmul.f32 %v2806, %v2463
        %v2851 = vmul.f32 %v2775, %v2464
        %v2852 = vmul.f32 %v2807, %v2465
        %v2853 = vmul.f32 %v2776, %v2466
        %v2854 = vmul.f32 %v2808, %v2467
        %v2855 = vmul.f32 %v2777, %v2468
        %v2856 = vmul.f32 %v2809, %v2469
        %v2857 = vmul.f32 %v2778, %v2470
        %v2858 = vmul.f32 %v2810, %v2471
        %v2859 = vmul.f32 %v2779, %v2472
        %v2860 = vmul.f32 %v2811, %v2473
        %v2861 = vmul.f32 %v2780, %v2474
        %v2862 = vmul.f32 %v2812, %v2475
        %v2863 = vmul.f32 %v2781, %v2476
        %v2864 = vmul.f32 %v2813, %v2477
        %v2865 = vmul.f32 %v2782, %v2478
        %v2866 = vmul.f32 %v2814, %v2479
        %v2867 = vmul.f32 %v2783, %v2480
        %v2868 = vmul.f32 %v2815, %v2481
        %v2869 = vmul.f32 %v2784, %v2482
        %v2870 = vmul.f32 %v2816, %v2483
        %v2871 = vmul.f32 %v2785, %v2484
        %v2872 = vmul.f32 %v2817, %v2485
        %v2873 = vmul.f32 %v2786, %v2486
        %v2874 = vmul.f32 %v2818, %v2487
        %v2875 = vmul.f32 %v2787, %v2488
        %v2876 = vmul.f32 %v2819, %v2489
        %v2877 = vmul.f32 %v2788, %v2490
        %v2878 = vmul.f32 %v2820, %v2491
        %v2879 = vmul.f32 %v2789, %v2492
        %v2880 = vmul.f32 %v2821, %v2493
        %v2881 = vmul.f32 %v2790, %v2494
        %v2882 = vmul.f32 %v2822, %v2495
        %v2883 = vmul.f32 %v2791, %v2496
        %v2884 = vmul.f32 %v2823, %v2497
        %v2885 = vmul.f32 %v2792, %v2498
        %v2886 = vmul.f32 %v2824, %v2499
        %v2887 = vmul.f32 %v2793, %v2500
        %v2888 = vmul.f32 %v2825, %v2501
        %v2889 = vmul.f32 %v2794, %v2502
        %v2890 = vmul.f32 %v2826, %v2503
        %v2891 = vadd.f32 %v2568, %v2827
        %v2892 = vadd.f32 %v2569, %v2828
        %v2893 = vadd.f32 %v2570, %v2829
        %v2894 = vadd.f32 %v2571, %v2830
        %v2895 = vadd.f32 %v2572, %v2831
        %v2896 = vadd.f32 %v2573, %v2832
        %v2897 = vadd.f32 %v2574, %v2833
        %v2898 = vadd.f32 %v2575, %v2834
        %v2899 = vadd.f32 %v2576, %v2835
        %v2900 = vadd.f32 %v2577, %v2836
        %v2901 = vadd.f32 %v2578, %v2837
        %v2902 = vadd.f32 %v2579, %v2838
        %v2903 = vadd.f32 %v2580, %v2839
        %v2904 = vadd.f32 %v2581, %v2840
        %v2905 = vadd.f32 %v2582, %v2841
        %v2906 = vadd.f32 %v2583, %v2842
        %v2907 = vadd.f32 %v2584, %v2843
        %v2908 = vadd.f32 %v2585, %v2844
        %v2909 = vadd.f32 %v2586, %v2845
        %v2910 = vadd.f32 %v2587, %v2846
        %v2911 = vadd.f32 %v2588, %v2847
        %v2912 = vadd.f32 %v2589, %v2848
        %v2913 = vadd.f32 %v2590, %v2849
        %v2914 = vadd.f32 %v2591, %v2850
        %v2915 = vadd.f32 %v2592, %v2851
        %v2916 = vadd.f32 %v2593, %v2852
        %v2917 = vadd.f32 %v2594, %v2853
        %v2918 = vadd.f32 %v2595, %v2854
        %v2919 = vadd.f32 %v2596, %v2855
        %v2920 = vadd.f32 %v2597, %v2856
        %v2921 = vadd.f32 %v2598, %v2857
        %v2922 = vadd.f32 %v2599, %v2858
        %v2923 = vadd.f32 %v2600, %v2859
        %v2924 = vadd.f32 %v2601, %v2860
        %v2925 = vadd.f32 %v2602, %v2861
        %v2926 = vadd.f32 %v2603, %v2862
        %v2927 = vadd.f32 %v2604, %v2863
        %v2928 = vadd.f32 %v2605, %v2864
        %v2929 = vadd.f32 %v2606, %v2865
        %v2930 = vadd.f32 %v2607, %v2866
        %v2931 = vadd.f32 %v2608, %v2867
        %v2932 = vadd.f32 %v2609, %v2868
        %v2933 = vadd.f32 %v2610, %v2869
        %v2934 = vadd.f32 %v2611, %v2870
        %v2935 = vadd.f32 %v2612, %v2871
        %v2936 = vadd.f32 %v2613, %v2872
        %v2937 = vadd.f32 %v2614, %v2873
        %v2938 = vadd.f32 %v2615, %v2874
        %v2939 = vadd.f32 %v2616, %v2875
        %v2940 = vadd.f32 %v2617, %v2876
        %v2941 = vadd.f32 %v2618, %v2877
        %v2942 = vadd.f32 %v2619, %v2878
        %v2943 = vadd.f32 %v2620, %v2879
        %v2944 = vadd.f32 %v2621, %v2880
        %v2945 = vadd.f32 %v2622, %v2881
        %v2946 = vadd.f32 %v2623, %v2882
        %v2947 = vadd.f32 %v2624, %v2883
        %v2948 = vadd.f32 %v2625, %v2884
        %v2949 = vadd.f32 %v2626, %v2885
        %v2950 = vadd.f32 %v2627, %v2886
        %v2951 = vadd.f32 %v2628, %v2887
        %v2952 = vadd.f32 %v2629, %v2888
        %v2953 = vadd.f32 %v2630, %v2889
        %v2954 = vadd.f32 %v2631, %v2890
        %2955 = vrot.lane.b32.xlu0 %v1063, 1
        %v2956 = vpop.permute.xlu0 %2955
        %2957 = vrot.lane.b32.xlu0 %v1067, 1
        %v2958 = vpop.permute.xlu0 %2957
        %2959 = vrot.lane.b32.xlu0 %v1073, 1
        %v2960 = vpop.permute.xlu0 %2959
        %2961 = vrot.lane.b32.xlu0 %v1077, 1
        %v2962 = vpop.permute.xlu0 %2961
        %2963 = vrot.lane.b32.xlu0 %v1083, 1
        %v2964 = vpop.permute.xlu0 %2963
        %2965 = vrot.lane.b32.xlu0 %v1087, 1
        %v2966 = vpop.permute.xlu0 %2965
        %2967 = vrot.lane.b32.xlu0 %v1093, 1
        %v2968 = vpop.permute.xlu0 %2967
        %2969 = vrot.lane.b32.xlu0 %v1097, 1
        %v2970 = vpop.permute.xlu0 %2969
        %2971 = vrot.lane.b32.xlu0 %v1103, 1
        %v2972 = vpop.permute.xlu0 %2971
        %2973 = vrot.lane.b32.xlu0 %v1107, 1
        %v2974 = vpop.permute.xlu0 %2973
        %2975 = vrot.lane.b32.xlu0 %v1113, 1
        %v2976 = vpop.permute.xlu0 %2975
        %2977 = vrot.lane.b32.xlu0 %v1117, 1
        %v2978 = vpop.permute.xlu0 %2977
        %2979 = vrot.lane.b32.xlu0 %v1123, 1
        %v2980 = vpop.permute.xlu0 %2979
        %2981 = vrot.lane.b32.xlu0 %v1127, 1
        %v2982 = vpop.permute.xlu0 %2981
        %2983 = vrot.lane.b32.xlu0 %v1133, 1
        %v2984 = vpop.permute.xlu0 %2983
        %2985 = vrot.lane.b32.xlu0 %v1137, 1
        %v2986 = vpop.permute.xlu0 %2985
        %2987 = vrot.lane.b32.xlu0 %v1143, 1
        %v2988 = vpop.permute.xlu0 %2987
        %2989 = vrot.lane.b32.xlu0 %v1147, 1
        %v2990 = vpop.permute.xlu0 %2989
        %2991 = vrot.lane.b32.xlu0 %v1153, 1
        %v2992 = vpop.permute.xlu0 %2991
        %2993 = vrot.lane.b32.xlu0 %v1157, 1
        %v2994 = vpop.permute.xlu0 %2993
        %2995 = vrot.lane.b32.xlu0 %v1163, 1
        %v2996 = vpop.permute.xlu0 %2995
        %2997 = vrot.lane.b32.xlu0 %v1167, 1
        %v2998 = vpop.permute.xlu0 %2997
        %2999 = vrot.lane.b32.xlu0 %v1173, 1
        %v3000 = vpop.permute.xlu0 %2999
        %3001 = vrot.lane.b32.xlu0 %v1177, 1
        %v3002 = vpop.permute.xlu0 %3001
        %3003 = vrot.lane.b32.xlu0 %v1183, 1
        %v3004 = vpop.permute.xlu0 %3003
        %3005 = vrot.lane.b32.xlu0 %v1187, 1
        %v3006 = vpop.permute.xlu0 %3005
        %3007 = vrot.lane.b32.xlu0 %v1193, 1
        %v3008 = vpop.permute.xlu0 %3007
        %3009 = vrot.lane.b32.xlu0 %v1197, 1
        %v3010 = vpop.permute.xlu0 %3009
        %3011 = vrot.lane.b32.xlu0 %v1203, 1
        %v3012 = vpop.permute.xlu0 %3011
        %3013 = vrot.lane.b32.xlu0 %v1207, 1
        %v3014 = vpop.permute.xlu0 %3013
        %3015 = vrot.lane.b32.xlu0 %v1213, 1
        %v3016 = vpop.permute.xlu0 %3015
        %3017 = vrot.lane.b32.xlu0 %v1217, 1
        %v3018 = vpop.permute.xlu0 %3017
        %3019 = vrot.lane.b32.xlu0 %v1065, 1
        %v3020 = vpop.permute.xlu0 %3019
        %3021 = vrot.lane.b32.xlu0 %v1069, 1
        %v3022 = vpop.permute.xlu0 %3021
        %3023 = vrot.lane.b32.xlu0 %v1075, 1
        %v3024 = vpop.permute.xlu0 %3023
        %3025 = vrot.lane.b32.xlu0 %v1079, 1
        %v3026 = vpop.permute.xlu0 %3025
        %3027 = vrot.lane.b32.xlu0 %v1085, 1
        %v3028 = vpop.permute.xlu0 %3027
        %3029 = vrot.lane.b32.xlu0 %v1089, 1
        %v3030 = vpop.permute.xlu0 %3029
        %3031 = vrot.lane.b32.xlu0 %v1095, 1
        %v3032 = vpop.permute.xlu0 %3031
        %3033 = vrot.lane.b32.xlu0 %v1099, 1
        %v3034 = vpop.permute.xlu0 %3033
        %3035 = vrot.lane.b32.xlu0 %v1105, 1
        %v3036 = vpop.permute.xlu0 %3035
        %3037 = vrot.lane.b32.xlu0 %v1109, 1
        %v3038 = vpop.permute.xlu0 %3037
        %3039 = vrot.lane.b32.xlu0 %v1115, 1
        %v3040 = vpop.permute.xlu0 %3039
        %3041 = vrot.lane.b32.xlu0 %v1119, 1
        %v3042 = vpop.permute.xlu0 %3041
        %3043 = vrot.lane.b32.xlu0 %v1125, 1
        %v3044 = vpop.permute.xlu0 %3043
        %3045 = vrot.lane.b32.xlu0 %v1129, 1
        %v3046 = vpop.permute.xlu0 %3045
        %3047 = vrot.lane.b32.xlu0 %v1135, 1
        %v3048 = vpop.permute.xlu0 %3047
        %3049 = vrot.lane.b32.xlu0 %v1139, 1
        %v3050 = vpop.permute.xlu0 %3049
        %3051 = vrot.lane.b32.xlu0 %v1145, 1
        %v3052 = vpop.permute.xlu0 %3051
        %3053 = vrot.lane.b32.xlu0 %v1149, 1
        %v3054 = vpop.permute.xlu0 %3053
        %3055 = vrot.lane.b32.xlu0 %v1155, 1
        %v3056 = vpop.permute.xlu0 %3055
        %3057 = vrot.lane.b32.xlu0 %v1159, 1
        %v3058 = vpop.permute.xlu0 %3057
        %3059 = vrot.lane.b32.xlu0 %v1165, 1
        %v3060 = vpop.permute.xlu0 %3059
        %3061 = vrot.lane.b32.xlu0 %v1169, 1
        %v3062 = vpop.permute.xlu0 %3061
        %3063 = vrot.lane.b32.xlu0 %v1175, 1
        %v3064 = vpop.permute.xlu0 %3063
        %3065 = vrot.lane.b32.xlu0 %v1179, 1
        %v3066 = vpop.permute.xlu0 %3065
        %3067 = vrot.lane.b32.xlu0 %v1185, 1
        %v3068 = vpop.permute.xlu0 %3067
        %3069 = vrot.lane.b32.xlu0 %v1189, 1
        %v3070 = vpop.permute.xlu0 %3069
        %3071 = vrot.lane.b32.xlu0 %v1195, 1
        %v3072 = vpop.permute.xlu0 %3071
        %3073 = vrot.lane.b32.xlu0 %v1199, 1
        %v3074 = vpop.permute.xlu0 %3073
        %3075 = vrot.lane.b32.xlu0 %v1205, 1
        %v3076 = vpop.permute.xlu0 %3075
        %3077 = vrot.lane.b32.xlu0 %v1209, 1
        %v3078 = vpop.permute.xlu0 %3077
        %3079 = vrot.lane.b32.xlu0 %v1215, 1
        %v3080 = vpop.permute.xlu0 %3079
        %3081 = vrot.lane.b32.xlu0 %v1219, 1
        %v3082 = vpop.permute.xlu0 %3081
        %vm3083 = vcmp.lt.s32.totalorder %v2761, 1
        %v3084 = vsel %vm3083, %v2956, %v3020
        %v3085 = vsel %vm3083, %v2958, %v3022
        %v3086 = vsel %vm3083, %v2960, %v3024
        %v3087 = vsel %vm3083, %v2962, %v3026
        %v3088 = vsel %vm3083, %v2964, %v3028
        %v3089 = vsel %vm3083, %v2966, %v3030
        %v3090 = vsel %vm3083, %v2968, %v3032
        %v3091 = vsel %vm3083, %v2970, %v3034
        %v3092 = vsel %vm3083, %v2972, %v3036
        %v3093 = vsel %vm3083, %v2974, %v3038
        %v3094 = vsel %vm3083, %v2976, %v3040
        %v3095 = vsel %vm3083, %v2978, %v3042
        %v3096 = vsel %vm3083, %v2980, %v3044
        %v3097 = vsel %vm3083, %v2982, %v3046
        %v3098 = vsel %vm3083, %v2984, %v3048
        %v3099 = vsel %vm3083, %v2986, %v3050
        %v3100 = vsel %vm3083, %v2988, %v3052
        %v3101 = vsel %vm3083, %v2990, %v3054
        %v3102 = vsel %vm3083, %v2992, %v3056
        %v3103 = vsel %vm3083, %v2994, %v3058
        %v3104 = vsel %vm3083, %v2996, %v3060
        %v3105 = vsel %vm3083, %v2998, %v3062
        %v3106 = vsel %vm3083, %v3000, %v3064
        %v3107 = vsel %vm3083, %v3002, %v3066
        %v3108 = vsel %vm3083, %v3004, %v3068
        %v3109 = vsel %vm3083, %v3006, %v3070
        %v3110 = vsel %vm3083, %v3008, %v3072
        %v3111 = vsel %vm3083, %v3010, %v3074
        %v3112 = vsel %vm3083, %v3012, %v3076
        %v3113 = vsel %vm3083, %v3014, %v3078
        %v3114 = vsel %vm3083, %v3016, %v3080
        %v3115 = vsel %vm3083, %v3018, %v3082
        %v3116 = vsel %vm3083, %v3020, %v2956
        %v3117 = vsel %vm3083, %v3022, %v2958
        %v3118 = vsel %vm3083, %v3024, %v2960
        %v3119 = vsel %vm3083, %v3026, %v2962
        %v3120 = vsel %vm3083, %v3028, %v2964
        %v3121 = vsel %vm3083, %v3030, %v2966
        %v3122 = vsel %vm3083, %v3032, %v2968
        %v3123 = vsel %vm3083, %v3034, %v2970
        %v3124 = vsel %vm3083, %v3036, %v2972
        %v3125 = vsel %vm3083, %v3038, %v2974
        %v3126 = vsel %vm3083, %v3040, %v2976
        %v3127 = vsel %vm3083, %v3042, %v2978
        %v3128 = vsel %vm3083, %v3044, %v2980
        %v3129 = vsel %vm3083, %v3046, %v2982
        %v3130 = vsel %vm3083, %v3048, %v2984
        %v3131 = vsel %vm3083, %v3050, %v2986
        %v3132 = vsel %vm3083, %v3052, %v2988
        %v3133 = vsel %vm3083, %v3054, %v2990
        %v3134 = vsel %vm3083, %v3056, %v2992
        %v3135 = vsel %vm3083, %v3058, %v2994
        %v3136 = vsel %vm3083, %v3060, %v2996
        %v3137 = vsel %vm3083, %v3062, %v2998
        %v3138 = vsel %vm3083, %v3064, %v3000
        %v3139 = vsel %vm3083, %v3066, %v3002
        %v3140 = vsel %vm3083, %v3068, %v3004
        %v3141 = vsel %vm3083, %v3070, %v3006
        %v3142 = vsel %vm3083, %v3072, %v3008
        %v3143 = vsel %vm3083, %v3074, %v3010
        %v3144 = vsel %vm3083, %v3076, %v3012
        %v3145 = vsel %vm3083, %v3078, %v3014
        %v3146 = vsel %vm3083, %v3080, %v3016
        %v3147 = vsel %vm3083, %v3082, %v3018
        %v3148 = vmul.f32 %v3116, %v2504
        %v3149 = vmul.f32 %v3084, %v2505
        %v3150 = vmul.f32 %v3117, %v2506
        %v3151 = vmul.f32 %v3085, %v2507
        %v3152 = vmul.f32 %v3118, %v2508
        %v3153 = vmul.f32 %v3086, %v2509
        %v3154 = vmul.f32 %v3119, %v2510
        %v3155 = vmul.f32 %v3087, %v2511
        %v3156 = vmul.f32 %v3120, %v2512
        %v3157 = vmul.f32 %v3088, %v2513
        %v3158 = vmul.f32 %v3121, %v2514
        %v3159 = vmul.f32 %v3089, %v2515
        %v3160 = vmul.f32 %v3122, %v2516
        %v3161 = vmul.f32 %v3090, %v2517
        %v3162 = vmul.f32 %v3123, %v2518
        %v3163 = vmul.f32 %v3091, %v2519
        %v3164 = vmul.f32 %v3124, %v2520
        %v3165 = vmul.f32 %v3092, %v2521
        %v3166 = vmul.f32 %v3125, %v2522
        %v3167 = vmul.f32 %v3093, %v2523
        %v3168 = vmul.f32 %v3126, %v2524
        %v3169 = vmul.f32 %v3094, %v2525
        %v3170 = vmul.f32 %v3127, %v2526
        %v3171 = vmul.f32 %v3095, %v2527
        %v3172 = vmul.f32 %v3128, %v2528
        %v3173 = vmul.f32 %v3096, %v2529
        %v3174 = vmul.f32 %v3129, %v2530
        %v3175 = vmul.f32 %v3097, %v2531
        %v3176 = vmul.f32 %v3130, %v2532
        %v3177 = vmul.f32 %v3098, %v2533
        %v3178 = vmul.f32 %v3131, %v2534
        %v3179 = vmul.f32 %v3099, %v2535
        %v3180 = vmul.f32 %v3132, %v2536
        %v3181 = vmul.f32 %v3100, %v2537
        %v3182 = vmul.f32 %v3133, %v2538
        %v3183 = vmul.f32 %v3101, %v2539
        %v3184 = vmul.f32 %v3134, %v2540
        %v3185 = vmul.f32 %v3102, %v2541
        %v3186 = vmul.f32 %v3135, %v2542
        %v3187 = vmul.f32 %v3103, %v2543
        %v3188 = vmul.f32 %v3136, %v2544
        %v3189 = vmul.f32 %v3104, %v2545
        %v3190 = vmul.f32 %v3137, %v2546
        %v3191 = vmul.f32 %v3105, %v2547
        %v3192 = vmul.f32 %v3138, %v2548
        %v3193 = vmul.f32 %v3106, %v2549
        %v3194 = vmul.f32 %v3139, %v2550
        %v3195 = vmul.f32 %v3107, %v2551
        %v3196 = vmul.f32 %v3140, %v2552
        %v3197 = vmul.f32 %v3108, %v2553
        %v3198 = vmul.f32 %v3141, %v2554
        %v3199 = vmul.f32 %v3109, %v2555
        %v3200 = vmul.f32 %v3142, %v2556
        %v3201 = vmul.f32 %v3110, %v2557
        %v3202 = vmul.f32 %v3143, %v2558
        %v3203 = vmul.f32 %v3111, %v2559
        %v3204 = vmul.f32 %v3144, %v2560
        %v3205 = vmul.f32 %v3112, %v2561
        %v3206 = vmul.f32 %v3145, %v2562
        %v3207 = vmul.f32 %v3113, %v2563
        %v3208 = vmul.f32 %v3146, %v2564
        %v3209 = vmul.f32 %v3114, %v2565
        %v3210 = vmul.f32 %v3147, %v2566
        %v3211 = vmul.f32 %v3115, %v2567
        %v3212 = vadd.f32 %v2891, %v3148
        %v3213 = vadd.f32 %v2892, %v3149
        %v3214 = vadd.f32 %v2893, %v3150
        %v3215 = vadd.f32 %v2894, %v3151
        %v3216 = vadd.f32 %v2895, %v3152
        %v3217 = vadd.f32 %v2896, %v3153
        %v3218 = vadd.f32 %v2897, %v3154
        %v3219 = vadd.f32 %v2898, %v3155
        %v3220 = vadd.f32 %v2899, %v3156
        %v3221 = vadd.f32 %v2900, %v3157
        %v3222 = vadd.f32 %v2901, %v3158
        %v3223 = vadd.f32 %v2902, %v3159
        %v3224 = vadd.f32 %v2903, %v3160
        %v3225 = vadd.f32 %v2904, %v3161
        %v3226 = vadd.f32 %v2905, %v3162
        %v3227 = vadd.f32 %v2906, %v3163
        %v3228 = vadd.f32 %v2907, %v3164
        %v3229 = vadd.f32 %v2908, %v3165
        %v3230 = vadd.f32 %v2909, %v3166
        %v3231 = vadd.f32 %v2910, %v3167
        %v3232 = vadd.f32 %v2911, %v3168
        %v3233 = vadd.f32 %v2912, %v3169
        %v3234 = vadd.f32 %v2913, %v3170
        %v3235 = vadd.f32 %v2914, %v3171
        %v3236 = vadd.f32 %v2915, %v3172
        %v3237 = vadd.f32 %v2916, %v3173
        %v3238 = vadd.f32 %v2917, %v3174
        %v3239 = vadd.f32 %v2918, %v3175
        %v3240 = vadd.f32 %v2919, %v3176
        %v3241 = vadd.f32 %v2920, %v3177
        %v3242 = vadd.f32 %v2921, %v3178
        %v3243 = vadd.f32 %v2922, %v3179
        %v3244 = vadd.f32 %v2923, %v3180
        %v3245 = vadd.f32 %v2924, %v3181
        %v3246 = vadd.f32 %v2925, %v3182
        %v3247 = vadd.f32 %v2926, %v3183
        %v3248 = vadd.f32 %v2927, %v3184
        %v3249 = vadd.f32 %v2928, %v3185
        %v3250 = vadd.f32 %v2929, %v3186
        %v3251 = vadd.f32 %v2930, %v3187
        %v3252 = vadd.f32 %v2931, %v3188
        %v3253 = vadd.f32 %v2932, %v3189
        %v3254 = vadd.f32 %v2933, %v3190
        %v3255 = vadd.f32 %v2934, %v3191
        %v3256 = vadd.f32 %v2935, %v3192
        %v3257 = vadd.f32 %v2936, %v3193
        %v3258 = vadd.f32 %v2937, %v3194
        %v3259 = vadd.f32 %v2938, %v3195
        %v3260 = vadd.f32 %v2939, %v3196
        %v3261 = vadd.f32 %v2940, %v3197
        %v3262 = vadd.f32 %v2941, %v3198
        %v3263 = vadd.f32 %v2942, %v3199
        %v3264 = vadd.f32 %v2943, %v3200
        %v3265 = vadd.f32 %v2944, %v3201
        %v3266 = vadd.f32 %v2945, %v3202
        %v3267 = vadd.f32 %v2946, %v3203
        %v3268 = vadd.f32 %v2947, %v3204
        %v3269 = vadd.f32 %v2948, %v3205
        %v3270 = vadd.f32 %v2949, %v3206
        %v3271 = vadd.f32 %v2950, %v3207
        %v3272 = vadd.f32 %v2951, %v3208
        %v3273 = vadd.f32 %v2952, %v3209
        %v3274 = vadd.f32 %v2953, %v3210
        %v3275 = vadd.f32 %v2954, %v3211
        %v3276 = vpack.c.bf16 %v3214, %v3212
        %v3277 = vpack.c.bf16 %v3215, %v3213
        %v3278 = vpack.c.bf16 %v3218, %v3216
        %v3279 = vpack.c.bf16 %v3219, %v3217
        %v3280 = vpack.c.bf16 %v3222, %v3220
        %v3281 = vpack.c.bf16 %v3223, %v3221
        %v3282 = vpack.c.bf16 %v3226, %v3224
        %v3283 = vpack.c.bf16 %v3227, %v3225
        %v3284 = vpack.c.bf16 %v3230, %v3228
        %v3285 = vpack.c.bf16 %v3231, %v3229
        %v3286 = vpack.c.bf16 %v3234, %v3232
        %v3287 = vpack.c.bf16 %v3235, %v3233
        %v3288 = vpack.c.bf16 %v3238, %v3236
        %v3289 = vpack.c.bf16 %v3239, %v3237
        %v3290 = vpack.c.bf16 %v3242, %v3240
        %v3291 = vpack.c.bf16 %v3243, %v3241
        %v3292 = vpack.c.bf16 %v3246, %v3244
        %v3293 = vpack.c.bf16 %v3247, %v3245
        %v3294 = vpack.c.bf16 %v3250, %v3248
        %v3295 = vpack.c.bf16 %v3251, %v3249
        %v3296 = vpack.c.bf16 %v3254, %v3252
        %v3297 = vpack.c.bf16 %v3255, %v3253
        %v3298 = vpack.c.bf16 %v3258, %v3256
        %v3299 = vpack.c.bf16 %v3259, %v3257
        %v3300 = vpack.c.bf16 %v3262, %v3260
        %v3301 = vpack.c.bf16 %v3263, %v3261
        %v3302 = vpack.c.bf16 %v3266, %v3264
        %v3303 = vpack.c.bf16 %v3267, %v3265
        %v3304 = vpack.c.bf16 %v3270, %v3268
        %v3305 = vpack.c.bf16 %v3271, %v3269
        %v3306 = vpack.c.bf16 %v3274, %v3272
        %v3307 = vpack.c.bf16 %v3275, %v3273
        %v3340 = vunpack.c.l.b16 %v3276
        %v3341 = vunpack.c.l.b16 %v3277
        %v3342 = vunpack.c.h.b16 %v3276
        %v3343 = vunpack.c.h.b16 %v3277
        %v3344 = vunpack.c.l.b16 %v3278
        %v3345 = vunpack.c.l.b16 %v3279
        %v3346 = vunpack.c.h.b16 %v3278
        %v3347 = vunpack.c.h.b16 %v3279
        %v3348 = vunpack.c.l.b16 %v3280
        %v3349 = vunpack.c.l.b16 %v3281
        %v3350 = vunpack.c.h.b16 %v3280
        %v3351 = vunpack.c.h.b16 %v3281
        %v3352 = vunpack.c.l.b16 %v3282
        %v3353 = vunpack.c.l.b16 %v3283
        %v3354 = vunpack.c.h.b16 %v3282
        %v3355 = vunpack.c.h.b16 %v3283
        %v3356 = vunpack.c.l.b16 %v3284
        %v3357 = vunpack.c.l.b16 %v3285
        %v3358 = vunpack.c.h.b16 %v3284
        %v3359 = vunpack.c.h.b16 %v3285
        %v3360 = vunpack.c.l.b16 %v3286
        %v3361 = vunpack.c.l.b16 %v3287
        %v3362 = vunpack.c.h.b16 %v3286
        %v3363 = vunpack.c.h.b16 %v3287
        %v3364 = vunpack.c.l.b16 %v3288
        %v3365 = vunpack.c.l.b16 %v3289
        %v3366 = vunpack.c.h.b16 %v3288
        %v3367 = vunpack.c.h.b16 %v3289
        %v3368 = vunpack.c.l.b16 %v3290
        %v3369 = vunpack.c.l.b16 %v3291
        %v3370 = vunpack.c.h.b16 %v3290
        %v3371 = vunpack.c.h.b16 %v3291
        %v3372 = vunpack.c.l.b16 %v3292
        %v3373 = vunpack.c.l.b16 %v3293
        %v3374 = vunpack.c.h.b16 %v3292
        %v3375 = vunpack.c.h.b16 %v3293
        %v3376 = vunpack.c.l.b16 %v3294
        %v3377 = vunpack.c.l.b16 %v3295
        %v3378 = vunpack.c.h.b16 %v3294
        %v3379 = vunpack.c.h.b16 %v3295
        %v3380 = vunpack.c.l.b16 %v3296
        %v3381 = vunpack.c.l.b16 %v3297
        %v3382 = vunpack.c.h.b16 %v3296
        %v3383 = vunpack.c.h.b16 %v3297
        %v3384 = vunpack.c.l.b16 %v3298
        %v3385 = vunpack.c.l.b16 %v3299
        %v3386 = vunpack.c.h.b16 %v3298
        %v3387 = vunpack.c.h.b16 %v3299
        %v3388 = vunpack.c.l.b16 %v3300
        %v3389 = vunpack.c.l.b16 %v3301
        %v3390 = vunpack.c.h.b16 %v3300
        %v3391 = vunpack.c.h.b16 %v3301
        %v3392 = vunpack.c.l.b16 %v3302
        %v3393 = vunpack.c.l.b16 %v3303
        %v3394 = vunpack.c.h.b16 %v3302
        %v3395 = vunpack.c.h.b16 %v3303
        %v3396 = vunpack.c.l.b16 %v3304
        %v3397 = vunpack.c.l.b16 %v3305
        %v3398 = vunpack.c.h.b16 %v3304
        %v3399 = vunpack.c.h.b16 %v3305
        %v3400 = vunpack.c.l.b16 %v3306
        %v3401 = vunpack.c.l.b16 %v3307
        %v3402 = vunpack.c.h.b16 %v3306
        %v3403 = vunpack.c.h.b16 %v3307
        %v3404 = vpack.c.b16 %v3341, %v3340
        %v3405 = vpack.c.b16 %v3343, %v3342
        %v3406 = vpack.c.b16 %v3345, %v3344
        %v3407 = vpack.c.b16 %v3347, %v3346
        %v3408 = vpack.c.b16 %v3349, %v3348
        %v3409 = vpack.c.b16 %v3351, %v3350
        %v3410 = vpack.c.b16 %v3353, %v3352
        %v3411 = vpack.c.b16 %v3355, %v3354
        %v3412 = vpack.c.b16 %v3357, %v3356
        %v3413 = vpack.c.b16 %v3359, %v3358
        %v3414 = vpack.c.b16 %v3361, %v3360
        %v3415 = vpack.c.b16 %v3363, %v3362
        %v3416 = vpack.c.b16 %v3365, %v3364
        %v3417 = vpack.c.b16 %v3367, %v3366
        %v3418 = vpack.c.b16 %v3369, %v3368
        %v3419 = vpack.c.b16 %v3371, %v3370
        %v3420 = vpack.c.b16 %v3373, %v3372
        %v3421 = vpack.c.b16 %v3375, %v3374
        %v3422 = vpack.c.b16 %v3377, %v3376
        %v3423 = vpack.c.b16 %v3379, %v3378
        %v3424 = vpack.c.b16 %v3381, %v3380
        %v3425 = vpack.c.b16 %v3383, %v3382
        %v3426 = vpack.c.b16 %v3385, %v3384
        %v3427 = vpack.c.b16 %v3387, %v3386
        %v3428 = vpack.c.b16 %v3389, %v3388
        %v3429 = vpack.c.b16 %v3391, %v3390
        %v3430 = vpack.c.b16 %v3393, %v3392
        %v3431 = vpack.c.b16 %v3395, %v3394
        %v3432 = vpack.c.b16 %v3397, %v3396
        %v3433 = vpack.c.b16 %v3399, %v3398
        %v3434 = vpack.c.b16 %v3401, %v3400
        %v3435 = vpack.c.b16 %v3403, %v3402
        %3468 = vst [vmem:[%s614] sm:$0xff] %v3404
        %3469 = vst [vmem:[%s614 + $0x8] sm:$0xff] %v3405
        %3470 = vst [vmem:[%s614 + $0x10] sm:$0xff] %v3406
        %3471 = vst [vmem:[%s614 + $0x18] sm:$0xff] %v3407
        %3472 = vst [vmem:[%s614 + $0x20] sm:$0xff] %v3408
        %3473 = vst [vmem:[%s614 + $0x28] sm:$0xff] %v3409
        %3474 = vst [vmem:[%s614 + $0x30] sm:$0xff] %v3410
        %3475 = vst [vmem:[%s614 + $0x38] sm:$0xff] %v3411
        %3476 = vst [vmem:[%s614 + $0x40] sm:$0xff] %v3412
        %3477 = vst [vmem:[%s614 + $0x48] sm:$0xff] %v3413
        %3478 = vst [vmem:[%s614 + $0x50] sm:$0xff] %v3414
        %3479 = vst [vmem:[%s614 + $0x58] sm:$0xff] %v3415
        %3480 = vst [vmem:[%s614 + $0x60] sm:$0xff] %v3416
        %3481 = vst [vmem:[%s614 + $0x68] sm:$0xff] %v3417
        %3482 = vst [vmem:[%s614 + $0x70] sm:$0xff] %v3418
        %3483 = vst [vmem:[%s614 + $0x78] sm:$0xff] %v3419
        %3484 = vst [vmem:[%s614 + $0x80] sm:$0xff] %v3420
        %3485 = vst [vmem:[%s614 + $0x88] sm:$0xff] %v3421
        %3486 = vst [vmem:[%s614 + $0x90] sm:$0xff] %v3422
        %3487 = vst [vmem:[%s614 + $0x98] sm:$0xff] %v3423
        %3488 = vst [vmem:[%s614 + $0xa0] sm:$0xff] %v3424
        %3489 = vst [vmem:[%s614 + $0xa8] sm:$0xff] %v3425
        %3490 = vst [vmem:[%s614 + $0xb0] sm:$0xff] %v3426
        %3491 = vst [vmem:[%s614 + $0xb8] sm:$0xff] %v3427
        %3492 = vst [vmem:[%s614 + $0xc0] sm:$0xff] %v3428
        %3493 = vst [vmem:[%s614 + $0xc8] sm:$0xff] %v3429
        %3494 = vst [vmem:[%s614 + $0xd0] sm:$0xff] %v3430
        %3495 = vst [vmem:[%s614 + $0xd8] sm:$0xff] %v3431
        %3496 = vst [vmem:[%s614 + $0xe0] sm:$0xff] %v3432
        %3497 = vst [vmem:[%s614 + $0xe8] sm:$0xff] %v3433
        %3498 = vst [vmem:[%s614 + $0xf0] sm:$0xff] %v3434
        %3499 = vst [vmem:[%s614 + $0xf8] sm:$0xff] %v3435
        %v3500 = vmul.f32 %v1448, %v2376
        %v3501 = vmul.f32 %v1450, %v2377
        %v3502 = vmul.f32 %v1452, %v2378
        %v3503 = vmul.f32 %v1454, %v2379
        %v3504 = vmul.f32 %v1458, %v2380
        %v3505 = vmul.f32 %v1460, %v2381
        %v3506 = vmul.f32 %v1462, %v2382
        %v3507 = vmul.f32 %v1464, %v2383
        %v3508 = vmul.f32 %v1468, %v2384
        %v3509 = vmul.f32 %v1470, %v2385
        %v3510 = vmul.f32 %v1472, %v2386
        %v3511 = vmul.f32 %v1474, %v2387
        %v3512 = vmul.f32 %v1478, %v2388
        %v3513 = vmul.f32 %v1480, %v2389
        %v3514 = vmul.f32 %v1482, %v2390
        %v3515 = vmul.f32 %v1484, %v2391
        %v3516 = vmul.f32 %v1488, %v2392
        %v3517 = vmul.f32 %v1490, %v2393
        %v3518 = vmul.f32 %v1492, %v2394
        %v3519 = vmul.f32 %v1494, %v2395
        %v3520 = vmul.f32 %v1498, %v2396
        %v3521 = vmul.f32 %v1500, %v2397
        %v3522 = vmul.f32 %v1502, %v2398
        %v3523 = vmul.f32 %v1504, %v2399
        %v3524 = vmul.f32 %v1508, %v2400
        %v3525 = vmul.f32 %v1510, %v2401
        %v3526 = vmul.f32 %v1512, %v2402
        %v3527 = vmul.f32 %v1514, %v2403
        %v3528 = vmul.f32 %v1518, %v2404
        %v3529 = vmul.f32 %v1520, %v2405
        %v3530 = vmul.f32 %v1522, %v2406
        %v3531 = vmul.f32 %v1524, %v2407
        %v3532 = vmul.f32 %v1528, %v2408
        %v3533 = vmul.f32 %v1530, %v2409
        %v3534 = vmul.f32 %v1532, %v2410
        %v3535 = vmul.f32 %v1534, %v2411
        %v3536 = vmul.f32 %v1538, %v2412
        %v3537 = vmul.f32 %v1540, %v2413
        %v3538 = vmul.f32 %v1542, %v2414
        %v3539 = vmul.f32 %v1544, %v2415
        %v3540 = vmul.f32 %v1548, %v2416
        %v3541 = vmul.f32 %v1550, %v2417
        %v3542 = vmul.f32 %v1552, %v2418
        %v3543 = vmul.f32 %v1554, %v2419
        %v3544 = vmul.f32 %v1558, %v2420
        %v3545 = vmul.f32 %v1560, %v2421
        %v3546 = vmul.f32 %v1562, %v2422
        %v3547 = vmul.f32 %v1564, %v2423
        %v3548 = vmul.f32 %v1568, %v2424
        %v3549 = vmul.f32 %v1570, %v2425
        %v3550 = vmul.f32 %v1572, %v2426
        %v3551 = vmul.f32 %v1574, %v2427
        %v3552 = vmul.f32 %v1578, %v2428
        %v3553 = vmul.f32 %v1580, %v2429
        %v3554 = vmul.f32 %v1582, %v2430
        %v3555 = vmul.f32 %v1584, %v2431
        %v3556 = vmul.f32 %v1588, %v2432
        %v3557 = vmul.f32 %v1590, %v2433
        %v3558 = vmul.f32 %v1592, %v2434
        %v3559 = vmul.f32 %v1594, %v2435
        %v3560 = vmul.f32 %v1598, %v2436
        %v3561 = vmul.f32 %v1600, %v2437
        %v3562 = vmul.f32 %v1602, %v2438
        %v3563 = vmul.f32 %v1604, %v2439
        %3564 = vrot.lane.b32.xlu0 %v1448, 127
        %v3565 = vpop.permute.xlu0 %3564
        %3566 = vrot.lane.b32.xlu0 %v1452, 127
        %v3567 = vpop.permute.xlu0 %3566
        %3568 = vrot.lane.b32.xlu0 %v1458, 127
        %v3569 = vpop.permute.xlu0 %3568
        %3570 = vrot.lane.b32.xlu0 %v1462, 127
        %v3571 = vpop.permute.xlu0 %3570
        %3572 = vrot.lane.b32.xlu0 %v1468, 127
        %v3573 = vpop.permute.xlu0 %3572
        %3574 = vrot.lane.b32.xlu0 %v1472, 127
        %v3575 = vpop.permute.xlu0 %3574
        %3576 = vrot.lane.b32.xlu0 %v1478, 127
        %v3577 = vpop.permute.xlu0 %3576
        %3578 = vrot.lane.b32.xlu0 %v1482, 127
        %v3579 = vpop.permute.xlu0 %3578
        %3580 = vrot.lane.b32.xlu0 %v1488, 127
        %v3581 = vpop.permute.xlu0 %3580
        %3582 = vrot.lane.b32.xlu0 %v1492, 127
        %v3583 = vpop.permute.xlu0 %3582
        %3584 = vrot.lane.b32.xlu0 %v1498, 127
        %v3585 = vpop.permute.xlu0 %3584
        %3586 = vrot.lane.b32.xlu0 %v1502, 127
        %v3587 = vpop.permute.xlu0 %3586
        %3588 = vrot.lane.b32.xlu0 %v1508, 127
        %v3589 = vpop.permute.xlu0 %3588
        %3590 = vrot.lane.b32.xlu0 %v1512, 127
        %v3591 = vpop.permute.xlu0 %3590
        %3592 = vrot.lane.b32.xlu0 %v1518, 127
        %v3593 = vpop.permute.xlu0 %3592
        %3594 = vrot.lane.b32.xlu0 %v1522, 127
        %v3595 = vpop.permute.xlu0 %3594
        %3596 = vrot.lane.b32.xlu0 %v1528, 127
        %v3597 = vpop.permute.xlu0 %3596
        %3598 = vrot.lane.b32.xlu0 %v1532, 127
        %v3599 = vpop.permute.xlu0 %3598
        %3600 = vrot.lane.b32.xlu0 %v1538, 127
        %v3601 = vpop.permute.xlu0 %3600
        %3602 = vrot.lane.b32.xlu0 %v1542, 127
        %v3603 = vpop.permute.xlu0 %3602
        %3604 = vrot.lane.b32.xlu0 %v1548, 127
        %v3605 = vpop.permute.xlu0 %3604
        %3606 = vrot.lane.b32.xlu0 %v1552, 127
        %v3607 = vpop.permute.xlu0 %3606
        %3608 = vrot.lane.b32.xlu0 %v1558, 127
        %v3609 = vpop.permute.xlu0 %3608
        %3610 = vrot.lane.b32.xlu0 %v1562, 127
        %v3611 = vpop.permute.xlu0 %3610
        %3612 = vrot.lane.b32.xlu0 %v1568, 127
        %v3613 = vpop.permute.xlu0 %3612
        %3614 = vrot.lane.b32.xlu0 %v1572, 127
        %v3615 = vpop.permute.xlu0 %3614
        %3616 = vrot.lane.b32.xlu0 %v1578, 127
        %v3617 = vpop.permute.xlu0 %3616
        %3618 = vrot.lane.b32.xlu0 %v1582, 127
        %v3619 = vpop.permute.xlu0 %3618
        %3620 = vrot.lane.b32.xlu0 %v1588, 127
        %v3621 = vpop.permute.xlu0 %3620
        %3622 = vrot.lane.b32.xlu0 %v1592, 127
        %v3623 = vpop.permute.xlu0 %3622
        %3624 = vrot.lane.b32.xlu0 %v1598, 127
        %v3625 = vpop.permute.xlu0 %3624
        %3626 = vrot.lane.b32.xlu0 %v1602, 127
        %v3627 = vpop.permute.xlu0 %3626
        %3628 = vrot.lane.b32.xlu0 %v1450, 127
        %v3629 = vpop.permute.xlu0 %3628
        %3630 = vrot.lane.b32.xlu0 %v1454, 127
        %v3631 = vpop.permute.xlu0 %3630
        %3632 = vrot.lane.b32.xlu0 %v1460, 127
        %v3633 = vpop.permute.xlu0 %3632
        %3634 = vrot.lane.b32.xlu0 %v1464, 127
        %v3635 = vpop.permute.xlu0 %3634
        %3636 = vrot.lane.b32.xlu0 %v1470, 127
        %v3637 = vpop.permute.xlu0 %3636
        %3638 = vrot.lane.b32.xlu0 %v1474, 127
        %v3639 = vpop.permute.xlu0 %3638
        %3640 = vrot.lane.b32.xlu0 %v1480, 127
        %v3641 = vpop.permute.xlu0 %3640
        %3642 = vrot.lane.b32.xlu0 %v1484, 127
        %v3643 = vpop.permute.xlu0 %3642
        %3644 = vrot.lane.b32.xlu0 %v1490, 127
        %v3645 = vpop.permute.xlu0 %3644
        %3646 = vrot.lane.b32.xlu0 %v1494, 127
        %v3647 = vpop.permute.xlu0 %3646
        %3648 = vrot.lane.b32.xlu0 %v1500, 127
        %v3649 = vpop.permute.xlu0 %3648
        %3650 = vrot.lane.b32.xlu0 %v1504, 127
        %v3651 = vpop.permute.xlu0 %3650
        %3652 = vrot.lane.b32.xlu0 %v1510, 127
        %v3653 = vpop.permute.xlu0 %3652
        %3654 = vrot.lane.b32.xlu0 %v1514, 127
        %v3655 = vpop.permute.xlu0 %3654
        %3656 = vrot.lane.b32.xlu0 %v1520, 127
        %v3657 = vpop.permute.xlu0 %3656
        %3658 = vrot.lane.b32.xlu0 %v1524, 127
        %v3659 = vpop.permute.xlu0 %3658
        %3660 = vrot.lane.b32.xlu0 %v1530, 127
        %v3661 = vpop.permute.xlu0 %3660
        %3662 = vrot.lane.b32.xlu0 %v1534, 127
        %v3663 = vpop.permute.xlu0 %3662
        %3664 = vrot.lane.b32.xlu0 %v1540, 127
        %v3665 = vpop.permute.xlu0 %3664
        %3666 = vrot.lane.b32.xlu0 %v1544, 127
        %v3667 = vpop.permute.xlu0 %3666
        %3668 = vrot.lane.b32.xlu0 %v1550, 127
        %v3669 = vpop.permute.xlu0 %3668
        %3670 = vrot.lane.b32.xlu0 %v1554, 127
        %v3671 = vpop.permute.xlu0 %3670
        %3672 = vrot.lane.b32.xlu0 %v1560, 127
        %v3673 = vpop.permute.xlu0 %3672
        %3674 = vrot.lane.b32.xlu0 %v1564, 127
        %v3675 = vpop.permute.xlu0 %3674
        %3676 = vrot.lane.b32.xlu0 %v1570, 127
        %v3677 = vpop.permute.xlu0 %3676
        %3678 = vrot.lane.b32.xlu0 %v1574, 127
        %v3679 = vpop.permute.xlu0 %3678
        %3680 = vrot.lane.b32.xlu0 %v1580, 127
        %v3681 = vpop.permute.xlu0 %3680
        %3682 = vrot.lane.b32.xlu0 %v1584, 127
        %v3683 = vpop.permute.xlu0 %3682
        %3684 = vrot.lane.b32.xlu0 %v1590, 127
        %v3685 = vpop.permute.xlu0 %3684
        %3686 = vrot.lane.b32.xlu0 %v1594, 127
        %v3687 = vpop.permute.xlu0 %3686
        %3688 = vrot.lane.b32.xlu0 %v1600, 127
        %v3689 = vpop.permute.xlu0 %3688
        %3690 = vrot.lane.b32.xlu0 %v1604, 127
        %v3691 = vpop.permute.xlu0 %3690
        %v3692 = vsel %vm2762, %v3565, %v3629
        %v3693 = vsel %vm2762, %v3567, %v3631
        %v3694 = vsel %vm2762, %v3569, %v3633
        %v3695 = vsel %vm2762, %v3571, %v3635
        %v3696 = vsel %vm2762, %v3573, %v3637
        %v3697 = vsel %vm2762, %v3575, %v3639
        %v3698 = vsel %vm2762, %v3577, %v3641
        %v3699 = vsel %vm2762, %v3579, %v3643
        %v3700 = vsel %vm2762, %v3581, %v3645
        %v3701 = vsel %vm2762, %v3583, %v3647
        %v3702 = vsel %vm2762, %v3585, %v3649
        %v3703 = vsel %vm2762, %v3587, %v3651
        %v3704 = vsel %vm2762, %v3589, %v3653
        %v3705 = vsel %vm2762, %v3591, %v3655
        %v3706 = vsel %vm2762, %v3593, %v3657
        %v3707 = vsel %vm2762, %v3595, %v3659
        %v3708 = vsel %vm2762, %v3597, %v3661
        %v3709 = vsel %vm2762, %v3599, %v3663
        %v3710 = vsel %vm2762, %v3601, %v3665
        %v3711 = vsel %vm2762, %v3603, %v3667
        %v3712 = vsel %vm2762, %v3605, %v3669
        %v3713 = vsel %vm2762, %v3607, %v3671
        %v3714 = vsel %vm2762, %v3609, %v3673
        %v3715 = vsel %vm2762, %v3611, %v3675
        %v3716 = vsel %vm2762, %v3613, %v3677
        %v3717 = vsel %vm2762, %v3615, %v3679
        %v3718 = vsel %vm2762, %v3617, %v3681
        %v3719 = vsel %vm2762, %v3619, %v3683
        %v3720 = vsel %vm2762, %v3621, %v3685
        %v3721 = vsel %vm2762, %v3623, %v3687
        %v3722 = vsel %vm2762, %v3625, %v3689
        %v3723 = vsel %vm2762, %v3627, %v3691
        %v3724 = vsel %vm2762, %v3629, %v3565
        %v3725 = vsel %vm2762, %v3631, %v3567
        %v3726 = vsel %vm2762, %v3633, %v3569
        %v3727 = vsel %vm2762, %v3635, %v3571
        %v3728 = vsel %vm2762, %v3637, %v3573
        %v3729 = vsel %vm2762, %v3639, %v3575
        %v3730 = vsel %vm2762, %v3641, %v3577
        %v3731 = vsel %vm2762, %v3643, %v3579
        %v3732 = vsel %vm2762, %v3645, %v3581
        %v3733 = vsel %vm2762, %v3647, %v3583
        %v3734 = vsel %vm2762, %v3649, %v3585
        %v3735 = vsel %vm2762, %v3651, %v3587
        %v3736 = vsel %vm2762, %v3653, %v3589
        %v3737 = vsel %vm2762, %v3655, %v3591
        %v3738 = vsel %vm2762, %v3657, %v3593
        %v3739 = vsel %vm2762, %v3659, %v3595
        %v3740 = vsel %vm2762, %v3661, %v3597
        %v3741 = vsel %vm2762, %v3663, %v3599
        %v3742 = vsel %vm2762, %v3665, %v3601
        %v3743 = vsel %vm2762, %v3667, %v3603
        %v3744 = vsel %vm2762, %v3669, %v3605
        %v3745 = vsel %vm2762, %v3671, %v3607
        %v3746 = vsel %vm2762, %v3673, %v3609
        %v3747 = vsel %vm2762, %v3675, %v3611
        %v3748 = vsel %vm2762, %v3677, %v3613
        %v3749 = vsel %vm2762, %v3679, %v3615
        %v3750 = vsel %vm2762, %v3681, %v3617
        %v3751 = vsel %vm2762, %v3683, %v3619
        %v3752 = vsel %vm2762, %v3685, %v3621
        %v3753 = vsel %vm2762, %v3687, %v3623
        %v3754 = vsel %vm2762, %v3689, %v3625
        %v3755 = vsel %vm2762, %v3691, %v3627
        %v3756 = vmul.f32 %v3692, %v2440
        %v3757 = vmul.f32 %v3724, %v2441
        %v3758 = vmul.f32 %v3693, %v2442
        %v3759 = vmul.f32 %v3725, %v2443
        %v3760 = vmul.f32 %v3694, %v2444
        %v3761 = vmul.f32 %v3726, %v2445
        %v3762 = vmul.f32 %v3695, %v2446
        %v3763 = vmul.f32 %v3727, %v2447
        %v3764 = vmul.f32 %v3696, %v2448
        %v3765 = vmul.f32 %v3728, %v2449
        %v3766 = vmul.f32 %v3697, %v2450
        %v3767 = vmul.f32 %v3729, %v2451
        %v3768 = vmul.f32 %v3698, %v2452
        %v3769 = vmul.f32 %v3730, %v2453
        %v3770 = vmul.f32 %v3699, %v2454
        %v3771 = vmul.f32 %v3731, %v2455
        %v3772 = vmul.f32 %v3700, %v2456
        %v3773 = vmul.f32 %v3732, %v2457
        %v3774 = vmul.f32 %v3701, %v2458
        %v3775 = vmul.f32 %v3733, %v2459
        %v3776 = vmul.f32 %v3702, %v2460
        %v3777 = vmul.f32 %v3734, %v2461
        %v3778 = vmul.f32 %v3703, %v2462
        %v3779 = vmul.f32 %v3735, %v2463
        %v3780 = vmul.f32 %v3704, %v2464
        %v3781 = vmul.f32 %v3736, %v2465
        %v3782 = vmul.f32 %v3705, %v2466
        %v3783 = vmul.f32 %v3737, %v2467
        %v3784 = vmul.f32 %v3706, %v2468
        %v3785 = vmul.f32 %v3738, %v2469
        %v3786 = vmul.f32 %v3707, %v2470
        %v3787 = vmul.f32 %v3739, %v2471
        %v3788 = vmul.f32 %v3708, %v2472
        %v3789 = vmul.f32 %v3740, %v2473
        %v3790 = vmul.f32 %v3709, %v2474
        %v3791 = vmul.f32 %v3741, %v2475
        %v3792 = vmul.f32 %v3710, %v2476
        %v3793 = vmul.f32 %v3742, %v2477
        %v3794 = vmul.f32 %v3711, %v2478
        %v3795 = vmul.f32 %v3743, %v2479
        %v3796 = vmul.f32 %v3712, %v2480
        %v3797 = vmul.f32 %v3744, %v2481
        %v3798 = vmul.f32 %v3713, %v2482
        %v3799 = vmul.f32 %v3745, %v2483
        %v3800 = vmul.f32 %v3714, %v2484
        %v3801 = vmul.f32 %v3746, %v2485
        %v3802 = vmul.f32 %v3715, %v2486
        %v3803 = vmul.f32 %v3747, %v2487
        %v3804 = vmul.f32 %v3716, %v2488
        %v3805 = vmul.f32 %v3748, %v2489
        %v3806 = vmul.f32 %v3717, %v2490
        %v3807 = vmul.f32 %v3749, %v2491
        %v3808 = vmul.f32 %v3718, %v2492
        %v3809 = vmul.f32 %v3750, %v2493
        %v3810 = vmul.f32 %v3719, %v2494
        %v3811 = vmul.f32 %v3751, %v2495
        %v3812 = vmul.f32 %v3720, %v2496
        %v3813 = vmul.f32 %v3752, %v2497
        %v3814 = vmul.f32 %v3721, %v2498
        %v3815 = vmul.f32 %v3753, %v2499
        %v3816 = vmul.f32 %v3722, %v2500
        %v3817 = vmul.f32 %v3754, %v2501
        %v3818 = vmul.f32 %v3723, %v2502
        %v3819 = vmul.f32 %v3755, %v2503
        %v3820 = vadd.f32 %v3500, %v3756
        %v3821 = vadd.f32 %v3501, %v3757
        %v3822 = vadd.f32 %v3502, %v3758
        %v3823 = vadd.f32 %v3503, %v3759
        %v3824 = vadd.f32 %v3504, %v3760
        %v3825 = vadd.f32 %v3505, %v3761
        %v3826 = vadd.f32 %v3506, %v3762
        %v3827 = vadd.f32 %v3507, %v3763
        %v3828 = vadd.f32 %v3508, %v3764
        %v3829 = vadd.f32 %v3509, %v3765
        %v3830 = vadd.f32 %v3510, %v3766
        %v3831 = vadd.f32 %v3511, %v3767
        %v3832 = vadd.f32 %v3512, %v3768
        %v3833 = vadd.f32 %v3513, %v3769
        %v3834 = vadd.f32 %v3514, %v3770
        %v3835 = vadd.f32 %v3515, %v3771
        %v3836 = vadd.f32 %v3516, %v3772
        %v3837 = vadd.f32 %v3517, %v3773
        %v3838 = vadd.f32 %v3518, %v3774
        %v3839 = vadd.f32 %v3519, %v3775
        %v3840 = vadd.f32 %v3520, %v3776
        %v3841 = vadd.f32 %v3521, %v3777
        %v3842 = vadd.f32 %v3522, %v3778
        %v3843 = vadd.f32 %v3523, %v3779
        %v3844 = vadd.f32 %v3524, %v3780
        %v3845 = vadd.f32 %v3525, %v3781
        %v3846 = vadd.f32 %v3526, %v3782
        %v3847 = vadd.f32 %v3527, %v3783
        %v3848 = vadd.f32 %v3528, %v3784
        %v3849 = vadd.f32 %v3529, %v3785
        %v3850 = vadd.f32 %v3530, %v3786
        %v3851 = vadd.f32 %v3531, %v3787
        %v3852 = vadd.f32 %v3532, %v3788
        %v3853 = vadd.f32 %v3533, %v3789
        %v3854 = vadd.f32 %v3534, %v3790
        %v3855 = vadd.f32 %v3535, %v3791
        %v3856 = vadd.f32 %v3536, %v3792
        %v3857 = vadd.f32 %v3537, %v3793
        %v3858 = vadd.f32 %v3538, %v3794
        %v3859 = vadd.f32 %v3539, %v3795
        %v3860 = vadd.f32 %v3540, %v3796
        %v3861 = vadd.f32 %v3541, %v3797
        %v3862 = vadd.f32 %v3542, %v3798
        %v3863 = vadd.f32 %v3543, %v3799
        %v3864 = vadd.f32 %v3544, %v3800
        %v3865 = vadd.f32 %v3545, %v3801
        %v3866 = vadd.f32 %v3546, %v3802
        %v3867 = vadd.f32 %v3547, %v3803
        %v3868 = vadd.f32 %v3548, %v3804
        %v3869 = vadd.f32 %v3549, %v3805
        %v3870 = vadd.f32 %v3550, %v3806
        %v3871 = vadd.f32 %v3551, %v3807
        %v3872 = vadd.f32 %v3552, %v3808
        %v3873 = vadd.f32 %v3553, %v3809
        %v3874 = vadd.f32 %v3554, %v3810
        %v3875 = vadd.f32 %v3555, %v3811
        %v3876 = vadd.f32 %v3556, %v3812
        %v3877 = vadd.f32 %v3557, %v3813
        %v3878 = vadd.f32 %v3558, %v3814
        %v3879 = vadd.f32 %v3559, %v3815
        %v3880 = vadd.f32 %v3560, %v3816
        %v3881 = vadd.f32 %v3561, %v3817
        %v3882 = vadd.f32 %v3562, %v3818
        %v3883 = vadd.f32 %v3563, %v3819
        %3884 = vrot.lane.b32.xlu0 %v1448, 1
        %v3885 = vpop.permute.xlu0 %3884
        %3886 = vrot.lane.b32.xlu0 %v1452, 1
        %v3887 = vpop.permute.xlu0 %3886
        %3888 = vrot.lane.b32.xlu0 %v1458, 1
        %v3889 = vpop.permute.xlu0 %3888
        %3890 = vrot.lane.b32.xlu0 %v1462, 1
        %v3891 = vpop.permute.xlu0 %3890
        %3892 = vrot.lane.b32.xlu0 %v1468, 1
        %v3893 = vpop.permute.xlu0 %3892
        %3894 = vrot.lane.b32.xlu0 %v1472, 1
        %v3895 = vpop.permute.xlu0 %3894
        %3896 = vrot.lane.b32.xlu0 %v1478, 1
        %v3897 = vpop.permute.xlu0 %3896
        %3898 = vrot.lane.b32.xlu0 %v1482, 1
        %v3899 = vpop.permute.xlu0 %3898
        %3900 = vrot.lane.b32.xlu0 %v1488, 1
        %v3901 = vpop.permute.xlu0 %3900
        %3902 = vrot.lane.b32.xlu0 %v1492, 1
        %v3903 = vpop.permute.xlu0 %3902
        %3904 = vrot.lane.b32.xlu0 %v1498, 1
        %v3905 = vpop.permute.xlu0 %3904
        %3906 = vrot.lane.b32.xlu0 %v1502, 1
        %v3907 = vpop.permute.xlu0 %3906
        %3908 = vrot.lane.b32.xlu0 %v1508, 1
        %v3909 = vpop.permute.xlu0 %3908
        %3910 = vrot.lane.b32.xlu0 %v1512, 1
        %v3911 = vpop.permute.xlu0 %3910
        %3912 = vrot.lane.b32.xlu0 %v1518, 1
        %v3913 = vpop.permute.xlu0 %3912
        %3914 = vrot.lane.b32.xlu0 %v1522, 1
        %v3915 = vpop.permute.xlu0 %3914
        %3916 = vrot.lane.b32.xlu0 %v1528, 1
        %v3917 = vpop.permute.xlu0 %3916
        %3918 = vrot.lane.b32.xlu0 %v1532, 1
        %v3919 = vpop.permute.xlu0 %3918
        %3920 = vrot.lane.b32.xlu0 %v1538, 1
        %v3921 = vpop.permute.xlu0 %3920
        %3922 = vrot.lane.b32.xlu0 %v1542, 1
        %v3923 = vpop.permute.xlu0 %3922
        %3924 = vrot.lane.b32.xlu0 %v1548, 1
        %v3925 = vpop.permute.xlu0 %3924
        %3926 = vrot.lane.b32.xlu0 %v1552, 1
        %v3927 = vpop.permute.xlu0 %3926
        %3928 = vrot.lane.b32.xlu0 %v1558, 1
        %v3929 = vpop.permute.xlu0 %3928
        %3930 = vrot.lane.b32.xlu0 %v1562, 1
        %v3931 = vpop.permute.xlu0 %3930
        %3932 = vrot.lane.b32.xlu0 %v1568, 1
        %v3933 = vpop.permute.xlu0 %3932
        %3934 = vrot.lane.b32.xlu0 %v1572, 1
        %v3935 = vpop.permute.xlu0 %3934
        %3936 = vrot.lane.b32.xlu0 %v1578, 1
        %v3937 = vpop.permute.xlu0 %3936
        %3938 = vrot.lane.b32.xlu0 %v1582, 1
        %v3939 = vpop.permute.xlu0 %3938
        %3940 = vrot.lane.b32.xlu0 %v1588, 1
        %v3941 = vpop.permute.xlu0 %3940
        %3942 = vrot.lane.b32.xlu0 %v1592, 1
        %v3943 = vpop.permute.xlu0 %3942
        %3944 = vrot.lane.b32.xlu0 %v1598, 1
        %v3945 = vpop.permute.xlu0 %3944
        %3946 = vrot.lane.b32.xlu0 %v1602, 1
        %v3947 = vpop.permute.xlu0 %3946
        %3948 = vrot.lane.b32.xlu0 %v1450, 1
        %v3949 = vpop.permute.xlu0 %3948
        %3950 = vrot.lane.b32.xlu0 %v1454, 1
        %v3951 = vpop.permute.xlu0 %3950
        %3952 = vrot.lane.b32.xlu0 %v1460, 1
        %v3953 = vpop.permute.xlu0 %3952
        %3954 = vrot.lane.b32.xlu0 %v1464, 1
        %v3955 = vpop.permute.xlu0 %3954
        %3956 = vrot.lane.b32.xlu0 %v1470, 1
        %v3957 = vpop.permute.xlu0 %3956
        %3958 = vrot.lane.b32.xlu0 %v1474, 1
        %v3959 = vpop.permute.xlu0 %3958
        %3960 = vrot.lane.b32.xlu0 %v1480, 1
        %v3961 = vpop.permute.xlu0 %3960
        %3962 = vrot.lane.b32.xlu0 %v1484, 1
        %v3963 = vpop.permute.xlu0 %3962
        %3964 = vrot.lane.b32.xlu0 %v1490, 1
        %v3965 = vpop.permute.xlu0 %3964
        %3966 = vrot.lane.b32.xlu0 %v1494, 1
        %v3967 = vpop.permute.xlu0 %3966
        %3968 = vrot.lane.b32.xlu0 %v1500, 1
        %v3969 = vpop.permute.xlu0 %3968
        %3970 = vrot.lane.b32.xlu0 %v1504, 1
        %v3971 = vpop.permute.xlu0 %3970
        %3972 = vrot.lane.b32.xlu0 %v1510, 1
        %v3973 = vpop.permute.xlu0 %3972
        %3974 = vrot.lane.b32.xlu0 %v1514, 1
        %v3975 = vpop.permute.xlu0 %3974
        %3976 = vrot.lane.b32.xlu0 %v1520, 1
        %v3977 = vpop.permute.xlu0 %3976
        %3978 = vrot.lane.b32.xlu0 %v1524, 1
        %v3979 = vpop.permute.xlu0 %3978
        %3980 = vrot.lane.b32.xlu0 %v1530, 1
        %v3981 = vpop.permute.xlu0 %3980
        %3982 = vrot.lane.b32.xlu0 %v1534, 1
        %v3983 = vpop.permute.xlu0 %3982
        %3984 = vrot.lane.b32.xlu0 %v1540, 1
        %v3985 = vpop.permute.xlu0 %3984
        %3986 = vrot.lane.b32.xlu0 %v1544, 1
        %v3987 = vpop.permute.xlu0 %3986
        %3988 = vrot.lane.b32.xlu0 %v1550, 1
        %v3989 = vpop.permute.xlu0 %3988
        %3990 = vrot.lane.b32.xlu0 %v1554, 1
        %v3991 = vpop.permute.xlu0 %3990
        %3992 = vrot.lane.b32.xlu0 %v1560, 1
        %v3993 = vpop.permute.xlu0 %3992
        %3994 = vrot.lane.b32.xlu0 %v1564, 1
        %v3995 = vpop.permute.xlu0 %3994
        %3996 = vrot.lane.b32.xlu0 %v1570, 1
        %v3997 = vpop.permute.xlu0 %3996
        %3998 = vrot.lane.b32.xlu0 %v1574, 1
        %v3999 = vpop.permute.xlu0 %3998
        %4000 = vrot.lane.b32.xlu0 %v1580, 1
        %v4001 = vpop.permute.xlu0 %4000
        %4002 = vrot.lane.b32.xlu0 %v1584, 1
        %v4003 = vpop.permute.xlu0 %4002
        %4004 = vrot.lane.b32.xlu0 %v1590, 1
        %v4005 = vpop.permute.xlu0 %4004
        %4006 = vrot.lane.b32.xlu0 %v1594, 1
        %v4007 = vpop.permute.xlu0 %4006
        %4008 = vrot.lane.b32.xlu0 %v1600, 1
        %v4009 = vpop.permute.xlu0 %4008
        %4010 = vrot.lane.b32.xlu0 %v1604, 1
        %v4011 = vpop.permute.xlu0 %4010
        %v4012 = vsel %vm3083, %v3885, %v3949
        %v4013 = vsel %vm3083, %v3887, %v3951
        %v4014 = vsel %vm3083, %v3889, %v3953
        %v4015 = vsel %vm3083, %v3891, %v3955
        %v4016 = vsel %vm3083, %v3893, %v3957
        %v4017 = vsel %vm3083, %v3895, %v3959
        %v4018 = vsel %vm3083, %v3897, %v3961
        %v4019 = vsel %vm3083, %v3899, %v3963
        %v4020 = vsel %vm3083, %v3901, %v3965
        %v4021 = vsel %vm3083, %v3903, %v3967
        %v4022 = vsel %vm3083, %v3905, %v3969
        %v4023 = vsel %vm3083, %v3907, %v3971
        %v4024 = vsel %vm3083, %v3909, %v3973
        %v4025 = vsel %vm3083, %v3911, %v3975
        %v4026 = vsel %vm3083, %v3913, %v3977
        %v4027 = vsel %vm3083, %v3915, %v3979
        %v4028 = vsel %vm3083, %v3917, %v3981
        %v4029 = vsel %vm3083, %v3919, %v3983
        %v4030 = vsel %vm3083, %v3921, %v3985
        %v4031 = vsel %vm3083, %v3923, %v3987
        %v4032 = vsel %vm3083, %v3925, %v3989
        %v4033 = vsel %vm3083, %v3927, %v3991
        %v4034 = vsel %vm3083, %v3929, %v3993
        %v4035 = vsel %vm3083, %v3931, %v3995
        %v4036 = vsel %vm3083, %v3933, %v3997
        %v4037 = vsel %vm3083, %v3935, %v3999
        %v4038 = vsel %vm3083, %v3937, %v4001
        %v4039 = vsel %vm3083, %v3939, %v4003
        %v4040 = vsel %vm3083, %v3941, %v4005
        %v4041 = vsel %vm3083, %v3943, %v4007
        %v4042 = vsel %vm3083, %v3945, %v4009
        %v4043 = vsel %vm3083, %v3947, %v4011
        %v4044 = vsel %vm3083, %v3949, %v3885
        %v4045 = vsel %vm3083, %v3951, %v3887
        %v4046 = vsel %vm3083, %v3953, %v3889
        %v4047 = vsel %vm3083, %v3955, %v3891
        %v4048 = vsel %vm3083, %v3957, %v3893
        %v4049 = vsel %vm3083, %v3959, %v3895
        %v4050 = vsel %vm3083, %v3961, %v3897
        %v4051 = vsel %vm3083, %v3963, %v3899
        %v4052 = vsel %vm3083, %v3965, %v3901
        %v4053 = vsel %vm3083, %v3967, %v3903
        %v4054 = vsel %vm3083, %v3969, %v3905
        %v4055 = vsel %vm3083, %v3971, %v3907
        %v4056 = vsel %vm3083, %v3973, %v3909
        %v4057 = vsel %vm3083, %v3975, %v3911
        %v4058 = vsel %vm3083, %v3977, %v3913
        %v4059 = vsel %vm3083, %v3979, %v3915
        %v4060 = vsel %vm3083, %v3981, %v3917
        %v4061 = vsel %vm3083, %v3983, %v3919
        %v4062 = vsel %vm3083, %v3985, %v3921
        %v4063 = vsel %vm3083, %v3987, %v3923
        %v4064 = vsel %vm3083, %v3989, %v3925
        %v4065 = vsel %vm3083, %v3991, %v3927
        %v4066 = vsel %vm3083, %v3993, %v3929
        %v4067 = vsel %vm3083, %v3995, %v3931
        %v4068 = vsel %vm3083, %v3997, %v3933
        %v4069 = vsel %vm3083, %v3999, %v3935
        %v4070 = vsel %vm3083, %v4001, %v3937
        %v4071 = vsel %vm3083, %v4003, %v3939
        %v4072 = vsel %vm3083, %v4005, %v3941
        %v4073 = vsel %vm3083, %v4007, %v3943
        %v4074 = vsel %vm3083, %v4009, %v3945
        %v4075 = vsel %vm3083, %v4011, %v3947
        %v4076 = vmul.f32 %v4044, %v2504
        %v4077 = vmul.f32 %v4012, %v2505
        %v4078 = vmul.f32 %v4045, %v2506
        %v4079 = vmul.f32 %v4013, %v2507
        %v4080 = vmul.f32 %v4046, %v2508
        %v4081 = vmul.f32 %v4014, %v2509
        %v4082 = vmul.f32 %v4047, %v2510
        %v4083 = vmul.f32 %v4015, %v2511
        %v4084 = vmul.f32 %v4048, %v2512
        %v4085 = vmul.f32 %v4016, %v2513
        %v4086 = vmul.f32 %v4049, %v2514
        %v4087 = vmul.f32 %v4017, %v2515
        %v4088 = vmul.f32 %v4050, %v2516
        %v4089 = vmul.f32 %v4018, %v2517
        %v4090 = vmul.f32 %v4051, %v2518
        %v4091 = vmul.f32 %v4019, %v2519
        %v4092 = vmul.f32 %v4052, %v2520
        %v4093 = vmul.f32 %v4020, %v2521
        %v4094 = vmul.f32 %v4053, %v2522
        %v4095 = vmul.f32 %v4021, %v2523
        %v4096 = vmul.f32 %v4054, %v2524
        %v4097 = vmul.f32 %v4022, %v2525
        %v4098 = vmul.f32 %v4055, %v2526
        %v4099 = vmul.f32 %v4023, %v2527
        %v4100 = vmul.f32 %v4056, %v2528
        %v4101 = vmul.f32 %v4024, %v2529
        %v4102 = vmul.f32 %v4057, %v2530
        %v4103 = vmul.f32 %v4025, %v2531
        %v4104 = vmul.f32 %v4058, %v2532
        %v4105 = vmul.f32 %v4026, %v2533
        %v4106 = vmul.f32 %v4059, %v2534
        %v4107 = vmul.f32 %v4027, %v2535
        %v4108 = vmul.f32 %v4060, %v2536
        %v4109 = vmul.f32 %v4028, %v2537
        %v4110 = vmul.f32 %v4061, %v2538
        %v4111 = vmul.f32 %v4029, %v2539
        %v4112 = vmul.f32 %v4062, %v2540
        %v4113 = vmul.f32 %v4030, %v2541
        %v4114 = vmul.f32 %v4063, %v2542
        %v4115 = vmul.f32 %v4031, %v2543
        %v4116 = vmul.f32 %v4064, %v2544
        %v4117 = vmul.f32 %v4032, %v2545
        %v4118 = vmul.f32 %v4065, %v2546
        %v4119 = vmul.f32 %v4033, %v2547
        %v4120 = vmul.f32 %v4066, %v2548
        %v4121 = vmul.f32 %v4034, %v2549
        %v4122 = vmul.f32 %v4067, %v2550
        %v4123 = vmul.f32 %v4035, %v2551
        %v4124 = vmul.f32 %v4068, %v2552
        %v4125 = vmul.f32 %v4036, %v2553
        %v4126 = vmul.f32 %v4069, %v2554
        %v4127 = vmul.f32 %v4037, %v2555
        %v4128 = vmul.f32 %v4070, %v2556
        %v4129 = vmul.f32 %v4038, %v2557
        %v4130 = vmul.f32 %v4071, %v2558
        %v4131 = vmul.f32 %v4039, %v2559
        %v4132 = vmul.f32 %v4072, %v2560
        %v4133 = vmul.f32 %v4040, %v2561
        %v4134 = vmul.f32 %v4073, %v2562
        %v4135 = vmul.f32 %v4041, %v2563
        %v4136 = vmul.f32 %v4074, %v2564
        %v4137 = vmul.f32 %v4042, %v2565
        %v4138 = vmul.f32 %v4075, %v2566
        %v4139 = vmul.f32 %v4043, %v2567
        %v4140 = vadd.f32 %v3820, %v4076
        %v4141 = vadd.f32 %v3821, %v4077
        %v4142 = vadd.f32 %v3822, %v4078
        %v4143 = vadd.f32 %v3823, %v4079
        %v4144 = vadd.f32 %v3824, %v4080
        %v4145 = vadd.f32 %v3825, %v4081
        %v4146 = vadd.f32 %v3826, %v4082
        %v4147 = vadd.f32 %v3827, %v4083
        %v4148 = vadd.f32 %v3828, %v4084
        %v4149 = vadd.f32 %v3829, %v4085
        %v4150 = vadd.f32 %v3830, %v4086
        %v4151 = vadd.f32 %v3831, %v4087
        %v4152 = vadd.f32 %v3832, %v4088
        %v4153 = vadd.f32 %v3833, %v4089
        %v4154 = vadd.f32 %v3834, %v4090
        %v4155 = vadd.f32 %v3835, %v4091
        %v4156 = vadd.f32 %v3836, %v4092
        %v4157 = vadd.f32 %v3837, %v4093
        %v4158 = vadd.f32 %v3838, %v4094
        %v4159 = vadd.f32 %v3839, %v4095
        %v4160 = vadd.f32 %v3840, %v4096
        %v4161 = vadd.f32 %v3841, %v4097
        %v4162 = vadd.f32 %v3842, %v4098
        %v4163 = vadd.f32 %v3843, %v4099
        %v4164 = vadd.f32 %v3844, %v4100
        %v4165 = vadd.f32 %v3845, %v4101
        %v4166 = vadd.f32 %v3846, %v4102
        %v4167 = vadd.f32 %v3847, %v4103
        %v4168 = vadd.f32 %v3848, %v4104
        %v4169 = vadd.f32 %v3849, %v4105
        %v4170 = vadd.f32 %v3850, %v4106
        %v4171 = vadd.f32 %v3851, %v4107
        %v4172 = vadd.f32 %v3852, %v4108
        %v4173 = vadd.f32 %v3853, %v4109
        %v4174 = vadd.f32 %v3854, %v4110
        %v4175 = vadd.f32 %v3855, %v4111
        %v4176 = vadd.f32 %v3856, %v4112
        %v4177 = vadd.f32 %v3857, %v4113
        %v4178 = vadd.f32 %v3858, %v4114
        %v4179 = vadd.f32 %v3859, %v4115
        %v4180 = vadd.f32 %v3860, %v4116
        %v4181 = vadd.f32 %v3861, %v4117
        %v4182 = vadd.f32 %v3862, %v4118
        %v4183 = vadd.f32 %v3863, %v4119
        %v4184 = vadd.f32 %v3864, %v4120
        %v4185 = vadd.f32 %v3865, %v4121
        %v4186 = vadd.f32 %v3866, %v4122
        %v4187 = vadd.f32 %v3867, %v4123
        %v4188 = vadd.f32 %v3868, %v4124
        %v4189 = vadd.f32 %v3869, %v4125
        %v4190 = vadd.f32 %v3870, %v4126
        %v4191 = vadd.f32 %v3871, %v4127
        %v4192 = vadd.f32 %v3872, %v4128
        %v4193 = vadd.f32 %v3873, %v4129
        %v4194 = vadd.f32 %v3874, %v4130
        %v4195 = vadd.f32 %v3875, %v4131
        %v4196 = vadd.f32 %v3876, %v4132
        %v4197 = vadd.f32 %v3877, %v4133
        %v4198 = vadd.f32 %v3878, %v4134
        %v4199 = vadd.f32 %v3879, %v4135
        %v4200 = vadd.f32 %v3880, %v4136
        %v4201 = vadd.f32 %v3881, %v4137
        %v4202 = vadd.f32 %v3882, %v4138
        %v4203 = vadd.f32 %v3883, %v4139
        %v4204 = vpack.c.bf16 %v4142, %v4140
        %v4205 = vpack.c.bf16 %v4143, %v4141
        %v4206 = vpack.c.bf16 %v4146, %v4144
        %v4207 = vpack.c.bf16 %v4147, %v4145
        %v4208 = vpack.c.bf16 %v4150, %v4148
        %v4209 = vpack.c.bf16 %v4151, %v4149
        %v4210 = vpack.c.bf16 %v4154, %v4152
        %v4211 = vpack.c.bf16 %v4155, %v4153
        %v4212 = vpack.c.bf16 %v4158, %v4156
        %v4213 = vpack.c.bf16 %v4159, %v4157
        %v4214 = vpack.c.bf16 %v4162, %v4160
        %v4215 = vpack.c.bf16 %v4163, %v4161
        %v4216 = vpack.c.bf16 %v4166, %v4164
        %v4217 = vpack.c.bf16 %v4167, %v4165
        %v4218 = vpack.c.bf16 %v4170, %v4168
        %v4219 = vpack.c.bf16 %v4171, %v4169
        %v4220 = vpack.c.bf16 %v4174, %v4172
        %v4221 = vpack.c.bf16 %v4175, %v4173
        %v4222 = vpack.c.bf16 %v4178, %v4176
        %v4223 = vpack.c.bf16 %v4179, %v4177
        %v4224 = vpack.c.bf16 %v4182, %v4180
        %v4225 = vpack.c.bf16 %v4183, %v4181
        %v4226 = vpack.c.bf16 %v4186, %v4184
        %v4227 = vpack.c.bf16 %v4187, %v4185
        %v4228 = vpack.c.bf16 %v4190, %v4188
        %v4229 = vpack.c.bf16 %v4191, %v4189
        %v4230 = vpack.c.bf16 %v4194, %v4192
        %v4231 = vpack.c.bf16 %v4195, %v4193
        %v4232 = vpack.c.bf16 %v4198, %v4196
        %v4233 = vpack.c.bf16 %v4199, %v4197
        %v4234 = vpack.c.bf16 %v4202, %v4200
        %v4235 = vpack.c.bf16 %v4203, %v4201
        %v4268 = vunpack.c.l.b16 %v4204
        %v4269 = vunpack.c.l.b16 %v4205
        %v4270 = vunpack.c.h.b16 %v4204
        %v4271 = vunpack.c.h.b16 %v4205
        %v4272 = vunpack.c.l.b16 %v4206
        %v4273 = vunpack.c.l.b16 %v4207
        %v4274 = vunpack.c.h.b16 %v4206
        %v4275 = vunpack.c.h.b16 %v4207
        %v4276 = vunpack.c.l.b16 %v4208
        %v4277 = vunpack.c.l.b16 %v4209
        %v4278 = vunpack.c.h.b16 %v4208
        %v4279 = vunpack.c.h.b16 %v4209
        %v4280 = vunpack.c.l.b16 %v4210
        %v4281 = vunpack.c.l.b16 %v4211
        %v4282 = vunpack.c.h.b16 %v4210
        %v4283 = vunpack.c.h.b16 %v4211
        %v4284 = vunpack.c.l.b16 %v4212
        %v4285 = vunpack.c.l.b16 %v4213
        %v4286 = vunpack.c.h.b16 %v4212
        %v4287 = vunpack.c.h.b16 %v4213
        %v4288 = vunpack.c.l.b16 %v4214
        %v4289 = vunpack.c.l.b16 %v4215
        %v4290 = vunpack.c.h.b16 %v4214
        %v4291 = vunpack.c.h.b16 %v4215
        %v4292 = vunpack.c.l.b16 %v4216
        %v4293 = vunpack.c.l.b16 %v4217
        %v4294 = vunpack.c.h.b16 %v4216
        %v4295 = vunpack.c.h.b16 %v4217
        %v4296 = vunpack.c.l.b16 %v4218
        %v4297 = vunpack.c.l.b16 %v4219
        %v4298 = vunpack.c.h.b16 %v4218
        %v4299 = vunpack.c.h.b16 %v4219
        %v4300 = vunpack.c.l.b16 %v4220
        %v4301 = vunpack.c.l.b16 %v4221
        %v4302 = vunpack.c.h.b16 %v4220
        %v4303 = vunpack.c.h.b16 %v4221
        %v4304 = vunpack.c.l.b16 %v4222
        %v4305 = vunpack.c.l.b16 %v4223
        %v4306 = vunpack.c.h.b16 %v4222
        %v4307 = vunpack.c.h.b16 %v4223
        %v4308 = vunpack.c.l.b16 %v4224
        %v4309 = vunpack.c.l.b16 %v4225
        %v4310 = vunpack.c.h.b16 %v4224
        %v4311 = vunpack.c.h.b16 %v4225
        %v4312 = vunpack.c.l.b16 %v4226
        %v4313 = vunpack.c.l.b16 %v4227
        %v4314 = vunpack.c.h.b16 %v4226
        %v4315 = vunpack.c.h.b16 %v4227
        %v4316 = vunpack.c.l.b16 %v4228
        %v4317 = vunpack.c.l.b16 %v4229
        %v4318 = vunpack.c.h.b16 %v4228
        %v4319 = vunpack.c.h.b16 %v4229
        %v4320 = vunpack.c.l.b16 %v4230
        %v4321 = vunpack.c.l.b16 %v4231
        %v4322 = vunpack.c.h.b16 %v4230
        %v4323 = vunpack.c.h.b16 %v4231
        %v4324 = vunpack.c.l.b16 %v4232
        %v4325 = vunpack.c.l.b16 %v4233
        %v4326 = vunpack.c.h.b16 %v4232
        %v4327 = vunpack.c.h.b16 %v4233
        %v4328 = vunpack.c.l.b16 %v4234
        %v4329 = vunpack.c.l.b16 %v4235
        %v4330 = vunpack.c.h.b16 %v4234
        %v4331 = vunpack.c.h.b16 %v4235
        %v4332 = vpack.c.b16 %v4269, %v4268
        %v4333 = vpack.c.b16 %v4271, %v4270
        %v4334 = vpack.c.b16 %v4273, %v4272
        %v4335 = vpack.c.b16 %v4275, %v4274
        %v4336 = vpack.c.b16 %v4277, %v4276
        %v4337 = vpack.c.b16 %v4279, %v4278
        %v4338 = vpack.c.b16 %v4281, %v4280
        %v4339 = vpack.c.b16 %v4283, %v4282
        %v4340 = vpack.c.b16 %v4285, %v4284
        %v4341 = vpack.c.b16 %v4287, %v4286
        %v4342 = vpack.c.b16 %v4289, %v4288
        %v4343 = vpack.c.b16 %v4291, %v4290
        %v4344 = vpack.c.b16 %v4293, %v4292
        %v4345 = vpack.c.b16 %v4295, %v4294
        %v4346 = vpack.c.b16 %v4297, %v4296
        %v4347 = vpack.c.b16 %v4299, %v4298
        %v4348 = vpack.c.b16 %v4301, %v4300
        %v4349 = vpack.c.b16 %v4303, %v4302
        %v4350 = vpack.c.b16 %v4305, %v4304
        %v4351 = vpack.c.b16 %v4307, %v4306
        %v4352 = vpack.c.b16 %v4309, %v4308
        %v4353 = vpack.c.b16 %v4311, %v4310
        %v4354 = vpack.c.b16 %v4313, %v4312
        %v4355 = vpack.c.b16 %v4315, %v4314
        %v4356 = vpack.c.b16 %v4317, %v4316
        %v4357 = vpack.c.b16 %v4319, %v4318
        %v4358 = vpack.c.b16 %v4321, %v4320
        %v4359 = vpack.c.b16 %v4323, %v4322
        %v4360 = vpack.c.b16 %v4325, %v4324
        %v4361 = vpack.c.b16 %v4327, %v4326
        %v4362 = vpack.c.b16 %v4329, %v4328
        %v4363 = vpack.c.b16 %v4331, %v4330
        %4396 = vst [vmem:[%s621] sm:$0xff] %v4332
        %4397 = vst [vmem:[%s621 + $0x8] sm:$0xff] %v4333
        %4398 = vst [vmem:[%s621 + $0x10] sm:$0xff] %v4334
        %4399 = vst [vmem:[%s621 + $0x18] sm:$0xff] %v4335
        %4400 = vst [vmem:[%s621 + $0x20] sm:$0xff] %v4336
        %4401 = vst [vmem:[%s621 + $0x28] sm:$0xff] %v4337
        %4402 = vst [vmem:[%s621 + $0x30] sm:$0xff] %v4338
        %4403 = vst [vmem:[%s621 + $0x38] sm:$0xff] %v4339
        %4404 = vst [vmem:[%s621 + $0x40] sm:$0xff] %v4340
        %4405 = vst [vmem:[%s621 + $0x48] sm:$0xff] %v4341
        %4406 = vst [vmem:[%s621 + $0x50] sm:$0xff] %v4342
        %4407 = vst [vmem:[%s621 + $0x58] sm:$0xff] %v4343
        %4408 = vst [vmem:[%s621 + $0x60] sm:$0xff] %v4344
        %4409 = vst [vmem:[%s621 + $0x68] sm:$0xff] %v4345
        %4410 = vst [vmem:[%s621 + $0x70] sm:$0xff] %v4346
        %4411 = vst [vmem:[%s621 + $0x78] sm:$0xff] %v4347
        %4412 = vst [vmem:[%s621 + $0x80] sm:$0xff] %v4348
        %4413 = vst [vmem:[%s621 + $0x88] sm:$0xff] %v4349
        %4414 = vst [vmem:[%s621 + $0x90] sm:$0xff] %v4350
        %4415 = vst [vmem:[%s621 + $0x98] sm:$0xff] %v4351
        %4416 = vst [vmem:[%s621 + $0xa0] sm:$0xff] %v4352
        %4417 = vst [vmem:[%s621 + $0xa8] sm:$0xff] %v4353
        %4418 = vst [vmem:[%s621 + $0xb0] sm:$0xff] %v4354
        %4419 = vst [vmem:[%s621 + $0xb8] sm:$0xff] %v4355
        %4420 = vst [vmem:[%s621 + $0xc0] sm:$0xff] %v4356
        %4421 = vst [vmem:[%s621 + $0xc8] sm:$0xff] %v4357
        %4422 = vst [vmem:[%s621 + $0xd0] sm:$0xff] %v4358
        %4423 = vst [vmem:[%s621 + $0xd8] sm:$0xff] %v4359
        %4424 = vst [vmem:[%s621 + $0xe0] sm:$0xff] %v4360
        %4425 = vst [vmem:[%s621 + $0xe8] sm:$0xff] %v4361
        %4426 = vst [vmem:[%s621 + $0xf0] sm:$0xff] %v4362
        %4427 = vst [vmem:[%s621 + $0xf8] sm:$0xff] %v4363
        %v4428 = vpack.c.bf16 %v1837, %v1833
        %v4429 = vpack.c.bf16 %v1839, %v1835
        %v4430 = vpack.c.bf16 %v1847, %v1843
        %v4431 = vpack.c.bf16 %v1849, %v1845
        %v4432 = vpack.c.bf16 %v1857, %v1853
        %v4433 = vpack.c.bf16 %v1859, %v1855
        %v4434 = vpack.c.bf16 %v1867, %v1863
        %v4435 = vpack.c.bf16 %v1869, %v1865
        %v4436 = vpack.c.bf16 %v1877, %v1873
        %v4437 = vpack.c.bf16 %v1879, %v1875
        %v4438 = vpack.c.bf16 %v1887, %v1883
        %v4439 = vpack.c.bf16 %v1889, %v1885
        %v4440 = vpack.c.bf16 %v1897, %v1893
        %v4441 = vpack.c.bf16 %v1899, %v1895
        %v4442 = vpack.c.bf16 %v1907, %v1903
        %v4443 = vpack.c.bf16 %v1909, %v1905
        %v4444 = vpack.c.bf16 %v1917, %v1913
        %v4445 = vpack.c.bf16 %v1919, %v1915
        %v4446 = vpack.c.bf16 %v1927, %v1923
        %v4447 = vpack.c.bf16 %v1929, %v1925
        %v4448 = vpack.c.bf16 %v1937, %v1933
        %v4449 = vpack.c.bf16 %v1939, %v1935
        %v4450 = vpack.c.bf16 %v1947, %v1943
        %v4451 = vpack.c.bf16 %v1949, %v1945
        %v4452 = vpack.c.bf16 %v1957, %v1953
        %v4453 = vpack.c.bf16 %v1959, %v1955
        %v4454 = vpack.c.bf16 %v1967, %v1963
        %v4455 = vpack.c.bf16 %v1969, %v1965
        %v4456 = vpack.c.bf16 %v1977, %v1973
        %v4457 = vpack.c.bf16 %v1979, %v1975
        %v4458 = vpack.c.bf16 %v1987, %v1983
        %v4459 = vpack.c.bf16 %v1989, %v1985
        %v4492 = vunpack.c.l.b16 %v4428
        %v4493 = vunpack.c.l.b16 %v4429
        %v4494 = vunpack.c.h.b16 %v4428
        %v4495 = vunpack.c.h.b16 %v4429
        %v4496 = vunpack.c.l.b16 %v4430
        %v4497 = vunpack.c.l.b16 %v4431
        %v4498 = vunpack.c.h.b16 %v4430
        %v4499 = vunpack.c.h.b16 %v4431
        %v4500 = vunpack.c.l.b16 %v4432
        %v4501 = vunpack.c.l.b16 %v4433
        %v4502 = vunpack.c.h.b16 %v4432
        %v4503 = vunpack.c.h.b16 %v4433
        %v4504 = vunpack.c.l.b16 %v4434
        %v4505 = vunpack.c.l.b16 %v4435
        %v4506 = vunpack.c.h.b16 %v4434
        %v4507 = vunpack.c.h.b16 %v4435
        %v4508 = vunpack.c.l.b16 %v4436
        %v4509 = vunpack.c.l.b16 %v4437
        %v4510 = vunpack.c.h.b16 %v4436
        %v4511 = vunpack.c.h.b16 %v4437
        %v4512 = vunpack.c.l.b16 %v4438
        %v4513 = vunpack.c.l.b16 %v4439
        %v4514 = vunpack.c.h.b16 %v4438
        %v4515 = vunpack.c.h.b16 %v4439
        %v4516 = vunpack.c.l.b16 %v4440
        %v4517 = vunpack.c.l.b16 %v4441
        %v4518 = vunpack.c.h.b16 %v4440
        %v4519 = vunpack.c.h.b16 %v4441
        %v4520 = vunpack.c.l.b16 %v4442
        %v4521 = vunpack.c.l.b16 %v4443
        %v4522 = vunpack.c.h.b16 %v4442
        %v4523 = vunpack.c.h.b16 %v4443
        %v4524 = vunpack.c.l.b16 %v4444
        %v4525 = vunpack.c.l.b16 %v4445
        %v4526 = vunpack.c.h.b16 %v4444
        %v4527 = vunpack.c.h.b16 %v4445
        %v4528 = vunpack.c.l.b16 %v4446
        %v4529 = vunpack.c.l.b16 %v4447
        %v4530 = vunpack.c.h.b16 %v4446
        %v4531 = vunpack.c.h.b16 %v4447
        %v4532 = vunpack.c.l.b16 %v4448
        %v4533 = vunpack.c.l.b16 %v4449
        %v4534 = vunpack.c.h.b16 %v4448
        %v4535 = vunpack.c.h.b16 %v4449
        %v4536 = vunpack.c.l.b16 %v4450
        %v4537 = vunpack.c.l.b16 %v4451
        %v4538 = vunpack.c.h.b16 %v4450
        %v4539 = vunpack.c.h.b16 %v4451
        %v4540 = vunpack.c.l.b16 %v4452
        %v4541 = vunpack.c.l.b16 %v4453
        %v4542 = vunpack.c.h.b16 %v4452
        %v4543 = vunpack.c.h.b16 %v4453
        %v4544 = vunpack.c.l.b16 %v4454
        %v4545 = vunpack.c.l.b16 %v4455
        %v4546 = vunpack.c.h.b16 %v4454
        %v4547 = vunpack.c.h.b16 %v4455
        %v4548 = vunpack.c.l.b16 %v4456
        %v4549 = vunpack.c.l.b16 %v4457
        %v4550 = vunpack.c.h.b16 %v4456
        %v4551 = vunpack.c.h.b16 %v4457
        %v4552 = vunpack.c.l.b16 %v4458
        %v4553 = vunpack.c.l.b16 %v4459
        %v4554 = vunpack.c.h.b16 %v4458
        %v4555 = vunpack.c.h.b16 %v4459
        %v4556 = vpack.c.b16 %v4493, %v4492
        %v4557 = vpack.c.b16 %v4495, %v4494
        %v4558 = vpack.c.b16 %v4497, %v4496
        %v4559 = vpack.c.b16 %v4499, %v4498
        %v4560 = vpack.c.b16 %v4501, %v4500
        %v4561 = vpack.c.b16 %v4503, %v4502
        %v4562 = vpack.c.b16 %v4505, %v4504
        %v4563 = vpack.c.b16 %v4507, %v4506
        %v4564 = vpack.c.b16 %v4509, %v4508
        %v4565 = vpack.c.b16 %v4511, %v4510
        %v4566 = vpack.c.b16 %v4513, %v4512
        %v4567 = vpack.c.b16 %v4515, %v4514
        %v4568 = vpack.c.b16 %v4517, %v4516
        %v4569 = vpack.c.b16 %v4519, %v4518
        %v4570 = vpack.c.b16 %v4521, %v4520
        %v4571 = vpack.c.b16 %v4523, %v4522
        %v4572 = vpack.c.b16 %v4525, %v4524
        %v4573 = vpack.c.b16 %v4527, %v4526
        %v4574 = vpack.c.b16 %v4529, %v4528
        %v4575 = vpack.c.b16 %v4531, %v4530
        %v4576 = vpack.c.b16 %v4533, %v4532
        %v4577 = vpack.c.b16 %v4535, %v4534
        %v4578 = vpack.c.b16 %v4537, %v4536
        %v4579 = vpack.c.b16 %v4539, %v4538
        %v4580 = vpack.c.b16 %v4541, %v4540
        %v4581 = vpack.c.b16 %v4543, %v4542
        %v4582 = vpack.c.b16 %v4545, %v4544
        %v4583 = vpack.c.b16 %v4547, %v4546
        %v4584 = vpack.c.b16 %v4549, %v4548
        %v4585 = vpack.c.b16 %v4551, %v4550
        %v4586 = vpack.c.b16 %v4553, %v4552
        %v4587 = vpack.c.b16 %v4555, %v4554
        %4620 = vst [vmem:[%s628] sm:$0xff] %v4556
        %4621 = vst [vmem:[%s628 + $0x8] sm:$0xff] %v4557
        %4622 = vst [vmem:[%s628 + $0x10] sm:$0xff] %v4558
        %4623 = vst [vmem:[%s628 + $0x18] sm:$0xff] %v4559
        %4624 = vst [vmem:[%s628 + $0x20] sm:$0xff] %v4560
        %4625 = vst [vmem:[%s628 + $0x28] sm:$0xff] %v4561
        %4626 = vst [vmem:[%s628 + $0x30] sm:$0xff] %v4562
        %4627 = vst [vmem:[%s628 + $0x38] sm:$0xff] %v4563
        %4628 = vst [vmem:[%s628 + $0x40] sm:$0xff] %v4564
        %4629 = vst [vmem:[%s628 + $0x48] sm:$0xff] %v4565
        %4630 = vst [vmem:[%s628 + $0x50] sm:$0xff] %v4566
        %4631 = vst [vmem:[%s628 + $0x58] sm:$0xff] %v4567
        %4632 = vst [vmem:[%s628 + $0x60] sm:$0xff] %v4568
        %4633 = vst [vmem:[%s628 + $0x68] sm:$0xff] %v4569
        %4634 = vst [vmem:[%s628 + $0x70] sm:$0xff] %v4570
        %4635 = vst [vmem:[%s628 + $0x78] sm:$0xff] %v4571
        %4636 = vst [vmem:[%s628 + $0x80] sm:$0xff] %v4572
        %4637 = vst [vmem:[%s628 + $0x88] sm:$0xff] %v4573
        %4638 = vst [vmem:[%s628 + $0x90] sm:$0xff] %v4574
        %4639 = vst [vmem:[%s628 + $0x98] sm:$0xff] %v4575
        %4640 = vst [vmem:[%s628 + $0xa0] sm:$0xff] %v4576
        %4641 = vst [vmem:[%s628 + $0xa8] sm:$0xff] %v4577
        %4642 = vst [vmem:[%s628 + $0xb0] sm:$0xff] %v4578
        %4643 = vst [vmem:[%s628 + $0xb8] sm:$0xff] %v4579
        %4644 = vst [vmem:[%s628 + $0xc0] sm:$0xff] %v4580
        %4645 = vst [vmem:[%s628 + $0xc8] sm:$0xff] %v4581
        %4646 = vst [vmem:[%s628 + $0xd0] sm:$0xff] %v4582
        %4647 = vst [vmem:[%s628 + $0xd8] sm:$0xff] %v4583
        %4648 = vst [vmem:[%s628 + $0xe0] sm:$0xff] %v4584
        %4649 = vst [vmem:[%s628 + $0xe8] sm:$0xff] %v4585
        %4650 = vst [vmem:[%s628 + $0xf0] sm:$0xff] %v4586
        %4651 = vst [vmem:[%s628 + $0xf8] sm:$0xff] %v4587
        %v4652 = vpack.c.bf16 %v2222, %v2218
        %v4653 = vpack.c.bf16 %v2224, %v2220
        %v4654 = vpack.c.bf16 %v2232, %v2228
        %v4655 = vpack.c.bf16 %v2234, %v2230
        %v4656 = vpack.c.bf16 %v2242, %v2238
        %v4657 = vpack.c.bf16 %v2244, %v2240
        %v4658 = vpack.c.bf16 %v2252, %v2248
        %v4659 = vpack.c.bf16 %v2254, %v2250
        %v4660 = vpack.c.bf16 %v2262, %v2258
        %v4661 = vpack.c.bf16 %v2264, %v2260
        %v4662 = vpack.c.bf16 %v2272, %v2268
        %v4663 = vpack.c.bf16 %v2274, %v2270
        %v4664 = vpack.c.bf16 %v2282, %v2278
        %v4665 = vpack.c.bf16 %v2284, %v2280
        %v4666 = vpack.c.bf16 %v2292, %v2288
        %v4667 = vpack.c.bf16 %v2294, %v2290
        %v4668 = vpack.c.bf16 %v2302, %v2298
        %v4669 = vpack.c.bf16 %v2304, %v2300
        %v4670 = vpack.c.bf16 %v2312, %v2308
        %v4671 = vpack.c.bf16 %v2314, %v2310
        %v4672 = vpack.c.bf16 %v2322, %v2318
        %v4673 = vpack.c.bf16 %v2324, %v2320
        %v4674 = vpack.c.bf16 %v2332, %v2328
        %v4675 = vpack.c.bf16 %v2334, %v2330
        %v4676 = vpack.c.bf16 %v2342, %v2338
        %v4677 = vpack.c.bf16 %v2344, %v2340
        %v4678 = vpack.c.bf16 %v2352, %v2348
        %v4679 = vpack.c.bf16 %v2354, %v2350
        %v4680 = vpack.c.bf16 %v2362, %v2358
        %v4681 = vpack.c.bf16 %v2364, %v2360
        %v4682 = vpack.c.bf16 %v2372, %v2368
        %v4683 = vpack.c.bf16 %v2374, %v2370
        %v4716 = vunpack.c.l.b16 %v4652
        %v4717 = vunpack.c.l.b16 %v4653
        %v4718 = vunpack.c.h.b16 %v4652
        %v4719 = vunpack.c.h.b16 %v4653
        %v4720 = vunpack.c.l.b16 %v4654
        %v4721 = vunpack.c.l.b16 %v4655
        %v4722 = vunpack.c.h.b16 %v4654
        %v4723 = vunpack.c.h.b16 %v4655
        %v4724 = vunpack.c.l.b16 %v4656
        %v4725 = vunpack.c.l.b16 %v4657
        %v4726 = vunpack.c.h.b16 %v4656
        %v4727 = vunpack.c.h.b16 %v4657
        %v4728 = vunpack.c.l.b16 %v4658
        %v4729 = vunpack.c.l.b16 %v4659
        %v4730 = vunpack.c.h.b16 %v4658
        %v4731 = vunpack.c.h.b16 %v4659
        %v4732 = vunpack.c.l.b16 %v4660
        %v4733 = vunpack.c.l.b16 %v4661
        %v4734 = vunpack.c.h.b16 %v4660
        %v4735 = vunpack.c.h.b16 %v4661
        %v4736 = vunpack.c.l.b16 %v4662
        %v4737 = vunpack.c.l.b16 %v4663
        %v4738 = vunpack.c.h.b16 %v4662
        %v4739 = vunpack.c.h.b16 %v4663
        %v4740 = vunpack.c.l.b16 %v4664
        %v4741 = vunpack.c.l.b16 %v4665
        %v4742 = vunpack.c.h.b16 %v4664
        %v4743 = vunpack.c.h.b16 %v4665
        %v4744 = vunpack.c.l.b16 %v4666
        %v4745 = vunpack.c.l.b16 %v4667
        %v4746 = vunpack.c.h.b16 %v4666
        %v4747 = vunpack.c.h.b16 %v4667
        %v4748 = vunpack.c.l.b16 %v4668
        %v4749 = vunpack.c.l.b16 %v4669
        %v4750 = vunpack.c.h.b16 %v4668
        %v4751 = vunpack.c.h.b16 %v4669
        %v4752 = vunpack.c.l.b16 %v4670
        %v4753 = vunpack.c.l.b16 %v4671
        %v4754 = vunpack.c.h.b16 %v4670
        %v4755 = vunpack.c.h.b16 %v4671
        %v4756 = vunpack.c.l.b16 %v4672
        %v4757 = vunpack.c.l.b16 %v4673
        %v4758 = vunpack.c.h.b16 %v4672
        %v4759 = vunpack.c.h.b16 %v4673
        %v4760 = vunpack.c.l.b16 %v4674
        %v4761 = vunpack.c.l.b16 %v4675
        %v4762 = vunpack.c.h.b16 %v4674
        %v4763 = vunpack.c.h.b16 %v4675
        %v4764 = vunpack.c.l.b16 %v4676
        %v4765 = vunpack.c.l.b16 %v4677
        %v4766 = vunpack.c.h.b16 %v4676
        %v4767 = vunpack.c.h.b16 %v4677
        %v4768 = vunpack.c.l.b16 %v4678
        %v4769 = vunpack.c.l.b16 %v4679
        %v4770 = vunpack.c.h.b16 %v4678
        %v4771 = vunpack.c.h.b16 %v4679
        %v4772 = vunpack.c.l.b16 %v4680
        %v4773 = vunpack.c.l.b16 %v4681
        %v4774 = vunpack.c.h.b16 %v4680
        %v4775 = vunpack.c.h.b16 %v4681
        %v4776 = vunpack.c.l.b16 %v4682
        %v4777 = vunpack.c.l.b16 %v4683
        %v4778 = vunpack.c.h.b16 %v4682
        %v4779 = vunpack.c.h.b16 %v4683
        %v4780 = vpack.c.b16 %v4717, %v4716
        %v4781 = vpack.c.b16 %v4719, %v4718
        %v4782 = vpack.c.b16 %v4721, %v4720
        %v4783 = vpack.c.b16 %v4723, %v4722
        %v4784 = vpack.c.b16 %v4725, %v4724
        %v4785 = vpack.c.b16 %v4727, %v4726
        %v4786 = vpack.c.b16 %v4729, %v4728
        %v4787 = vpack.c.b16 %v4731, %v4730
        %v4788 = vpack.c.b16 %v4733, %v4732
        %v4789 = vpack.c.b16 %v4735, %v4734
        %v4790 = vpack.c.b16 %v4737, %v4736
        %v4791 = vpack.c.b16 %v4739, %v4738
        %v4792 = vpack.c.b16 %v4741, %v4740
        %v4793 = vpack.c.b16 %v4743, %v4742
        %v4794 = vpack.c.b16 %v4745, %v4744
        %v4795 = vpack.c.b16 %v4747, %v4746
        %v4796 = vpack.c.b16 %v4749, %v4748
        %v4797 = vpack.c.b16 %v4751, %v4750
        %v4798 = vpack.c.b16 %v4753, %v4752
        %v4799 = vpack.c.b16 %v4755, %v4754
        %v4800 = vpack.c.b16 %v4757, %v4756
        %v4801 = vpack.c.b16 %v4759, %v4758
        %v4802 = vpack.c.b16 %v4761, %v4760
        %v4803 = vpack.c.b16 %v4763, %v4762
        %v4804 = vpack.c.b16 %v4765, %v4764
        %v4805 = vpack.c.b16 %v4767, %v4766
        %v4806 = vpack.c.b16 %v4769, %v4768
        %v4807 = vpack.c.b16 %v4771, %v4770
        %v4808 = vpack.c.b16 %v4773, %v4772
        %v4809 = vpack.c.b16 %v4775, %v4774
        %v4810 = vpack.c.b16 %v4777, %v4776
        %v4811 = vpack.c.b16 %v4779, %v4778
        %4844 = vst [vmem:[%s635] sm:$0xff] %v4780
        %4845 = vst [vmem:[%s635 + $0x8] sm:$0xff] %v4781
        %4846 = vst [vmem:[%s635 + $0x10] sm:$0xff] %v4782
        %4847 = vst [vmem:[%s635 + $0x18] sm:$0xff] %v4783
        %4848 = vst [vmem:[%s635 + $0x20] sm:$0xff] %v4784
        %4849 = vst [vmem:[%s635 + $0x28] sm:$0xff] %v4785
        %4850 = vst [vmem:[%s635 + $0x30] sm:$0xff] %v4786
        %4851 = vst [vmem:[%s635 + $0x38] sm:$0xff] %v4787
        %4852 = vst [vmem:[%s635 + $0x40] sm:$0xff] %v4788
        %4853 = vst [vmem:[%s635 + $0x48] sm:$0xff] %v4789
        %4854 = vst [vmem:[%s635 + $0x50] sm:$0xff] %v4790
        %4855 = vst [vmem:[%s635 + $0x58] sm:$0xff] %v4791
        %4856 = vst [vmem:[%s635 + $0x60] sm:$0xff] %v4792
        %4857 = vst [vmem:[%s635 + $0x68] sm:$0xff] %v4793
        %4858 = vst [vmem:[%s635 + $0x70] sm:$0xff] %v4794
        %4859 = vst [vmem:[%s635 + $0x78] sm:$0xff] %v4795
        %4860 = vst [vmem:[%s635 + $0x80] sm:$0xff] %v4796
        %4861 = vst [vmem:[%s635 + $0x88] sm:$0xff] %v4797
        %4862 = vst [vmem:[%s635 + $0x90] sm:$0xff] %v4798
        %4863 = vst [vmem:[%s635 + $0x98] sm:$0xff] %v4799
        %4864 = vst [vmem:[%s635 + $0xa0] sm:$0xff] %v4800
        %4865 = vst [vmem:[%s635 + $0xa8] sm:$0xff] %v4801
        %4866 = vst [vmem:[%s635 + $0xb0] sm:$0xff] %v4802
        %4867 = vst [vmem:[%s635 + $0xb8] sm:$0xff] %v4803
        %4868 = vst [vmem:[%s635 + $0xc0] sm:$0xff] %v4804
        %4869 = vst [vmem:[%s635 + $0xc8] sm:$0xff] %v4805
        %4870 = vst [vmem:[%s635 + $0xd0] sm:$0xff] %v4806
        %4871 = vst [vmem:[%s635 + $0xd8] sm:$0xff] %v4807
        %4872 = vst [vmem:[%s635 + $0xe0] sm:$0xff] %v4808
        %4873 = vst [vmem:[%s635 + $0xe8] sm:$0xff] %v4809
        %4874 = vst [vmem:[%s635 + $0xf0] sm:$0xff] %v4810
        %4875 = vst [vmem:[%s635 + $0xf8] sm:$0xff] %v4811
        %s4876 = sand.u32 %s255, 1
        %s4877 = scalar_lea.sflag [#allocation4], %s4876
        %s4878 = sand.u32 %s255, 1
        %s4879 = smul.addr %s4878, 256
        %s4880 = scalar_lea.vmem [#allocation16], %s4879
        %s4881 = sand.u32 %s43, 1
        %s4882 = scalar_lea.sflag [#allocation18], %s4881
        %s4883 = sand.u32 %s283, 1
        %s4884 = smul.addr %s4883, 256
        %s4885 = scalar_lea.vmem [#allocation17], %s4884
        %s4886 = sand.u32 %s43, 1
        %s4887 = scalar_lea.sflag [#allocation18], %s4886
        %s4888 = sand.u32 %s311, 1
        %s4889 = smul.addr %s4888, 256
        %s4890 = scalar_lea.vmem [#allocation19], %s4889
        %s4891 = sand.u32 %s339, 1
        %s4892 = scalar_lea.sflag [#allocation21], %s4891
        %s4893 = sand.u32 %s339, 1
        %s4894 = smul.addr %s4893, 256
        %s4895 = scalar_lea.vmem [#allocation20], %s4894
        // Predicated region
        $region85: #{tpu_custom_call.1} parent=51 // pred_check
          %p4896 = pneg %p265
        $region86: #{tpu_custom_call.1} parent=51 // pred_check_branch
          %4898 = sbr.rel (%p4896) target = $region88
        $region87: #{tpu_custom_call.1} parent=51 // pred_region
          %s4899 = smul.u32 32, %s48
          %s4901 = ssub.s32 4096, 4096
          %4902 = vsyncadd %s4877, %s4901
          %s4903 = smul.addr %s4899, 2
          %s4904 = smul.addr %s47, 128
          %s4905 = sadd.s32 %s4903, %s4904
          %s4906 = smul.addr %s4905, 64
          %s4907 = scalar_lea.hbm %s8, %s4906
          %s4908 = sshll.u32 %s4880, 4
          %s4909 = int_to_ptr.vmem [resolvable:$true] %s4908
          %4914 = dma.vmem_to_hbm [thread:$0]  %s4909, 4096, %s4907, %s4877, 128, 128, 8
        $region88: #{tpu_custom_call.1} parent=51 // pred_fallthru
          _
        // Predicated region
        $region89: #{tpu_custom_call.1} parent=51 // pred_check
          %p4915 = pneg %p293
        $region90: #{tpu_custom_call.1} parent=51 // pred_check_branch
          %4917 = sbr.rel (%p4915) target = $region92
        $region91: #{tpu_custom_call.1} parent=51 // pred_region
          %s4918 = smul.u32 32, %s48
          %s4920 = ssub.s32 4096, 4096
          %4921 = vsyncadd %s4882, %s4920
          %s4922 = smul.addr %s4918, 2
          %s4923 = smul.addr %s47, 128
          %s4924 = sadd.s32 %s4922, %s4923
          %s4925 = smul.addr %s4924, 64
          %s4926 = scalar_lea.hbm %s9, %s4925
          %s4927 = sshll.u32 %s4885, 4
          %s4928 = int_to_ptr.vmem [resolvable:$true] %s4927
          %4933 = dma.vmem_to_hbm [thread:$0]  %s4928, 4096, %s4926, %s4882, 128, 128, 8
        $region92: #{tpu_custom_call.1} parent=51 // pred_fallthru
          _
        // Predicated region
        $region93: #{tpu_custom_call.1} parent=51 // pred_check
          %p4934 = pneg %p321
        $region94: #{tpu_custom_call.1} parent=51 // pred_check_branch
          %4936 = sbr.rel (%p4934) target = $region96
        $region95: #{tpu_custom_call.1} parent=51 // pred_region
          %s4937 = smul.u32 32, %s48
          %s4939 = ssub.s32 4096, 4096
          %4940 = vsyncadd %s4887, %s4939
          %s4941 = smul.addr %s4937, 2
          %s4942 = smul.addr %s47, 128
          %s4943 = sadd.s32 %s4941, %s4942
          %s4944 = smul.addr %s4943, 64
          %s4945 = scalar_lea.hbm %s10, %s4944
          %s4946 = sshll.u32 %s4890, 4
          %s4947 = int_to_ptr.vmem [resolvable:$true] %s4946
          %4952 = dma.vmem_to_hbm [thread:$0]  %s4947, 4096, %s4945, %s4887, 128, 128, 8
        $region96: #{tpu_custom_call.1} parent=51 // pred_fallthru
          _
        // Predicated region
        $region97: #{tpu_custom_call.1} parent=51 // pred_check
          %p4953 = pneg %p349
        $region98: #{tpu_custom_call.1} parent=51 // pred_check_branch
          %4955 = sbr.rel (%p4953) target = $region100
        $region99: #{tpu_custom_call.1} parent=51 // pred_region
          %s4956 = smul.u32 32, %s48
          %s4958 = ssub.s32 4096, 4096
          %4959 = vsyncadd %s4892, %s4958
          %s4960 = smul.addr %s4956, 2
          %s4961 = smul.addr %s47, 128
          %s4962 = sadd.s32 %s4960, %s4961
          %s4963 = smul.addr %s4962, 64
          %s4964 = scalar_lea.hbm %s11, %s4963
          %s4965 = sshll.u32 %s4895, 4
          %s4966 = int_to_ptr.vmem [resolvable:$true] %s4965
          %4971 = dma.vmem_to_hbm [thread:$0]  %s4966, 4096, %s4964, %s4892, 128, 128, 8
        $region100: #{tpu_custom_call.1} parent=51 // pred_fallthru
          _
      $region52: #{tpu_custom_call.1} parent=5 // pred_fallthru
        _
      %p4972 = scmp.le.s32.totalorder 2, %s38
      // Predicated region
      $region101: #{tpu_custom_call.1} parent=5 // pred_check
        %p4973 = pneg %p4972
      $region102: #{tpu_custom_call.1} parent=5 // pred_check_branch
        %4975 = sbr.rel (%p4973) target = $region104
      $region103: #{tpu_custom_call.1} parent=5 // pred_region
        %s4976 = ssub.s32 %s38, 2
        // Predicated region
        $region105: #{tpu_custom_call.1} parent=103 // pred_check
          %p4977 = pneg %p271
        $region106: #{tpu_custom_call.1} parent=103 // pred_check_branch
          %4979 = sbr.rel (%p4977) target = $region108
        $region107: #{tpu_custom_call.1} parent=103 // pred_region
          %s4980 = sand.u32 %s256, 1
          %s4981 = scalar_lea.sflag [#allocation4], %s4980
          %s4982 = sand.u32 %s256, 1
          %s4983 = smul.addr %s4982, 256
          %s4984 = scalar_lea.vmem [#allocation16], %s4983
          %4985 = dma.done %s4981, 4096
        $region108: #{tpu_custom_call.1} parent=103 // pred_fallthru
          _
        // Predicated region
        $region109: #{tpu_custom_call.1} parent=103 // pred_check
          %p4986 = pneg %p299
        $region110: #{tpu_custom_call.1} parent=103 // pred_check_branch
          %4988 = sbr.rel (%p4986) target = $region112
        $region111: #{tpu_custom_call.1} parent=103 // pred_region
          %s4989 = sand.u32 %s44, 1
          %s4990 = scalar_lea.sflag [#allocation18], %s4989
          %s4991 = sand.u32 %s284, 1
          %s4992 = smul.addr %s4991, 256
          %s4993 = scalar_lea.vmem [#allocation17], %s4992
          %4994 = dma.done %s4990, 4096
        $region112: #{tpu_custom_call.1} parent=103 // pred_fallthru
          _
        // Predicated region
        $region113: #{tpu_custom_call.1} parent=103 // pred_check
          %p4995 = pneg %p327
        $region114: #{tpu_custom_call.1} parent=103 // pred_check_branch
          %4997 = sbr.rel (%p4995) target = $region116
        $region115: #{tpu_custom_call.1} parent=103 // pred_region
          %s4998 = sand.u32 %s44, 1
          %s4999 = scalar_lea.sflag [#allocation18], %s4998
          %s5000 = sand.u32 %s312, 1
          %s5001 = smul.addr %s5000, 256
          %s5002 = scalar_lea.vmem [#allocation19], %s5001
          %5003 = dma.done %s4999, 4096
        $region116: #{tpu_custom_call.1} parent=103 // pred_fallthru
          _
        // Predicated region
        $region117: #{tpu_custom_call.1} parent=103 // pred_check
          %p5004 = pneg %p355
        $region118: #{tpu_custom_call.1} parent=103 // pred_check_branch
          %5006 = sbr.rel (%p5004) target = $region120
        $region119: #{tpu_custom_call.1} parent=103 // pred_region
          %s5007 = sand.u32 %s340, 1
          %s5008 = scalar_lea.sflag [#allocation21], %s5007
          %s5009 = sand.u32 %s340, 1
          %s5010 = smul.addr %s5009, 256
          %s5011 = scalar_lea.vmem [#allocation20], %s5010
          %5012 = dma.done %s5008, 4096
        $region120: #{tpu_custom_call.1} parent=103 // pred_fallthru
          _
      $region104: #{tpu_custom_call.1} parent=5 // pred_fallthru
        _
    $region6: #{tpu_custom_call.1} parent=1 // loop_footer
      %s42 = sadd.s32 1, %s38
    $region7: #{tpu_custom_call.1} parent=1 // loop_footer_branch
      %37 = sbr.rel target = $region3
    $region8: #{tpu_custom_call.1} parent=1 // loop_exit
      _
    %5013 = vsyncpa [#allocation3], 1
    %s5014 = scalar_lea.sflag [#allocation3], 1
    %5015 = vsyncpa %s5014, 1
    %5016 = vsyncpa [#allocation6], 1
    %5017 = vsyncpa [#allocation9], 1
    %5018 = vsyncpa [#allocation12], 1
    %s5019 = scalar_lea.sflag [#allocation12], 1
    %5020 = vsyncpa %s5019, 1
    %5021 = vsyncpa [#allocation15], 1
    %s5022 = scalar_lea.sflag [#allocation15], 1
    %5023 = vsyncpa %s5022, 1
    %5024 = vsyncpa [#allocation4], 1
    %s5025 = scalar_lea.sflag [#allocation4], 1
    %5026 = vsyncpa %s5025, 1
    %5027 = vsyncpa [#allocation18], 1
    %s5028 = scalar_lea.sflag [#allocation18], 1
    %5029 = vsyncpa %s5028, 1
    %5030 = vsyncpa [#allocation21], 1
    %s5031 = scalar_lea.sflag [#allocation21], 1
    %5032 = vsyncpa %s5031, 1

</llo_original>
